<compile_context>
chip_gen: v6e
topology: v6e:2x2x1
jax: 0.10.0
libtpu: 0.0.40
codegen_flags: <defaults>
</compile_context>

<pallas_src>
import math

import jax
import jax.numpy as jnp
import numpy as np
from jax import lax
from jax.experimental import pallas as pl
from jax.experimental.pallas import tpu as pltpu

LN_EPS = 1e-5                    # torch.nn.LayerNorm default
_UNROLL = 8                      # source rows per fori_loop step in the conv
_VMEM_LIMIT = 48 * 1024 * 1024   # scoped-VMEM budget: safe under v7x's 64 MiB/TC


# ----------------------------------------------------------------------------
# Tiling / compiler-params helpers
# ----------------------------------------------------------------------------
def _pick_tile(n, candidates=(256, 128), want_multi=True):
    """Largest candidate tile dividing n; prefer >=2 tiles (megacore balance)."""
    fallback = None
    for t in candidates:
        if n % t == 0:
            if fallback is None:
                fallback = t
            if not want_multi or n // t >= 2:
                return t
    if fallback is not None:
        return fallback
    raise ValueError(f"dimension {n} is not a multiple of any of {candidates}")


def _compiler_params(semantics):
    return pltpu.CompilerParams(dimension_semantics=semantics,
                                vmem_limit_bytes=_VMEM_LIMIT)


# ----------------------------------------------------------------------------
# In-kernel math helpers (only ops guaranteed to lower on TPU)
# ----------------------------------------------------------------------------
def _erf(x):
    # Abramowitz & Stegun 7.1.26 (float32-accurate).  The 1/(1+p*|x|) goes to
    # the EUP via pl.reciprocal(approx=True) (documented ~1e-3-level trade),
    # freeing vector-ALU slots.
    a1, a2, a3, a4, a5 = 0.254829592, -0.284496736, 1.421413741, -1.453152027, 1.061405429
    p = 0.3275911
    s = jnp.where(x >= 0.0, 1.0, -1.0)
    ax = jnp.abs(x)
    t = pl.reciprocal(1.0 + p * ax, approx=True)
    poly = ((((a5 * t + a4) * t + a3) * t + a2) * t + a1) * t
    return s * (1.0 - poly * jnp.exp(-ax * ax))


def _gelu(x):
    # exact (erf-based) GELU, matching torch.nn.GELU() default
    return 0.5 * x * (1.0 + _erf(x * (1.0 / math.sqrt(2.0))))


def _layernorm(x, g, b):
    mu = jnp.mean(x, axis=-1, keepdims=True)
    xc = x - mu
    var = jnp.mean(xc * xc, axis=-1, keepdims=True)
    return xc * lax.rsqrt(var + LN_EPS) * g + b


# ----------------------------------------------------------------------------
# Pallas kernels
# ----------------------------------------------------------------------------
def _gss_pre_kernel(x_ref, g1_ref, b1_ref, wu_ref, wv_ref, g2_ref, b2_ref,
                    u_ref, vn_ref):
    """LayerNorm -> to_u/to_v (bf16 MXU matmuls) + GELU -> DSS inner LayerNorm."""
    x = x_ref[...]                                          # (TM, D) f32
    xn = _layernorm(x, g1_ref[...], b1_ref[...])
    xnb = xn.astype(jnp.bfloat16)
    u = _gelu(jnp.dot(xnb, wu_ref[...], preferred_element_type=jnp.float32))
    v = _gelu(jnp.dot(xnb, wv_ref[...], preferred_element_type=jnp.float32))
    u_ref[...] = u.astype(jnp.bfloat16)                     # (TM, DH) bf16 stream
    vn_ref[...] = _layernorm(v, g2_ref[...], b2_ref[...])   # (TM, H) f32 for conv


def _dss_conv_kernel(vn_ref, kpad_ref, d_ref, out_ref):
    """Causal depthwise conv on one (L, Ht) tile:
         y[l,h] = sum_{j<=l} K[l-j,h] * vn[j,h]  +  vn[l,h] * D[h]

    Kpad = concat(zeros(L), K) is a host-built constant resident in VMEM for
    the whole grid (constant index map), so the causal zero padding costs no
    in-kernel stores and no scratch.  The f32 accumulator is carried in vector
    registers through the fori_loop and stored once at the end."""
    L, Ht = out_ref.shape
    vn = vn_ref[...]                                        # (L, Ht) f32
    acc0 = vn * d_ref[...]                                  # D-residual (norm(v)*param_D)

    def mac(j, acc):
        vrow = vn_ref[pl.ds(j, 1), :]                       # (1, Ht) source row j
        kwin = kpad_ref[pl.ds(L - j, L), :]                 # (L, Ht): K[l-j], 0 for l<j
        return acc + kwin * vrow

    def body(c, acc):
        j0 = c * _UNROLL
        for jj in range(_UNROLL):                           # statically unrolled
            acc = mac(j0 + jj, acc)
        return acc

    acc = lax.fori_loop(0, L // _UNROLL, body, acc0)
    out_ref[...] = acc.astype(out_ref.dtype)                # single bf16 store


def _gss_post_kernel(vdss_ref, u_ref, x_ref, wg_ref, wo_ref, bo_ref, out_ref):
    """to_gate matmul -> bf16 gating -> to_out matmul + bias -> residual add."""
    uc = jnp.dot(vdss_ref[...], wg_ref[...],
                 preferred_element_type=jnp.float32)        # (TM, DH) f32
    gated = uc.astype(jnp.bfloat16) * u_ref[...]            # bf16 gating -> MXU input
    out = jnp.dot(gated, wo_ref[...], preferred_element_type=jnp.float32)
    out_ref[...] = out + bo_ref[...] + x_ref[...]           # f32 residual stream


def _logits_kernel(x_ref, w_ref, out_ref):
    out_ref[...] = jnp.dot(x_ref[...].astype(jnp.bfloat16), w_ref[...],
                           preferred_element_type=jnp.float32)


# ----------------------------------------------------------------------------
# Plain-JAX glue: DSS kernel K construction (parameter-only math)
# ----------------------------------------------------------------------------
def _build_dss_K(lambda_real, lambda_imag, c_real, c_imag, seq_len,
                 lambda_imag_exp=True):
    li = jnp.exp(lambda_imag) if lambda_imag_exp else lambda_imag
    Lam = -jnp.exp(lambda_real) + 1j * li                        # (N,)
    C = (c_real + 1j * c_imag) * (jnp.exp(Lam) - 1.0) / Lam      # (H, N)
    arange = jnp.arange(seq_len, dtype=jnp.float32)
    S = jnp.exp(Lam[:, None] * arange[None, :])                  # (N, L)
    K = jnp.einsum("hn,nl->lh", C, S).real                       # (L, H)
    return K.astype(jnp.float32)


# ----------------------------------------------------------------------------
# Pallas wrappers
# ----------------------------------------------------------------------------
def gss_layer(x_flat, B, L, p):
    """One GSS layer on the flattened (M=B*L, D) activation (f32 residual)."""
    M, D = x_flat.shape
    DH = p["wu"].shape[1]
    H = p["wv"].shape[1]
    assert M == B * L
    assert L % _UNROLL == 0, "seq_len must be a multiple of the conv unroll (8)"
    tm = _pick_tile(M)                     # 256 when possible, else 128 (>=2 tiles)
    nm = M // tm

    # --- 1) token-parallel pre kernel: LN + to_u/to_v + GELU + inner LN -----
    u, vn = pl.pallas_call(
        _gss_pre_kernel,
        out_shape=(jax.ShapeDtypeStruct((M, DH), jnp.bfloat16),   # u: bf16 stream
                   jax.ShapeDtypeStruct((M, H), jnp.float32)),    # vn: f32 for conv
        grid=(nm,),
        in_specs=[
            pl.BlockSpec((tm, D), lambda i: (i, 0)),      # x
            pl.BlockSpec((1, D), lambda i: (0, 0)),       # ln1 gamma (resident)
            pl.BlockSpec((1, D), lambda i: (0, 0)),       # ln1 beta
            pl.BlockSpec((D, DH), lambda i: (0, 0)),      # W_u (bf16, resident)
            pl.BlockSpec((D, H), lambda i: (0, 0)),       # W_v (bf16, resident)
            pl.BlockSpec((1, H), lambda i: (0, 0)),       # ln2 gamma
            pl.BlockSpec((1, H), lambda i: (0, 0)),       # ln2 beta
        ],
        out_specs=(pl.BlockSpec((tm, DH), lambda i: (i, 0)),
                   pl.BlockSpec((tm, H), lambda i: (i, 0))),
        compiler_params=_compiler_params(("parallel",)),
    )(x_flat, p["g1"], p["b1"], p["wu"], p["wv"], p["g2"], p["b2"])

    # --- 2) causal state-space convolution, grid over (batch, H tiles) ------
    K = _build_dss_K(p["lambda_real"], p["lambda_imag"],
                     p["c_real"], p["c_imag"], L)                 # (L, H) f32
    kpad = jnp.concatenate([jnp.zeros_like(K), K], axis=0)        # (2L, H), host-built
    ht = 128 if H % 128 == 0 else H
    nh = H // ht
    v_dss = pl.pallas_call(
        _dss_conv_kernel,
        out_shape=jax.ShapeDtypeStruct((M, H), jnp.bfloat16),
        grid=(B, nh),
        in_specs=[
            pl.BlockSpec((L, ht), lambda b, h: (b, h)),           # vn rows of batch b
            pl.BlockSpec((2 * L, ht), lambda b, h: (0, h)),       # Kpad (resident)
            pl.BlockSpec((1, ht), lambda b, h: (0, h)),           # param_D (resident)
        ],
        out_specs=pl.BlockSpec((L, ht), lambda b, h: (b, h)),
        compiler_params=_compiler_params(("parallel", "parallel")),
    )(vn, kpad, p["d"])

    # --- 3) token-parallel post kernel: gate + out proj + residual ----------
    out = pl.pallas_call(
        _gss_post_kernel,
        out_shape=jax.ShapeDtypeStruct((M, D), jnp.float32),
        grid=(nm,),
        in_specs=[
            pl.BlockSpec((tm, H), lambda i: (i, 0)),      # v_dss (bf16)
            pl.BlockSpec((tm, DH), lambda i: (i, 0)),     # u (bf16)
            pl.BlockSpec((tm, D), lambda i: (i, 0)),      # residual x (f32)
            pl.BlockSpec((H, DH), lambda i: (0, 0)),      # W_gate (bf16, resident)
            pl.BlockSpec((DH, D), lambda i: (0, 0)),      # W_out (bf16, resident)
            pl.BlockSpec((1, D), lambda i: (0, 0)),       # b_out
        ],
        out_specs=pl.BlockSpec((tm, D), lambda i: (i, 0)),
        compiler_params=_compiler_params(("parallel",)),
    )(v_dss, u, x_flat, p["wg"], p["wo"], p["bo"])
    return out


def to_logits(x_flat, w):
    M, D = x_flat.shape
    V = w.shape[1]
    tm = _pick_tile(M, want_multi=False)      # bigger M tile -> fewer weight re-reads
    tv = _pick_tile(V)                        # keep >=2 V tiles for megacore
    # V is the OUTER grid axis so the (D, tv) weight tile stays resident while
    # the M tiles stream (block index unchanged across the inner loop).
    return pl.pallas_call(
        _logits_kernel,
        out_shape=jax.ShapeDtypeStruct((M, V), jnp.float32),
        grid=(V // tv, M // tm),
        in_specs=[pl.BlockSpec((tm, D), lambda v, m: (m, 0)),
                  pl.BlockSpec((D, tv), lambda v, m: (0, v))],
        out_specs=pl.BlockSpec((tm, tv), lambda v, m: (m, v)),
        compiler_params=_compiler_params(("parallel", "parallel")),
    )(x_flat, w)


@jax.jit
def gated_state_spaces_lm(tokens, params):
    B, L = tokens.shape
    D = params["emb"].shape[1]
    x = params["emb"][tokens].reshape(B * L, D)     # embedding gather (glue)
    for p in params["layers"]:
        x = gss_layer(x, B, L, p)
    logits = to_logits(x, params["w_logits"])
    V = params["w_logits"].shape[1]
    return logits.reshape(B, L, V)


# ----------------------------------------------------------------------------
# Deterministic parameter initialization (shapes follow the module __init__).
# Matmul weights are stored in bfloat16 (accumulation stays f32 in-kernel).
# ----------------------------------------------------------------------------
def init_params(key, *, num_tokens, dim, depth, dim_expansion_factor, N, H):
    dh = int(dim_expansion_factor * dim)
    keys = jax.random.split(key, depth + 2)

    def w(k, shape, scale):
        return (jax.random.normal(k, shape, jnp.float32) * scale).astype(jnp.bfloat16)

    params = {
        "emb": jax.random.normal(keys[0], (num_tokens, dim), jnp.float32),
        "w_logits": w(keys[1], (dim, num_tokens), 1.0 / math.sqrt(dim)),
        "layers": [],
    }
    for i in range(depth):
        k = jax.random.split(keys[2 + i], 9)
        params["layers"].append({
            "g1": jnp.ones((1, dim), jnp.float32),
            "b1": jnp.zeros((1, dim), jnp.float32),
            "wu": w(k[0], (dim, dh), 1.0 / math.sqrt(dim)),
            "wv": w(k[1], (dim, H), 1.0 / math.sqrt(dim)),
            "g2": jnp.ones((1, H), jnp.float32),
            "b2": jnp.zeros((1, H), jnp.float32),
            "lambda_real": jax.random.normal(k[2], (N,), jnp.float32),
            "lambda_imag": jax.random.normal(k[3], (N,), jnp.float32),
            "c_real": jax.random.normal(k[4], (H, N), jnp.float32),
            "c_imag": jax.random.normal(k[5], (H, N), jnp.float32),
            "d": jax.random.normal(k[6], (1, H), jnp.float32),
            "wg": w(k[7], (H, dh), 1.0 / math.sqrt(H)),
            "wo": w(k[8], (dh, dim), 1.0 / math.sqrt(dh)),
            "bo": jnp.zeros((1, dim), jnp.float32),
        })
    return params


# ----------------------------------------------------------------------------
# Pure-JAX reference (FFT path, like the PyTorch module); uses the same stored
# (bf16) weight values cast to f32 and f32 activations throughout.
# ----------------------------------------------------------------------------
def _ref_forward(tokens, params):
    def ln(x, g, b):
        mu = x.mean(-1, keepdims=True)
        var = ((x - mu) ** 2).mean(-1, keepdims=True)
        return (x - mu) / jnp.sqrt(var + LN_EPS) * g + b

    def gelu(x):
        return 0.5 * x * (1.0 + jax.scipy.special.erf(x / math.sqrt(2.0)))

    f32 = lambda a: a.astype(jnp.float32)

    x = params["emb"][tokens]
    for p in params["layers"]:
        res = x
        xn = ln(x, p["g1"], p["b1"])
        u = gelu(xn @ f32(p["wu"]))
        v = gelu(xn @ f32(p["wv"]))
        vn = ln(v, p["g2"], p["b2"])
        res2 = vn * p["d"]
        L = x.shape[1]
        K = _build_dss_K(p["lambda_real"], p["lambda_imag"],
                         p["c_real"], p["c_imag"], L)
        u_f = jnp.fft.rfft(vn, n=2 * L, axis=-2)
        K_f = jnp.fft.rfft(K, n=2 * L, axis=-2)
        y = jnp.fft.irfft(u_f * K_f, 2 * L, axis=-2)[..., :L, :]
        v_dss = y + res2
        uc = v_dss @ f32(p["wg"])
        out = (uc * u) @ f32(p["wo"]) + p["bo"]
        x = out + res
    return x @ f32(params["w_logits"])


# ----------------------------------------------------------------------------
if __name__ == "__main__":
    # Small shapes consistent with GatedStateSpacesLM(num_tokens, dim, depth, ...)
    # chosen so every lane dimension is a multiple of 128 and B*L tiles at 128.
    num_tokens, dim, depth = 256, 128, 2
    dim_expansion_factor = 2          # -> dim_hidden = 256
    dss_kernel_N, dss_kernel_H = 64, 128
    B, L = 2, 128

    key = jax.random.PRNGKey(0)
    pkey, tkey = jax.random.split(key)
    params = init_params(pkey, num_tokens=num_tokens, dim=dim, depth=depth,
                         dim_expansion_factor=dim_expansion_factor,
                         N=dss_kernel_N, H=dss_kernel_H)
    tokens = jax.random.randint(tkey, (B, L), 0, num_tokens)

    logits = gated_state_spaces_lm(tokens, params)
    logits = jax.block_until_ready(logits)
    assert logits.shape == (B, L, num_tokens)

    # Sanity check against a pure-JAX (FFT-based) reference.
    with jax.default_matmul_precision("highest"):
        ref = jax.block_until_ready(_ref_forward(tokens, params))
    out_np, ref_np = np.asarray(logits), np.asarray(ref)
    err = np.max(np.abs(out_np - ref_np)) / (np.max(np.abs(ref_np)) + 1e-6)
    assert err < 5e-2, f"mismatch vs reference: normalized max err = {err}"

    print("KERNEL_OK")
</pallas_src>

<mosaic_0001>
module attributes {stable_mosaic.version = 11 : i64} {
  func.func @_gss_pre_kernel(%arg0: i32, %arg1: memref<128x128xf32, #tpu.memory_space<vmem>>, %arg2: memref<1x128xf32, #tpu.memory_space<vmem>>, %arg3: memref<1x128xf32, #tpu.memory_space<vmem>>, %arg4: memref<128x256xbf16, #tpu.memory_space<vmem>>, %arg5: memref<128x128xbf16, #tpu.memory_space<vmem>>, %arg6: memref<1x128xf32, #tpu.memory_space<vmem>>, %arg7: memref<1x128xf32, #tpu.memory_space<vmem>>, %arg8: memref<128x256xbf16, #tpu.memory_space<vmem>>, %arg9: memref<128x128xf32, #tpu.memory_space<vmem>>) attributes {dimension_semantics = [#tpu.dimension_semantics<parallel>], iteration_bounds = array<i64: 2>, scalar_prefetch = 0 : i64, scratch_operands = 0 : i64, tpu.core_type = #tpu.core_type<tc>, window_params = [{transform_indices = @transform_0, window_bounds = array<i64: 128, 128>}, {pipeline_mode = #tpu.pipeline_mode<synchronous>, transform_indices = @transform_1, window_bounds = array<i64: 1, 128>}, {pipeline_mode = #tpu.pipeline_mode<synchronous>, transform_indices = @transform_2, window_bounds = array<i64: 1, 128>}, {pipeline_mode = #tpu.pipeline_mode<synchronous>, transform_indices = @transform_3, window_bounds = array<i64: 128, 256>}, {pipeline_mode = #tpu.pipeline_mode<synchronous>, transform_indices = @transform_4, window_bounds = array<i64: 128, 128>}, {pipeline_mode = #tpu.pipeline_mode<synchronous>, transform_indices = @transform_5, window_bounds = array<i64: 1, 128>}, {pipeline_mode = #tpu.pipeline_mode<synchronous>, transform_indices = @transform_6, window_bounds = array<i64: 1, 128>}, {transform_indices = @transform_7, window_bounds = array<i64: 128, 256>}, {transform_indices = @transform_8, window_bounds = array<i64: 128, 128>}]} {
    %c0 = arith.constant 0 : index
    %c0_0 = arith.constant 0 : index
    %0 = vector.load %arg1[%c0, %c0_0] : memref<128x128xf32, #tpu.memory_space<vmem>>, vector<128x128xf32>
    %c0_1 = arith.constant 0 : index
    %c0_2 = arith.constant 0 : index
    %1 = vector.load %arg2[%c0_1, %c0_2] : memref<1x128xf32, #tpu.memory_space<vmem>>, vector<1x128xf32>
    %c0_3 = arith.constant 0 : index
    %c0_4 = arith.constant 0 : index
    %2 = vector.load %arg3[%c0_3, %c0_4] : memref<1x128xf32, #tpu.memory_space<vmem>>, vector<1x128xf32>
    %cst = arith.constant dense<0.000000e+00> : vector<128xf32>
    %3 = vector.multi_reduction <add>, %0, %cst [1] : vector<128x128xf32> to vector<128xf32>
    %4 = vector.shape_cast %3 : vector<128xf32> to vector<128x1xf32>
    %cst_5 = arith.constant 1.280000e+02 : f32
    %5 = vector.broadcast %cst_5 : f32 to vector<128x1xf32>
    %6 = arith.divf %4, %5 : vector<128x1xf32>
    %7 = vector.broadcast %6 : vector<128x1xf32> to vector<128x128xf32>
    %8 = arith.subf %0, %7 : vector<128x128xf32>
    %9 = arith.mulf %8, %8 : vector<128x128xf32>
    %cst_6 = arith.constant dense<0.000000e+00> : vector<128xf32>
    %10 = vector.multi_reduction <add>, %9, %cst_6 [1] : vector<128x128xf32> to vector<128xf32>
    %11 = vector.shape_cast %10 : vector<128xf32> to vector<128x1xf32>
    %cst_7 = arith.constant 1.280000e+02 : f32
    %12 = vector.broadcast %cst_7 : f32 to vector<128x1xf32>
    %13 = arith.divf %11, %12 : vector<128x1xf32>
    %cst_8 = arith.constant 9.99999974E-6 : f32
    %14 = vector.broadcast %cst_8 : f32 to vector<128x1xf32>
    %15 = arith.addf %13, %14 : vector<128x1xf32>
    %16 = math.rsqrt %15 : vector<128x1xf32>
    %17 = vector.broadcast %16 : vector<128x1xf32> to vector<128x128xf32>
    %18 = arith.mulf %8, %17 : vector<128x128xf32>
    %19 = vector.broadcast %1 : vector<1x128xf32> to vector<128x128xf32>
    %20 = arith.mulf %18, %19 : vector<128x128xf32>
    %21 = vector.broadcast %2 : vector<1x128xf32> to vector<128x128xf32>
    %22 = arith.addf %20, %21 : vector<128x128xf32>
    %23 = arith.truncf %22 : vector<128x128xf32> to vector<128x128xbf16>
    %c0_9 = arith.constant 0 : index
    %c0_10 = arith.constant 0 : index
    %24 = vector.load %arg4[%c0_9, %c0_10] : memref<128x256xbf16, #tpu.memory_space<vmem>>, vector<128x256xbf16>
    %cst_11 = arith.constant dense<0.000000e+00> : vector<128x256xf32>
    %25 = tpu.matmul %23, %24, %cst_11 {dimension_numbers = #tpu.dot_dimension_numbers<[1], [0], [0], [1], [0, 0, 1, 1], [], []>} : vector<128x128xbf16>, vector<128x256xbf16>, vector<128x256xf32> -> vector<128x256xf32>
    %cst_12 = arith.constant 5.000000e-01 : f32
    %26 = vector.broadcast %cst_12 : f32 to vector<128x256xf32>
    %27 = arith.mulf %26, %25 : vector<128x256xf32>
    %cst_13 = arith.constant 0.707106769 : f32
    %28 = vector.broadcast %cst_13 : f32 to vector<128x256xf32>
    %29 = arith.mulf %25, %28 : vector<128x256xf32>
    %cst_14 = arith.constant 0.000000e+00 : f32
    %30 = vector.broadcast %cst_14 : f32 to vector<128x256xf32>
    %31 = arith.cmpf oge, %29, %30 : vector<128x256xf32>
    %cst_15 = arith.constant 1.000000e+00 : f32
    %cst_16 = arith.constant -1.000000e+00 : f32
    %32 = vector.broadcast %cst_15 : f32 to vector<128x256xf32>
    %33 = vector.broadcast %cst_16 : f32 to vector<128x256xf32>
    %34 = arith.select %31, %32, %33 : vector<128x256xi1>, vector<128x256xf32>
    %35 = math.absf %29 : vector<128x256xf32>
    %cst_17 = arith.constant 0.327591091 : f32
    %36 = vector.broadcast %cst_17 : f32 to vector<128x256xf32>
    %37 = arith.mulf %36, %35 : vector<128x256xf32>
    %cst_18 = arith.constant 1.000000e+00 : f32
    %38 = vector.broadcast %cst_18 : f32 to vector<128x256xf32>
    %39 = arith.addf %38, %37 : vector<128x256xf32>
    %40 = tpu.reciprocal %39 {approx = true} : vector<128x256xf32> -> vector<128x256xf32>
    %cst_19 = arith.constant 1.06140542 : f32
    %41 = vector.broadcast %cst_19 : f32 to vector<128x256xf32>
    %42 = arith.mulf %41, %40 : vector<128x256xf32>
    %cst_20 = arith.constant -1.45315206 : f32
    %43 = vector.broadcast %cst_20 : f32 to vector<128x256xf32>
    %44 = arith.addf %42, %43 : vector<128x256xf32>
    %45 = arith.mulf %44, %40 : vector<128x256xf32>
    %cst_21 = arith.constant 1.42141378 : f32
    %46 = vector.broadcast %cst_21 : f32 to vector<128x256xf32>
    %47 = arith.addf %45, %46 : vector<128x256xf32>
    %48 = arith.mulf %47, %40 : vector<128x256xf32>
    %cst_22 = arith.constant -0.284496725 : f32
    %49 = vector.broadcast %cst_22 : f32 to vector<128x256xf32>
    %50 = arith.addf %48, %49 : vector<128x256xf32>
    %51 = arith.mulf %50, %40 : vector<128x256xf32>
    %cst_23 = arith.constant 0.254829586 : f32
    %52 = vector.broadcast %cst_23 : f32 to vector<128x256xf32>
    %53 = arith.addf %51, %52 : vector<128x256xf32>
    %54 = arith.mulf %53, %40 : vector<128x256xf32>
    %cst_24 = arith.constant 0.000000e+00 : f32
    %55 = vector.broadcast %cst_24 : f32 to vector<128x256xf32>
    %56 = arith.subf %55, %35 : vector<128x256xf32>
    %57 = arith.mulf %56, %35 : vector<128x256xf32>
    %58 = math.exp %57 : vector<128x256xf32>
    %59 = arith.mulf %54, %58 : vector<128x256xf32>
    %cst_25 = arith.constant 1.000000e+00 : f32
    %60 = vector.broadcast %cst_25 : f32 to vector<128x256xf32>
    %61 = arith.subf %60, %59 : vector<128x256xf32>
    %62 = arith.mulf %34, %61 : vector<128x256xf32>
    %cst_26 = arith.constant 1.000000e+00 : f32
    %63 = vector.broadcast %cst_26 : f32 to vector<128x256xf32>
    %64 = arith.addf %63, %62 : vector<128x256xf32>
    %65 = arith.mulf %27, %64 : vector<128x256xf32>
    %c0_27 = arith.constant 0 : index
    %c0_28 = arith.constant 0 : index
    %66 = vector.load %arg5[%c0_27, %c0_28] : memref<128x128xbf16, #tpu.memory_space<vmem>>, vector<128x128xbf16>
    %cst_29 = arith.constant dense<0.000000e+00> : vector<128x128xf32>
    %67 = tpu.matmul %23, %66, %cst_29 {dimension_numbers = #tpu.dot_dimension_numbers<[1], [0], [0], [1], [0, 0, 1, 1], [], []>} : vector<128x128xbf16>, vector<128x128xbf16>, vector<128x128xf32> -> vector<128x128xf32>
    %cst_30 = arith.constant 5.000000e-01 : f32
    %68 = vector.broadcast %cst_30 : f32 to vector<128x128xf32>
    %69 = arith.mulf %68, %67 : vector<128x128xf32>
    %cst_31 = arith.constant 0.707106769 : f32
    %70 = vector.broadcast %cst_31 : f32 to vector<128x128xf32>
    %71 = arith.mulf %67, %70 : vector<128x128xf32>
    %cst_32 = arith.constant 0.000000e+00 : f32
    %72 = vector.broadcast %cst_32 : f32 to vector<128x128xf32>
    %73 = arith.cmpf oge, %71, %72 : vector<128x128xf32>
    %cst_33 = arith.constant 1.000000e+00 : f32
    %cst_34 = arith.constant -1.000000e+00 : f32
    %74 = vector.broadcast %cst_33 : f32 to vector<128x128xf32>
    %75 = vector.broadcast %cst_34 : f32 to vector<128x128xf32>
    %76 = arith.select %73, %74, %75 : vector<128x128xi1>, vector<128x128xf32>
    %77 = math.absf %71 : vector<128x128xf32>
    %cst_35 = arith.constant 0.327591091 : f32
    %78 = vector.broadcast %cst_35 : f32 to vector<128x128xf32>
    %79 = arith.mulf %78, %77 : vector<128x128xf32>
    %cst_36 = arith.constant 1.000000e+00 : f32
    %80 = vector.broadcast %cst_36 : f32 to vector<128x128xf32>
    %81 = arith.addf %80, %79 : vector<128x128xf32>
    %82 = tpu.reciprocal %81 {approx = true} : vector<128x128xf32> -> vector<128x128xf32>
    %cst_37 = arith.constant 1.06140542 : f32
    %83 = vector.broadcast %cst_37 : f32 to vector<128x128xf32>
    %84 = arith.mulf %83, %82 : vector<128x128xf32>
    %cst_38 = arith.constant -1.45315206 : f32
    %85 = vector.broadcast %cst_38 : f32 to vector<128x128xf32>
    %86 = arith.addf %84, %85 : vector<128x128xf32>
    %87 = arith.mulf %86, %82 : vector<128x128xf32>
    %cst_39 = arith.constant 1.42141378 : f32
    %88 = vector.broadcast %cst_39 : f32 to vector<128x128xf32>
    %89 = arith.addf %87, %88 : vector<128x128xf32>
    %90 = arith.mulf %89, %82 : vector<128x128xf32>
    %cst_40 = arith.constant -0.284496725 : f32
    %91 = vector.broadcast %cst_40 : f32 to vector<128x128xf32>
    %92 = arith.addf %90, %91 : vector<128x128xf32>
    %93 = arith.mulf %92, %82 : vector<128x128xf32>
    %cst_41 = arith.constant 0.254829586 : f32
    %94 = vector.broadcast %cst_41 : f32 to vector<128x128xf32>
    %95 = arith.addf %93, %94 : vector<128x128xf32>
    %96 = arith.mulf %95, %82 : vector<128x128xf32>
    %cst_42 = arith.constant 0.000000e+00 : f32
    %97 = vector.broadcast %cst_42 : f32 to vector<128x128xf32>
    %98 = arith.subf %97, %77 : vector<128x128xf32>
    %99 = arith.mulf %98, %77 : vector<128x128xf32>
    %100 = math.exp %99 : vector<128x128xf32>
    %101 = arith.mulf %96, %100 : vector<128x128xf32>
    %cst_43 = arith.constant 1.000000e+00 : f32
    %102 = vector.broadcast %cst_43 : f32 to vector<128x128xf32>
    %103 = arith.subf %102, %101 : vector<128x128xf32>
    %104 = arith.mulf %76, %103 : vector<128x128xf32>
    %cst_44 = arith.constant 1.000000e+00 : f32
    %105 = vector.broadcast %cst_44 : f32 to vector<128x128xf32>
    %106 = arith.addf %105, %104 : vector<128x128xf32>
    %107 = arith.mulf %69, %106 : vector<128x128xf32>
    %108 = arith.truncf %65 : vector<128x256xf32> to vector<128x256xbf16>
    %c0_45 = arith.constant 0 : index
    %c0_46 = arith.constant 0 : index
    %109 = vector.load %arg8[%c0_45, %c0_46] : memref<128x256xbf16, #tpu.memory_space<vmem>>, vector<128x256xbf16>
    tpu.vector_store %arg8[%c0_45, %c0_46], %108 {strides = array<i32>} : memref<128x256xbf16, #tpu.memory_space<vmem>>, vector<128x256xbf16>,
    %c0_47 = arith.constant 0 : index
    %c0_48 = arith.constant 0 : index
    %110 = vector.load %arg6[%c0_47, %c0_48] : memref<1x128xf32, #tpu.memory_space<vmem>>, vector<1x128xf32>
    %c0_49 = arith.constant 0 : index
    %c0_50 = arith.constant 0 : index
    %111 = vector.load %arg7[%c0_49, %c0_50] : memref<1x128xf32, #tpu.memory_space<vmem>>, vector<1x128xf32>
    %cst_51 = arith.constant dense<0.000000e+00> : vector<128xf32>
    %112 = vector.multi_reduction <add>, %107, %cst_51 [1] : vector<128x128xf32> to vector<128xf32>
    %113 = vector.shape_cast %112 : vector<128xf32> to vector<128x1xf32>
    %cst_52 = arith.constant 1.280000e+02 : f32
    %114 = vector.broadcast %cst_52 : f32 to vector<128x1xf32>
    %115 = arith.divf %113, %114 : vector<128x1xf32>
    %116 = vector.broadcast %115 : vector<128x1xf32> to vector<128x128xf32>
    %117 = arith.subf %107, %116 : vector<128x128xf32>
    %118 = arith.mulf %117, %117 : vector<128x128xf32>
    %cst_53 = arith.constant dense<0.000000e+00> : vector<128xf32>
    %119 = vector.multi_reduction <add>, %118, %cst_53 [1] : vector<128x128xf32> to vector<128xf32>
    %120 = vector.shape_cast %119 : vector<128xf32> to vector<128x1xf32>
    %cst_54 = arith.constant 1.280000e+02 : f32
    %121 = vector.broadcast %cst_54 : f32 to vector<128x1xf32>
    %122 = arith.divf %120, %121 : vector<128x1xf32>
    %cst_55 = arith.constant 9.99999974E-6 : f32
    %123 = vector.broadcast %cst_55 : f32 to vector<128x1xf32>
    %124 = arith.addf %122, %123 : vector<128x1xf32>
    %125 = math.rsqrt %124 : vector<128x1xf32>
    %126 = vector.broadcast %125 : vector<128x1xf32> to vector<128x128xf32>
    %127 = arith.mulf %117, %126 : vector<128x128xf32>
    %128 = vector.broadcast %110 : vector<1x128xf32> to vector<128x128xf32>
    %129 = arith.mulf %127, %128 : vector<128x128xf32>
    %130 = vector.broadcast %111 : vector<1x128xf32> to vector<128x128xf32>
    %131 = arith.addf %129, %130 : vector<128x128xf32>
    %c0_56 = arith.constant 0 : index
    %c0_57 = arith.constant 0 : index
    %132 = vector.load %arg9[%c0_56, %c0_57] : memref<128x128xf32, #tpu.memory_space<vmem>>, vector<128x128xf32>
    tpu.vector_store %arg9[%c0_56, %c0_57], %131 {strides = array<i32>} : memref<128x128xf32, #tpu.memory_space<vmem>>, vector<128x128xf32>,
    return
  }
  func.func @transform_0(%arg0: i32) -> (i32, i32) {
    %c0_i32 = arith.constant 0 : i32
    %c0_i32_0 = arith.constant 0 : i32
    return %arg0, %c0_i32 : i32, i32
  }
  func.func @transform_1(%arg0: i32) -> (i32, i32) {
    %c0_i32 = arith.constant 0 : i32
    %c0_i32_0 = arith.constant 0 : i32
    %c0_i32_1 = arith.constant 0 : i32
    return %c0_i32, %c0_i32_0 : i32, i32
  }
  func.func @transform_2(%arg0: i32) -> (i32, i32) {
    %c0_i32 = arith.constant 0 : i32
    %c0_i32_0 = arith.constant 0 : i32
    %c0_i32_1 = arith.constant 0 : i32
    return %c0_i32, %c0_i32_0 : i32, i32
  }
  func.func @transform_3(%arg0: i32) -> (i32, i32) {
    %c0_i32 = arith.constant 0 : i32
    %c0_i32_0 = arith.constant 0 : i32
    %c0_i32_1 = arith.constant 0 : i32
    return %c0_i32, %c0_i32_0 : i32, i32
  }
  func.func @transform_4(%arg0: i32) -> (i32, i32) {
    %c0_i32 = arith.constant 0 : i32
    %c0_i32_0 = arith.constant 0 : i32
    %c0_i32_1 = arith.constant 0 : i32
    return %c0_i32, %c0_i32_0 : i32, i32
  }
  func.func @transform_5(%arg0: i32) -> (i32, i32) {
    %c0_i32 = arith.constant 0 : i32
    %c0_i32_0 = arith.constant 0 : i32
    %c0_i32_1 = arith.constant 0 : i32
    return %c0_i32, %c0_i32_0 : i32, i32
  }
  func.func @transform_6(%arg0: i32) -> (i32, i32) {
    %c0_i32 = arith.constant 0 : i32
    %c0_i32_0 = arith.constant 0 : i32
    %c0_i32_1 = arith.constant 0 : i32
    return %c0_i32, %c0_i32_0 : i32, i32
  }
  func.func @transform_7(%arg0: i32) -> (i32, i32) {
    %c0_i32 = arith.constant 0 : i32
    %c0_i32_0 = arith.constant 0 : i32
    return %arg0, %c0_i32 : i32, i32
  }
  func.func @transform_8(%arg0: i32) -> (i32, i32) {
    %c0_i32 = arith.constant 0 : i32
    %c0_i32_0 = arith.constant 0 : i32
    return %arg0, %c0_i32 : i32, i32
  }
}

module attributes {stable_mosaic.version = 11 : i64} {
  func.func @_dss_conv_kernel(%arg0: i32, %arg1: i32, %arg2: memref<128x128xf32, #tpu.memory_space<vmem>>, %arg3: memref<256x128xf32, #tpu.memory_space<vmem>>, %arg4: memref<1x128xf32, #tpu.memory_space<vmem>>, %arg5: memref<128x128xbf16, #tpu.memory_space<vmem>>) attributes {dimension_semantics = [#tpu.dimension_semantics<parallel>, #tpu.dimension_semantics<parallel>], iteration_bounds = array<i64: 2, 1>, scalar_prefetch = 0 : i64, scratch_operands = 0 : i64, tpu.core_type = #tpu.core_type<tc>, window_params = [{transform_indices = @transform_0, window_bounds = array<i64: 128, 128>}, {transform_indices = @transform_1, window_bounds = array<i64: 256, 128>}, {transform_indices = @transform_2, window_bounds = array<i64: 1, 128>}, {transform_indices = @transform_3, window_bounds = array<i64: 128, 128>}]} {
    %c0 = arith.constant 0 : index
    %c0_0 = arith.constant 0 : index
    %0 = vector.load %arg2[%c0, %c0_0] : memref<128x128xf32, #tpu.memory_space<vmem>>, vector<128x128xf32>
    %c0_1 = arith.constant 0 : index
    %c0_2 = arith.constant 0 : index
    %1 = vector.load %arg4[%c0_1, %c0_2] : memref<1x128xf32, #tpu.memory_space<vmem>>, vector<1x128xf32>
    %2 = vector.broadcast %1 : vector<1x128xf32> to vector<128x128xf32>
    %3 = arith.mulf %0, %2 : vector<128x128xf32>
    %c0_i32 = arith.constant 0 : i32
    %c16_i32 = arith.constant 16 : i32
    %4 = arith.addi %c0_i32, %c16_i32 : i32
    %c1_i32 = arith.constant 1 : i32
    %5 = scf.for %arg6 = %c0_i32 to %4 step %c1_i32 iter_args(%arg7 = %3) -> (vector<128x128xf32>)  : i32 {
      %c8_i32 = arith.constant 8 : i32
      %8 = arith.muli %arg6, %c8_i32 : i32
      %c0_i32_6 = arith.constant 0 : i32
      %9 = arith.addi %8, %c0_i32_6 : i32
      %10 = arith.index_cast %9 : i32 to index
      %c0_7 = arith.constant 0 : index
      %11 = vector.load %arg2[%10, %c0_7] : memref<128x128xf32, #tpu.memory_space<vmem>>, vector<1x128xf32>
      %c128_i32 = arith.constant 128 : i32
      %12 = arith.subi %c128_i32, %9 : i32
      %13 = arith.index_cast %12 : i32 to index
      %c0_8 = arith.constant 0 : index
      %14 = vector.load %arg3[%13, %c0_8] : memref<256x128xf32, #tpu.memory_space<vmem>>, vector<128x128xf32>
      %15 = vector.broadcast %11 : vector<1x128xf32> to vector<128x128xf32>
      %16 = arith.mulf %14, %15 : vector<128x128xf32>
      %17 = arith.addf %arg7, %16 : vector<128x128xf32>
      %c1_i32_9 = arith.constant 1 : i32
      %18 = arith.addi %8, %c1_i32_9 : i32
      %19 = arith.index_cast %18 : i32 to index
      %c0_10 = arith.constant 0 : index
      %20 = vector.load %arg2[%19, %c0_10] : memref<128x128xf32, #tpu.memory_space<vmem>>, vector<1x128xf32>
      %c128_i32_11 = arith.constant 128 : i32
      %21 = arith.subi %c128_i32_11, %18 : i32
      %22 = arith.index_cast %21 : i32 to index
      %c0_12 = arith.constant 0 : index
      %23 = vector.load %arg3[%22, %c0_12] : memref<256x128xf32, #tpu.memory_space<vmem>>, vector<128x128xf32>
      %24 = vector.broadcast %20 : vector<1x128xf32> to vector<128x128xf32>
      %25 = arith.mulf %23, %24 : vector<128x128xf32>
      %26 = arith.addf %17, %25 : vector<128x128xf32>
      %c2_i32 = arith.constant 2 : i32
      %27 = arith.addi %8, %c2_i32 : i32
      %28 = arith.index_cast %27 : i32 to index
      %c0_13 = arith.constant 0 : index
      %29 = vector.load %arg2[%28, %c0_13] : memref<128x128xf32, #tpu.memory_space<vmem>>, vector<1x128xf32>
      %c128_i32_14 = arith.constant 128 : i32
      %30 = arith.subi %c128_i32_14, %27 : i32
      %31 = arith.index_cast %30 : i32 to index
      %c0_15 = arith.constant 0 : index
      %32 = vector.load %arg3[%31, %c0_15] : memref<256x128xf32, #tpu.memory_space<vmem>>, vector<128x128xf32>
      %33 = vector.broadcast %29 : vector<1x128xf32> to vector<128x128xf32>
      %34 = arith.mulf %32, %33 : vector<128x128xf32>
      %35 = arith.addf %26, %34 : vector<128x128xf32>
      %c3_i32 = arith.constant 3 : i32
      %36 = arith.addi %8, %c3_i32 : i32
      %37 = arith.index_cast %36 : i32 to index
      %c0_16 = arith.constant 0 : index
      %38 = vector.load %arg2[%37, %c0_16] : memref<128x128xf32, #tpu.memory_space<vmem>>, vector<1x128xf32>
      %c128_i32_17 = arith.constant 128 : i32
      %39 = arith.subi %c128_i32_17, %36 : i32
      %40 = arith.index_cast %39 : i32 to index
      %c0_18 = arith.constant 0 : index
      %41 = vector.load %arg3[%40, %c0_18] : memref<256x128xf32, #tpu.memory_space<vmem>>, vector<128x128xf32>
      %42 = vector.broadcast %38 : vector<1x128xf32> to vector<128x128xf32>
      %43 = arith.mulf %41, %42 : vector<128x128xf32>
      %44 = arith.addf %35, %43 : vector<128x128xf32>
      %c4_i32 = arith.constant 4 : i32
      %45 = arith.addi %8, %c4_i32 : i32
      %46 = arith.index_cast %45 : i32 to index
      %c0_19 = arith.constant 0 : index
      %47 = vector.load %arg2[%46, %c0_19] : memref<128x128xf32, #tpu.memory_space<vmem>>, vector<1x128xf32>
      %c128_i32_20 = arith.constant 128 : i32
      %48 = arith.subi %c128_i32_20, %45 : i32
      %49 = arith.index_cast %48 : i32 to index
      %c0_21 = arith.constant 0 : index
      %50 = vector.load %arg3[%49, %c0_21] : memref<256x128xf32, #tpu.memory_space<vmem>>, vector<128x128xf32>
      %51 = vector.broadcast %47 : vector<1x128xf32> to vector<128x128xf32>
      %52 = arith.mulf %50, %51 : vector<128x128xf32>
      %53 = arith.addf %44, %52 : vector<128x128xf32>
      %c5_i32 = arith.constant 5 : i32
      %54 = arith.addi %8, %c5_i32 : i32
      %55 = arith.index_cast %54 : i32 to index
      %c0_22 = arith.constant 0 : index
      %56 = vector.load %arg2[%55, %c0_22] : memref<128x128xf32, #tpu.memory_space<vmem>>, vector<1x128xf32>
      %c128_i32_23 = arith.constant 128 : i32
      %57 = arith.subi %c128_i32_23, %54 : i32
      %58 = arith.index_cast %57 : i32 to index
      %c0_24 = arith.constant 0 : index
      %59 = vector.load %arg3[%58, %c0_24] : memref<256x128xf32, #tpu.memory_space<vmem>>, vector<128x128xf32>
      %60 = vector.broadcast %56 : vector<1x128xf32> to vector<128x128xf32>
      %61 = arith.mulf %59, %60 : vector<128x128xf32>
      %62 = arith.addf %53, %61 : vector<128x128xf32>
      %c6_i32 = arith.constant 6 : i32
      %63 = arith.addi %8, %c6_i32 : i32
      %64 = arith.index_cast %63 : i32 to index
      %c0_25 = arith.constant 0 : index
      %65 = vector.load %arg2[%64, %c0_25] : memref<128x128xf32, #tpu.memory_space<vmem>>, vector<1x128xf32>
      %c128_i32_26 = arith.constant 128 : i32
      %66 = arith.subi %c128_i32_26, %63 : i32
      %67 = arith.index_cast %66 : i32 to index
      %c0_27 = arith.constant 0 : index
      %68 = vector.load %arg3[%67, %c0_27] : memref<256x128xf32, #tpu.memory_space<vmem>>, vector<128x128xf32>
      %69 = vector.broadcast %65 : vector<1x128xf32> to vector<128x128xf32>
      %70 = arith.mulf %68, %69 : vector<128x128xf32>
      %71 = arith.addf %62, %70 : vector<128x128xf32>
      %c7_i32 = arith.constant 7 : i32
      %72 = arith.addi %8, %c7_i32 : i32
      %73 = arith.index_cast %72 : i32 to index
      %c0_28 = arith.constant 0 : index
      %74 = vector.load %arg2[%73, %c0_28] : memref<128x128xf32, #tpu.memory_space<vmem>>, vector<1x128xf32>
      %c128_i32_29 = arith.constant 128 : i32
      %75 = arith.subi %c128_i32_29, %72 : i32
      %76 = arith.index_cast %75 : i32 to index
      %c0_30 = arith.constant 0 : index
      %77 = vector.load %arg3[%76, %c0_30] : memref<256x128xf32, #tpu.memory_space<vmem>>, vector<128x128xf32>
      %78 = vector.broadcast %74 : vector<1x128xf32> to vector<128x128xf32>
      %79 = arith.mulf %77, %78 : vector<128x128xf32>
      %80 = arith.addf %71, %79 : vector<128x128xf32>
      scf.yield %80 : vector<128x128xf32>
    }
    %c16_i32_3 = arith.constant 16 : i32
    %6 = arith.truncf %5 : vector<128x128xf32> to vector<128x128xbf16>
    %c0_4 = arith.constant 0 : index
    %c0_5 = arith.constant 0 : index
    %7 = vector.load %arg5[%c0_4, %c0_5] : memref<128x128xbf16, #tpu.memory_space<vmem>>, vector<128x128xbf16>
    tpu.vector_store %arg5[%c0_4, %c0_5], %6 {strides = array<i32>} : memref<128x128xbf16, #tpu.memory_space<vmem>>, vector<128x128xbf16>,
    return
  }
  func.func @transform_0(%arg0: i32, %arg1: i32) -> (i32, i32) {
    %c0_i32 = arith.constant 0 : i32
    return %arg0, %arg1 : i32, i32
  }
  func.func @transform_1(%arg0: i32, %arg1: i32) -> (i32, i32) {
    %c0_i32 = arith.constant 0 : i32
    %c0_i32_0 = arith.constant 0 : i32
    return %c0_i32, %arg1 : i32, i32
  }
  func.func @transform_2(%arg0: i32, %arg1: i32) -> (i32, i32) {
    %c0_i32 = arith.constant 0 : i32
    %c0_i32_0 = arith.constant 0 : i32
    return %c0_i32, %arg1 : i32, i32
  }
  func.func @transform_3(%arg0: i32, %arg1: i32) -> (i32, i32) {
    %c0_i32 = arith.constant 0 : i32
    return %arg0, %arg1 : i32, i32
  }
}

module attributes {stable_mosaic.version = 11 : i64} {
  func.func @_gss_post_kernel(%arg0: i32, %arg1: memref<128x128xbf16, #tpu.memory_space<vmem>>, %arg2: memref<128x256xbf16, #tpu.memory_space<vmem>>, %arg3: memref<128x128xf32, #tpu.memory_space<vmem>>, %arg4: memref<128x256xbf16, #tpu.memory_space<vmem>>, %arg5: memref<256x128xbf16, #tpu.memory_space<vmem>>, %arg6: memref<1x128xf32, #tpu.memory_space<vmem>>, %arg7: memref<128x128xf32, #tpu.memory_space<vmem>>) attributes {dimension_semantics = [#tpu.dimension_semantics<parallel>], iteration_bounds = array<i64: 2>, scalar_prefetch = 0 : i64, scratch_operands = 0 : i64, tpu.core_type = #tpu.core_type<tc>, window_params = [{transform_indices = @transform_0, window_bounds = array<i64: 128, 128>}, {transform_indices = @transform_1, window_bounds = array<i64: 128, 256>}, {transform_indices = @transform_2, window_bounds = array<i64: 128, 128>}, {pipeline_mode = #tpu.pipeline_mode<synchronous>, transform_indices = @transform_3, window_bounds = array<i64: 128, 256>}, {pipeline_mode = #tpu.pipeline_mode<synchronous>, transform_indices = @transform_4, window_bounds = array<i64: 256, 128>}, {pipeline_mode = #tpu.pipeline_mode<synchronous>, transform_indices = @transform_5, window_bounds = array<i64: 1, 128>}, {transform_indices = @transform_6, window_bounds = array<i64: 128, 128>}]} {
    %c0 = arith.constant 0 : index
    %c0_0 = arith.constant 0 : index
    %0 = vector.load %arg1[%c0, %c0_0] : memref<128x128xbf16, #tpu.memory_space<vmem>>, vector<128x128xbf16>
    %c0_1 = arith.constant 0 : index
    %c0_2 = arith.constant 0 : index
    %1 = vector.load %arg4[%c0_1, %c0_2] : memref<128x256xbf16, #tpu.memory_space<vmem>>, vector<128x256xbf16>
    %cst = arith.constant dense<0.000000e+00> : vector<128x256xf32>
    %2 = tpu.matmul %0, %1, %cst {dimension_numbers = #tpu.dot_dimension_numbers<[1], [0], [0], [1], [0, 0, 1, 1], [], []>} : vector<128x128xbf16>, vector<128x256xbf16>, vector<128x256xf32> -> vector<128x256xf32>
    %3 = arith.truncf %2 : vector<128x256xf32> to vector<128x256xbf16>
    %c0_3 = arith.constant 0 : index
    %c0_4 = arith.constant 0 : index
    %4 = vector.load %arg2[%c0_3, %c0_4] : memref<128x256xbf16, #tpu.memory_space<vmem>>, vector<128x256xbf16>
    %5 = arith.mulf %3, %4 : vector<128x256xbf16>
    %c0_5 = arith.constant 0 : index
    %c0_6 = arith.constant 0 : index
    %6 = vector.load %arg5[%c0_5, %c0_6] : memref<256x128xbf16, #tpu.memory_space<vmem>>, vector<256x128xbf16>
    %cst_7 = arith.constant dense<0.000000e+00> : vector<128x128xf32>
    %7 = tpu.matmul %5, %6, %cst_7 {dimension_numbers = #tpu.dot_dimension_numbers<[1], [0], [0], [1], [0, 0, 1, 1], [], []>} : vector<128x256xbf16>, vector<256x128xbf16>, vector<128x128xf32> -> vector<128x128xf32>
    %c0_8 = arith.constant 0 : index
    %c0_9 = arith.constant 0 : index
    %8 = vector.load %arg6[%c0_8, %c0_9] : memref<1x128xf32, #tpu.memory_space<vmem>>, vector<1x128xf32>
    %9 = vector.broadcast %8 : vector<1x128xf32> to vector<128x128xf32>
    %10 = arith.addf %7, %9 : vector<128x128xf32>
    %c0_10 = arith.constant 0 : index
    %c0_11 = arith.constant 0 : index
    %11 = vector.load %arg3[%c0_10, %c0_11] : memref<128x128xf32, #tpu.memory_space<vmem>>, vector<128x128xf32>
    %12 = arith.addf %10, %11 : vector<128x128xf32>
    %c0_12 = arith.constant 0 : index
    %c0_13 = arith.constant 0 : index
    %13 = vector.load %arg7[%c0_12, %c0_13] : memref<128x128xf32, #tpu.memory_space<vmem>>, vector<128x128xf32>
    tpu.vector_store %arg7[%c0_12, %c0_13], %12 {strides = array<i32>} : memref<128x128xf32, #tpu.memory_space<vmem>>, vector<128x128xf32>,
    return
  }
  func.func @transform_0(%arg0: i32) -> (i32, i32) {
    %c0_i32 = arith.constant 0 : i32
    %c0_i32_0 = arith.constant 0 : i32
    return %arg0, %c0_i32 : i32, i32
  }
  func.func @transform_1(%arg0: i32) -> (i32, i32) {
    %c0_i32 = arith.constant 0 : i32
    %c0_i32_0 = arith.constant 0 : i32
    return %arg0, %c0_i32 : i32, i32
  }
  func.func @transform_2(%arg0: i32) -> (i32, i32) {
    %c0_i32 = arith.constant 0 : i32
    %c0_i32_0 = arith.constant 0 : i32
    return %arg0, %c0_i32 : i32, i32
  }
  func.func @transform_3(%arg0: i32) -> (i32, i32) {
    %c0_i32 = arith.constant 0 : i32
    %c0_i32_0 = arith.constant 0 : i32
    %c0_i32_1 = arith.constant 0 : i32
    return %c0_i32, %c0_i32_0 : i32, i32
  }
  func.func @transform_4(%arg0: i32) -> (i32, i32) {
    %c0_i32 = arith.constant 0 : i32
    %c0_i32_0 = arith.constant 0 : i32
    %c0_i32_1 = arith.constant 0 : i32
    return %c0_i32, %c0_i32_0 : i32, i32
  }
  func.func @transform_5(%arg0: i32) -> (i32, i32) {
    %c0_i32 = arith.constant 0 : i32
    %c0_i32_0 = arith.constant 0 : i32
    %c0_i32_1 = arith.constant 0 : i32
    return %c0_i32, %c0_i32_0 : i32, i32
  }
  func.func @transform_6(%arg0: i32) -> (i32, i32) {
    %c0_i32 = arith.constant 0 : i32
    %c0_i32_0 = arith.constant 0 : i32
    return %arg0, %c0_i32 : i32, i32
  }
}

module attributes {stable_mosaic.version = 11 : i64} {
  func.func @_logits_kernel(%arg0: i32, %arg1: i32, %arg2: memref<256x128xf32, #tpu.memory_space<vmem>>, %arg3: memref<128x128xbf16, #tpu.memory_space<vmem>>, %arg4: memref<256x128xf32, #tpu.memory_space<vmem>>) attributes {dimension_semantics = [#tpu.dimension_semantics<parallel>, #tpu.dimension_semantics<parallel>], iteration_bounds = array<i64: 2, 1>, scalar_prefetch = 0 : i64, scratch_operands = 0 : i64, tpu.core_type = #tpu.core_type<tc>, window_params = [{transform_indices = @transform_0, window_bounds = array<i64: 256, 128>}, {transform_indices = @transform_1, window_bounds = array<i64: 128, 128>}, {transform_indices = @transform_2, window_bounds = array<i64: 256, 128>}]} {
    %c0 = arith.constant 0 : index
    %c0_0 = arith.constant 0 : index
    %0 = vector.load %arg2[%c0, %c0_0] : memref<256x128xf32, #tpu.memory_space<vmem>>, vector<256x128xf32>
    %1 = arith.truncf %0 : vector<256x128xf32> to vector<256x128xbf16>
    %c0_1 = arith.constant 0 : index
    %c0_2 = arith.constant 0 : index
    %2 = vector.load %arg3[%c0_1, %c0_2] : memref<128x128xbf16, #tpu.memory_space<vmem>>, vector<128x128xbf16>
    %cst = arith.constant dense<0.000000e+00> : vector<256x128xf32>
    %3 = tpu.matmul %1, %2, %cst {dimension_numbers = #tpu.dot_dimension_numbers<[1], [0], [0], [1], [0, 0, 1, 1], [], []>} : vector<256x128xbf16>, vector<128x128xbf16>, vector<256x128xf32> -> vector<256x128xf32>
    %c0_3 = arith.constant 0 : index
    %c0_4 = arith.constant 0 : index
    %4 = vector.load %arg4[%c0_3, %c0_4] : memref<256x128xf32, #tpu.memory_space<vmem>>, vector<256x128xf32>
    tpu.vector_store %arg4[%c0_3, %c0_4], %3 {strides = array<i32>} : memref<256x128xf32, #tpu.memory_space<vmem>>, vector<256x128xf32>,
    return
  }
  func.func @transform_0(%arg0: i32, %arg1: i32) -> (i32, i32) {
    %c0_i32 = arith.constant 0 : i32
    %c0_i32_0 = arith.constant 0 : i32
    return %arg1, %c0_i32 : i32, i32
  }
  func.func @transform_1(%arg0: i32, %arg1: i32) -> (i32, i32) {
    %c0_i32 = arith.constant 0 : i32
    %c0_i32_0 = arith.constant 0 : i32
    return %c0_i32, %arg0 : i32, i32
  }
  func.func @transform_2(%arg0: i32, %arg1: i32) -> (i32, i32) {
    %c0_i32 = arith.constant 0 : i32
    return %arg1, %arg0 : i32, i32
  }
}

</mosaic_0001>

<llo_original>
// kernel: gated_state_spaces_lm.8
$region0: #{gated_state_spaces_lm.8}
  #allocation0 [shape = 'u32[]', space=smem, size = 0x4, offset = 0x4, fixed_abs, tag = 'smem constant byte address 0x4 - core index']
  #allocation1 [shape = 'u32[144,128]{1,0:T(1,128)}', space=vmem, size = 0x12000, scoped, tag = 'internal scratch']
  %s0 = inlined_call_operand.vmem [shape: f32[256,128], index: 0, kind: input, shape index: {}]
  %s1 = inlined_call_operand.vmem [shape: f32[256,128], index: 1, kind: input, shape index: {}]
  %s2 = inlined_call_operand.vmem [shape: f32[1,128], index: 2, kind: input, shape index: {}]
  %s3 = inlined_call_operand.vmem [shape: bf16[256,128], index: 3, kind: output, shape index: {}]
  %s4 = sld [smem:[#allocation0]]
  $region52: #{gated_state_spaces_lm.8} parent=0
    _
  %s6 = ssub.s32 1, %s4
  %s7 = scalar_select 0, %s6, %s4
  loop: start=0, step=1, limit=4
  $region2: #{gated_state_spaces_lm.8} parent=0 // loop_pre_header
    _
  $region3: #{gated_state_spaces_lm.8} parent=0 // loop_header
    %s9 = sphi 0, %s13
    %p10 = scmp.ge.s32.totalorder %s9, 4
    %s16 = sphi 0, %s28
    %s17 = sphi 0, %s24
    %s18 = sphi 0, %s16
    %s19 = sphi 0, %s17
    %s20 = sphi 0, %s18
    %s21 = sphi 0, %s19
    %s33 = sphi 0, %s35
    %s36 = sphi 0, %s33
    %s37 = sphi 0, %s36
    %s53 = sphi 0, %s37
    %s59 = sphi 0, %s61
    %s62 = sphi 0, %s59
    %s63 = sphi 0, %s62
    %s79 = sphi 0, %s63
    %s85 = sphi 0, %s87
    %s88 = sphi 0, %s85
    %s89 = sphi 0, %s88
    %s105 = sphi 0, %s89
    %s113 = sphi 0, %s115
    %s116 = sphi 0, %s113
    %s117 = sphi 0, %s116
    %s133 = sphi 0, %s117
  $region4: #{gated_state_spaces_lm.8} parent=0 // loop_header_branch
    %12 = sbr.rel (%p10) target = $region8
  $region5: #{gated_state_spaces_lm.8} parent=0 // loop_body
    %s14 = ssub.s32 %s9, 1
    %s15 = ssub.s32 %s9, 2
    %s22 = sadd.s32 1, %s17
    %p23 = scmp.ge.s32.totalorder %s22, 1
    %s24 = scalar_select %p23, 0, %s22
    %s25 = sadd.s32 1, %s16
    %s26 = scalar_select %p23, %s25, %s16
    %p27 = scmp.ge.s32.totalorder %s26, 2
    %s28 = scalar_select %p27, 0, %s26
    %s29 = ssub.s32 %s16, %s28
    %s30 = ssub.s32 %s17, %s24
    %s31 = sor.u32 %s29, %s30
    %p32 = scmp.eq.s32.totalorder %s31, 0
    %s34 = sadd.s32 %s33, 1
    %s35 = scalar_select %p32, %s33, %s34
    %p38 = pneg %p32
    %p39 = scmp.eq.s32.totalorder %s9, 1
    %p40 = por %p38, %p39
    %p41 = scmp.ne.s32.totalorder %s33, %s36
    %p42 = scmp.eq.s32.totalorder %s9, 0
    %p43 = por %p41, %p42
    %p44 = scmp.ne.s32.totalorder %s33, %s36
    %p45 = scmp.eq.s32.totalorder %s14, 1
    %p46 = por %p44, %p45
    %p47 = scmp.ne.s32.totalorder %s36, %s37
    %p48 = scmp.eq.s32.totalorder %s14, 0
    %p49 = por %p47, %p48
    %p50 = scmp.ne.s32.totalorder %s36, %s37
    %p51 = scmp.eq.s32.totalorder %s15, 1
    %p52 = por %p50, %p51
    %p54 = scmp.ne.s32.totalorder %s37, %s53
    %p55 = scmp.eq.s32.totalorder %s15, 0
    %p56 = por %p54, %p55
    %s57 = ssub.s32 %s17, %s24
    %p58 = scmp.eq.s32.totalorder %s57, 0
    %s60 = sadd.s32 %s59, 1
    %s61 = scalar_select %p58, %s59, %s60
    %p64 = pneg %p58
    %p65 = scmp.eq.s32.totalorder %s9, 1
    %p66 = por %p64, %p65
    %p67 = scmp.ne.s32.totalorder %s59, %s62
    %p68 = scmp.eq.s32.totalorder %s9, 0
    %p69 = por %p67, %p68
    %p70 = scmp.ne.s32.totalorder %s59, %s62
    %p71 = scmp.eq.s32.totalorder %s14, 1
    %p72 = por %p70, %p71
    %p73 = scmp.ne.s32.totalorder %s62, %s63
    %p74 = scmp.eq.s32.totalorder %s14, 0
    %p75 = por %p73, %p74
    %p76 = scmp.ne.s32.totalorder %s62, %s63
    %p77 = scmp.eq.s32.totalorder %s15, 1
    %p78 = por %p76, %p77
    %p80 = scmp.ne.s32.totalorder %s63, %s79
    %p81 = scmp.eq.s32.totalorder %s15, 0
    %p82 = por %p80, %p81
    %s83 = ssub.s32 %s17, %s24
    %p84 = scmp.eq.s32.totalorder %s83, 0
    %s86 = sadd.s32 %s85, 1
    %s87 = scalar_select %p84, %s85, %s86
    %p90 = pneg %p84
    %p91 = scmp.eq.s32.totalorder %s9, 1
    %p92 = por %p90, %p91
    %p93 = scmp.ne.s32.totalorder %s85, %s88
    %p94 = scmp.eq.s32.totalorder %s9, 0
    %p95 = por %p93, %p94
    %p96 = scmp.ne.s32.totalorder %s85, %s88
    %p97 = scmp.eq.s32.totalorder %s14, 1
    %p98 = por %p96, %p97
    %p99 = scmp.ne.s32.totalorder %s88, %s89
    %p100 = scmp.eq.s32.totalorder %s14, 0
    %p101 = por %p99, %p100
    %p102 = scmp.ne.s32.totalorder %s88, %s89
    %p103 = scmp.eq.s32.totalorder %s15, 1
    %p104 = por %p102, %p103
    %p106 = scmp.ne.s32.totalorder %s89, %s105
    %p107 = scmp.eq.s32.totalorder %s15, 0
    %p108 = por %p106, %p107
    %s109 = ssub.s32 %s16, %s28
    %s110 = ssub.s32 %s17, %s24
    %s111 = sor.u32 %s109, %s110
    %p112 = scmp.eq.s32.totalorder %s111, 0
    %s114 = sadd.s32 %s113, 1
    %s115 = scalar_select %p112, %s113, %s114
    %p118 = pneg %p112
    %p119 = scmp.eq.s32.totalorder %s9, 1
    %p120 = por %p118, %p119
    %p121 = scmp.ne.s32.totalorder %s113, %s116
    %p122 = scmp.eq.s32.totalorder %s9, 0
    %p123 = por %p121, %p122
    %p124 = scmp.ne.s32.totalorder %s113, %s116
    %p125 = scmp.eq.s32.totalorder %s14, 1
    %p126 = por %p124, %p125
    %p127 = scmp.ne.s32.totalorder %s116, %s117
    %p128 = scmp.eq.s32.totalorder %s14, 0
    %p129 = por %p127, %p128
    %p130 = scmp.ne.s32.totalorder %s116, %s117
    %p131 = scmp.eq.s32.totalorder %s15, 1
    %p132 = por %p130, %p131
    %p134 = scmp.ne.s32.totalorder %s117, %s133
    %p135 = scmp.eq.s32.totalorder %s15, 0
    %p136 = por %p134, %p135
    %p137 = scmp.le.s32.totalorder 1, %s9
    %p138 = scmp.lt.s32.totalorder %s9, 3
    %p139 = pnand %p137, %p138
    %p140 = pneg %p139
    // Predicated region
    $region9: #{gated_state_spaces_lm.8} parent=5 // pred_check
      _
    $region10: #{gated_state_spaces_lm.8} parent=5 // pred_check_branch
      %142 = sbr.rel (%p139) target = $region12
    $region11: #{gated_state_spaces_lm.8} parent=5 // pred_region
      %s143 = ssub.s32 %s9, 1
      // Predicated region
      $region13: #{gated_state_spaces_lm.8} parent=11 // pred_check
        %p144 = pneg %p75
      $region14: #{gated_state_spaces_lm.8} parent=11 // pred_check_branch
        %146 = sbr.rel (%p144) target = $region16
      $region15: #{gated_state_spaces_lm.8} parent=11 // pred_region
        %p147 = scmp.lt.s32.totalorder %s19, 0
        %s148 = scalar_select %p147, %s19, 0
        %s149 = smul.addr %s148, 8
        %s150 = scalar_lea.vmem %s1, %s149
      $region16: #{gated_state_spaces_lm.8} parent=11 // pred_fallthru
        _
      // Predicated region
      $region17: #{gated_state_spaces_lm.8} parent=11 // pred_check
        %p151 = pneg %p101
      $region18: #{gated_state_spaces_lm.8} parent=11 // pred_check_branch
        %153 = sbr.rel (%p151) target = $region20
      $region19: #{gated_state_spaces_lm.8} parent=11 // pred_region
        %p154 = scmp.lt.s32.totalorder %s19, 0
        %s155 = scalar_select %p154, %s19, 0
        %s156 = scalar_lea.vmem %s2, %s155
      $region20: #{gated_state_spaces_lm.8} parent=11 // pred_fallthru
        _
    $region12: #{gated_state_spaces_lm.8} parent=5 // pred_fallthru
      _
    %p157 = scmp.lt.s32.totalorder %s9, 2
    // Predicated region
    $region21: #{gated_state_spaces_lm.8} parent=5 // pred_check
      %p158 = pneg %p157
    $region22: #{gated_state_spaces_lm.8} parent=5 // pred_check_branch
      %160 = sbr.rel (%p158) target = $region24
    $region23: #{gated_state_spaces_lm.8} parent=5 // pred_region
      // Predicated region
      $region25: #{gated_state_spaces_lm.8} parent=23 // pred_check
        %p161 = pneg %p43
      $region26: #{gated_state_spaces_lm.8} parent=23 // pred_check_branch
        %163 = sbr.rel (%p161) target = $region28
      $region27: #{gated_state_spaces_lm.8} parent=23 // pred_region
        %s164 = smul.u32 16, %s16
        %p165 = scmp.lt.s32.totalorder %s164, 31
        %s166 = scalar_select %p165, %s164, 31
        %p167 = scmp.lt.s32.totalorder %s17, 0
        %s168 = scalar_select %p167, %s17, 0
        %s169 = sadd.s32 %s168, %s166
        %s170 = smul.addr %s169, 8
        %s171 = scalar_lea.vmem %s0, %s170
        %s172 = smul.u32 16, %s16
      $region28: #{gated_state_spaces_lm.8} parent=23 // pred_fallthru
        _
    $region24: #{gated_state_spaces_lm.8} parent=5 // pred_fallthru
      _
    %p173 = scmp.le.s32.totalorder 1, %s9
    %p174 = scmp.lt.s32.totalorder %s9, 3
    %p175 = pnand %p173, %p174
    %p176 = pneg %p175
    // Predicated region
    $region29: #{gated_state_spaces_lm.8} parent=5 // pred_check
      _
    $region30: #{gated_state_spaces_lm.8} parent=5 // pred_check_branch
      %178 = sbr.rel (%p175) target = $region32
    $region31: #{gated_state_spaces_lm.8} parent=5 // pred_region
      %s179 = ssub.s32 %s9, 1
      %s180 = smul.u32 16, %s18
      %p181 = scmp.lt.s32.totalorder %s180, 31
      %s182 = scalar_select %p181, %s180, 31
      %p183 = scmp.lt.s32.totalorder %s19, 0
      %s184 = scalar_select %p183, %s19, 0
      %s185 = sadd.s32 %s184, %s182
      %s186 = smul.addr %s185, 8
      %s187 = scalar_lea.vmem %s0, %s186
      %p188 = pneg %p49
      %p189 = pneg %p46
      %p190 = scmp.lt.s32.totalorder %s19, 0
      %s191 = scalar_select %p190, %s19, 0
      %s192 = smul.addr %s191, 8
      %s193 = scalar_lea.vmem %s1, %s192
      %p194 = pneg %p75
      %p195 = pneg %p72
      %p196 = scmp.lt.s32.totalorder %s19, 0
      %s197 = scalar_select %p196, %s19, 0
      %s198 = scalar_lea.vmem %s2, %s197
      %p199 = pneg %p101
      %p200 = pneg %p98
      %p201 = pneg %p129
      %p202 = pneg %p126
      %s203 = smul.u32 16, %s18
      %p204 = scmp.lt.s32.totalorder %s203, 31
      %s205 = scalar_select %p204, %s203, 31
      %p206 = scmp.lt.s32.totalorder %s19, 0
      %s207 = scalar_select %p206, %s19, 0
      %s208 = sadd.s32 %s207, %s205
      %s209 = smul.addr %s208, 4
      %s210 = scalar_lea.vmem %s3, %s209
      %s211 = smul.u32 16, %s18
      %p212 = scmp.lt.s32.totalorder %s211, 31
      %s213 = scalar_select %p212, %s211, 31
      %p214 = scmp.lt.s32.totalorder %s19, 0
      %s215 = scalar_select %p214, %s19, 0
      %s216 = sadd.s32 %s215, %s213
      %s217 = smul.addr %s216, 8
      %s218 = scalar_lea.vmem %s0, %s217
      %s219 = smul.u32 16, %s18
      %p220 = scmp.lt.s32.totalorder %s19, 0
      %s221 = scalar_select %p220, %s19, 0
      %s222 = smul.addr %s221, 8
      %s223 = scalar_lea.vmem %s1, %s222
      %p224 = scmp.lt.s32.totalorder %s19, 0
      %s225 = scalar_select %p224, %s19, 0
      %s226 = scalar_lea.vmem %s2, %s225
      %s227 = smul.u32 16, %s18
      %p228 = scmp.lt.s32.totalorder %s227, 31
      %s229 = scalar_select %p228, %s227, 31
      %p230 = scmp.lt.s32.totalorder %s19, 0
      %s231 = scalar_select %p230, %s19, 0
      %s232 = sadd.s32 %s231, %s229
      %s233 = smul.addr %s232, 4
      %s234 = scalar_lea.vmem %s3, %s233
      %s235 = smul.u32 16, %s18
      %v236 = vld [vmem:[%s218] sm:$0xff]
      %v237 = vld [vmem:[%s218 + $0x8] sm:$0xff]
      %v238 = vld [vmem:[%s218 + $0x10] sm:$0xff]
      %v239 = vld [vmem:[%s218 + $0x18] sm:$0xff]
      %v240 = vld [vmem:[%s218 + $0x20] sm:$0xff]
      %v241 = vld [vmem:[%s218 + $0x28] sm:$0xff]
      %v242 = vld [vmem:[%s218 + $0x30] sm:$0xff]
      %v243 = vld [vmem:[%s218 + $0x38] sm:$0xff]
      %v244 = vld [vmem:[%s218 + $0x40] sm:$0xff]
      %v245 = vld [vmem:[%s218 + $0x48] sm:$0xff]
      %v246 = vld [vmem:[%s218 + $0x50] sm:$0xff]
      %v247 = vld [vmem:[%s218 + $0x58] sm:$0xff]
      %v248 = vld [vmem:[%s218 + $0x60] sm:$0xff]
      %v249 = vld [vmem:[%s218 + $0x68] sm:$0xff]
      %v250 = vld [vmem:[%s218 + $0x70] sm:$0xff]
      %v251 = vld [vmem:[%s218 + $0x78] sm:$0xff]
      %v252 = vld [vmem:[%s226] sm:$0x1]
      %v254 = vlaneseq
      %v255 = vshrl.u32 %v254, 7
      %v256 = vsub.s32 0, %v255
      %v257 = vrot.slane %v252, %v256
      %v259 = vmul.f32 %v236, %v257
      %v260 = vmul.f32 %v237, %v257
      %v261 = vmul.f32 %v238, %v257
      %v262 = vmul.f32 %v239, %v257
      %v263 = vmul.f32 %v240, %v257
      %v264 = vmul.f32 %v241, %v257
      %v265 = vmul.f32 %v242, %v257
      %v266 = vmul.f32 %v243, %v257
      %v267 = vmul.f32 %v244, %v257
      %v268 = vmul.f32 %v245, %v257
      %v269 = vmul.f32 %v246, %v257
      %v270 = vmul.f32 %v247, %v257
      %v271 = vmul.f32 %v248, %v257
      %v272 = vmul.f32 %v249, %v257
      %v273 = vmul.f32 %v250, %v257
      %v274 = vmul.f32 %v251, %v257
      loop: start=0, step=1, limit=16
      $region33: #{gated_state_spaces_lm.8} parent=31 // loop_pre_header
        _
      $region34: #{gated_state_spaces_lm.8} parent=31 // loop_header
        %s276 = sphi 0, %s280
        %p277 = scmp.ge.s32.totalorder %s276, 16
        %v281 = vphi %v259, %v737
        %v282 = vphi %v260, %v738
        %v283 = vphi %v261, %v739
        %v284 = vphi %v262, %v740
        %v285 = vphi %v263, %v741
        %v286 = vphi %v264, %v742
        %v287 = vphi %v265, %v743
        %v288 = vphi %v266, %v744
        %v289 = vphi %v267, %v745
        %v290 = vphi %v268, %v746
        %v291 = vphi %v269, %v747
        %v292 = vphi %v270, %v748
        %v293 = vphi %v271, %v749
        %v294 = vphi %v272, %v750
        %v295 = vphi %v273, %v751
        %v296 = vphi %v274, %v752
      $region35: #{gated_state_spaces_lm.8} parent=31 // loop_header_branch
        %279 = sbr.rel (%p277) target = $region39
      $region36: #{gated_state_spaces_lm.8} parent=31 // loop_body
        %s297 = smul.u32 %s276, 8
        %s298 = scalar_lea.vmem %s218, %s297
        %v299 = vld [vmem:[%s298] sm:$0x1]
        %s300 = ssub.s32 128, %s297
        %s301 = scalar_lea.vmem %s223, %s300
        %v302 = vld [vmem:[%s301] sm:$0xff]
        %v303 = vld [vmem:[%s301 + $0x8] sm:$0xff]
        %v304 = vld [vmem:[%s301 + $0x10] sm:$0xff]
        %v305 = vld [vmem:[%s301 + $0x18] sm:$0xff]
        %v306 = vld [vmem:[%s301 + $0x20] sm:$0xff]
        %v307 = vld [vmem:[%s301 + $0x28] sm:$0xff]
        %v308 = vld [vmem:[%s301 + $0x30] sm:$0xff]
        %v309 = vld [vmem:[%s301 + $0x38] sm:$0xff]
        %v310 = vld [vmem:[%s301 + $0x40] sm:$0xff]
        %v311 = vld [vmem:[%s301 + $0x48] sm:$0xff]
        %v312 = vld [vmem:[%s301 + $0x50] sm:$0xff]
        %v313 = vld [vmem:[%s301 + $0x58] sm:$0xff]
        %v314 = vld [vmem:[%s301 + $0x60] sm:$0xff]
        %v315 = vld [vmem:[%s301 + $0x68] sm:$0xff]
        %v316 = vld [vmem:[%s301 + $0x70] sm:$0xff]
        %v317 = vld [vmem:[%s301 + $0x78] sm:$0xff]
        %v318 = vlaneseq
        %v319 = vshrl.u32 %v318, 7
        %v320 = vsub.s32 0, %v319
        %v321 = vrot.slane %v299, %v320
        %v322 = vmul.f32 %v302, %v321
        %v323 = vmul.f32 %v303, %v321
        %v324 = vmul.f32 %v304, %v321
        %v325 = vmul.f32 %v305, %v321
        %v326 = vmul.f32 %v306, %v321
        %v327 = vmul.f32 %v307, %v321
        %v328 = vmul.f32 %v308, %v321
        %v329 = vmul.f32 %v309, %v321
        %v330 = vmul.f32 %v310, %v321
        %v331 = vmul.f32 %v311, %v321
        %v332 = vmul.f32 %v312, %v321
        %v333 = vmul.f32 %v313, %v321
        %v334 = vmul.f32 %v314, %v321
        %v335 = vmul.f32 %v315, %v321
        %v336 = vmul.f32 %v316, %v321
        %v337 = vmul.f32 %v317, %v321
        %v338 = vadd.f32 %v281, %v322
        %v339 = vadd.f32 %v282, %v323
        %v340 = vadd.f32 %v283, %v324
        %v341 = vadd.f32 %v284, %v325
        %v342 = vadd.f32 %v285, %v326
        %v343 = vadd.f32 %v286, %v327
        %v344 = vadd.f32 %v287, %v328
        %v345 = vadd.f32 %v288, %v329
        %v346 = vadd.f32 %v289, %v330
        %v347 = vadd.f32 %v290, %v331
        %v348 = vadd.f32 %v291, %v332
        %v349 = vadd.f32 %v292, %v333
        %v350 = vadd.f32 %v293, %v334
        %v351 = vadd.f32 %v294, %v335
        %v352 = vadd.f32 %v295, %v336
        %v353 = vadd.f32 %v296, %v337
        %s354 = sadd.s32 %s297, 1
        %s355 = scalar_lea.vmem %s218, %s354
        %v356 = vld [vmem:[%s355] sm:$0x1]
        %s357 = ssub.s32 127, %s297
        %s358 = scalar_lea.vmem %s223, %s357
        %v359 = vld [vmem:[%s358] sm:$0xff]
        %v360 = vld [vmem:[%s358 + $0x8] sm:$0xff]
        %v361 = vld [vmem:[%s358 + $0x10] sm:$0xff]
        %v362 = vld [vmem:[%s358 + $0x18] sm:$0xff]
        %v363 = vld [vmem:[%s358 + $0x20] sm:$0xff]
        %v364 = vld [vmem:[%s358 + $0x28] sm:$0xff]
        %v365 = vld [vmem:[%s358 + $0x30] sm:$0xff]
        %v366 = vld [vmem:[%s358 + $0x38] sm:$0xff]
        %v367 = vld [vmem:[%s358 + $0x40] sm:$0xff]
        %v368 = vld [vmem:[%s358 + $0x48] sm:$0xff]
        %v369 = vld [vmem:[%s358 + $0x50] sm:$0xff]
        %v370 = vld [vmem:[%s358 + $0x58] sm:$0xff]
        %v371 = vld [vmem:[%s358 + $0x60] sm:$0xff]
        %v372 = vld [vmem:[%s358 + $0x68] sm:$0xff]
        %v373 = vld [vmem:[%s358 + $0x70] sm:$0xff]
        %v374 = vld [vmem:[%s358 + $0x78] sm:$0xff]
        %v375 = vlaneseq
        %v376 = vshrl.u32 %v375, 7
        %v377 = vsub.s32 0, %v376
        %v378 = vrot.slane %v356, %v377
        %v379 = vmul.f32 %v359, %v378
        %v380 = vmul.f32 %v360, %v378
        %v381 = vmul.f32 %v361, %v378
        %v382 = vmul.f32 %v362, %v378
        %v383 = vmul.f32 %v363, %v378
        %v384 = vmul.f32 %v364, %v378
        %v385 = vmul.f32 %v365, %v378
        %v386 = vmul.f32 %v366, %v378
        %v387 = vmul.f32 %v367, %v378
        %v388 = vmul.f32 %v368, %v378
        %v389 = vmul.f32 %v369, %v378
        %v390 = vmul.f32 %v370, %v378
        %v391 = vmul.f32 %v371, %v378
        %v392 = vmul.f32 %v372, %v378
        %v393 = vmul.f32 %v373, %v378
        %v394 = vmul.f32 %v374, %v378
        %v395 = vadd.f32 %v338, %v379
        %v396 = vadd.f32 %v339, %v380
        %v397 = vadd.f32 %v340, %v381
        %v398 = vadd.f32 %v341, %v382
        %v399 = vadd.f32 %v342, %v383
        %v400 = vadd.f32 %v343, %v384
        %v401 = vadd.f32 %v344, %v385
        %v402 = vadd.f32 %v345, %v386
        %v403 = vadd.f32 %v346, %v387
        %v404 = vadd.f32 %v347, %v388
        %v405 = vadd.f32 %v348, %v389
        %v406 = vadd.f32 %v349, %v390
        %v407 = vadd.f32 %v350, %v391
        %v408 = vadd.f32 %v351, %v392
        %v409 = vadd.f32 %v352, %v393
        %v410 = vadd.f32 %v353, %v394
        %s411 = sadd.s32 %s297, 2
        %s412 = scalar_lea.vmem %s218, %s411
        %v413 = vld [vmem:[%s412] sm:$0x1]
        %s414 = ssub.s32 126, %s297
        %s415 = scalar_lea.vmem %s223, %s414
        %v416 = vld [vmem:[%s415] sm:$0xff]
        %v417 = vld [vmem:[%s415 + $0x8] sm:$0xff]
        %v418 = vld [vmem:[%s415 + $0x10] sm:$0xff]
        %v419 = vld [vmem:[%s415 + $0x18] sm:$0xff]
        %v420 = vld [vmem:[%s415 + $0x20] sm:$0xff]
        %v421 = vld [vmem:[%s415 + $0x28] sm:$0xff]
        %v422 = vld [vmem:[%s415 + $0x30] sm:$0xff]
        %v423 = vld [vmem:[%s415 + $0x38] sm:$0xff]
        %v424 = vld [vmem:[%s415 + $0x40] sm:$0xff]
        %v425 = vld [vmem:[%s415 + $0x48] sm:$0xff]
        %v426 = vld [vmem:[%s415 + $0x50] sm:$0xff]
        %v427 = vld [vmem:[%s415 + $0x58] sm:$0xff]
        %v428 = vld [vmem:[%s415 + $0x60] sm:$0xff]
        %v429 = vld [vmem:[%s415 + $0x68] sm:$0xff]
        %v430 = vld [vmem:[%s415 + $0x70] sm:$0xff]
        %v431 = vld [vmem:[%s415 + $0x78] sm:$0xff]
        %v432 = vlaneseq
        %v433 = vshrl.u32 %v432, 7
        %v434 = vsub.s32 0, %v433
        %v435 = vrot.slane %v413, %v434
        %v436 = vmul.f32 %v416, %v435
        %v437 = vmul.f32 %v417, %v435
        %v438 = vmul.f32 %v418, %v435
        %v439 = vmul.f32 %v419, %v435
        %v440 = vmul.f32 %v420, %v435
        %v441 = vmul.f32 %v421, %v435
        %v442 = vmul.f32 %v422, %v435
        %v443 = vmul.f32 %v423, %v435
        %v444 = vmul.f32 %v424, %v435
        %v445 = vmul.f32 %v425, %v435
        %v446 = vmul.f32 %v426, %v435
        %v447 = vmul.f32 %v427, %v435
        %v448 = vmul.f32 %v428, %v435
        %v449 = vmul.f32 %v429, %v435
        %v450 = vmul.f32 %v430, %v435
        %v451 = vmul.f32 %v431, %v435
        %v452 = vadd.f32 %v395, %v436
        %v453 = vadd.f32 %v396, %v437
        %v454 = vadd.f32 %v397, %v438
        %v455 = vadd.f32 %v398, %v439
        %v456 = vadd.f32 %v399, %v440
        %v457 = vadd.f32 %v400, %v441
        %v458 = vadd.f32 %v401, %v442
        %v459 = vadd.f32 %v402, %v443
        %v460 = vadd.f32 %v403, %v444
        %v461 = vadd.f32 %v404, %v445
        %v462 = vadd.f32 %v405, %v446
        %v463 = vadd.f32 %v406, %v447
        %v464 = vadd.f32 %v407, %v448
        %v465 = vadd.f32 %v408, %v449
        %v466 = vadd.f32 %v409, %v450
        %v467 = vadd.f32 %v410, %v451
        %s468 = sadd.s32 %s297, 3
        %s469 = scalar_lea.vmem %s218, %s468
        %v470 = vld [vmem:[%s469] sm:$0x1]
        %s471 = ssub.s32 125, %s297
        %s472 = scalar_lea.vmem %s223, %s471
        %v473 = vld [vmem:[%s472] sm:$0xff]
        %v474 = vld [vmem:[%s472 + $0x8] sm:$0xff]
        %v475 = vld [vmem:[%s472 + $0x10] sm:$0xff]
        %v476 = vld [vmem:[%s472 + $0x18] sm:$0xff]
        %v477 = vld [vmem:[%s472 + $0x20] sm:$0xff]
        %v478 = vld [vmem:[%s472 + $0x28] sm:$0xff]
        %v479 = vld [vmem:[%s472 + $0x30] sm:$0xff]
        %v480 = vld [vmem:[%s472 + $0x38] sm:$0xff]
        %v481 = vld [vmem:[%s472 + $0x40] sm:$0xff]
        %v482 = vld [vmem:[%s472 + $0x48] sm:$0xff]
        %v483 = vld [vmem:[%s472 + $0x50] sm:$0xff]
        %v484 = vld [vmem:[%s472 + $0x58] sm:$0xff]
        %v485 = vld [vmem:[%s472 + $0x60] sm:$0xff]
        %v486 = vld [vmem:[%s472 + $0x68] sm:$0xff]
        %v487 = vld [vmem:[%s472 + $0x70] sm:$0xff]
        %v488 = vld [vmem:[%s472 + $0x78] sm:$0xff]
        %v489 = vlaneseq
        %v490 = vshrl.u32 %v489, 7
        %v491 = vsub.s32 0, %v490
        %v492 = vrot.slane %v470, %v491
        %v493 = vmul.f32 %v473, %v492
        %v494 = vmul.f32 %v474, %v492
        %v495 = vmul.f32 %v475, %v492
        %v496 = vmul.f32 %v476, %v492
        %v497 = vmul.f32 %v477, %v492
        %v498 = vmul.f32 %v478, %v492
        %v499 = vmul.f32 %v479, %v492
        %v500 = vmul.f32 %v480, %v492
        %v501 = vmul.f32 %v481, %v492
        %v502 = vmul.f32 %v482, %v492
        %v503 = vmul.f32 %v483, %v492
        %v504 = vmul.f32 %v484, %v492
        %v505 = vmul.f32 %v485, %v492
        %v506 = vmul.f32 %v486, %v492
        %v507 = vmul.f32 %v487, %v492
        %v508 = vmul.f32 %v488, %v492
        %v509 = vadd.f32 %v452, %v493
        %v510 = vadd.f32 %v453, %v494
        %v511 = vadd.f32 %v454, %v495
        %v512 = vadd.f32 %v455, %v496
        %v513 = vadd.f32 %v456, %v497
        %v514 = vadd.f32 %v457, %v498
        %v515 = vadd.f32 %v458, %v499
        %v516 = vadd.f32 %v459, %v500
        %v517 = vadd.f32 %v460, %v501
        %v518 = vadd.f32 %v461, %v502
        %v519 = vadd.f32 %v462, %v503
        %v520 = vadd.f32 %v463, %v504
        %v521 = vadd.f32 %v464, %v505
        %v522 = vadd.f32 %v465, %v506
        %v523 = vadd.f32 %v466, %v507
        %v524 = vadd.f32 %v467, %v508
        %s525 = sadd.s32 %s297, 4
        %s526 = scalar_lea.vmem %s218, %s525
        %v527 = vld [vmem:[%s526] sm:$0x1]
        %s528 = ssub.s32 124, %s297
        %s529 = scalar_lea.vmem %s223, %s528
        %v530 = vld [vmem:[%s529] sm:$0xff]
        %v531 = vld [vmem:[%s529 + $0x8] sm:$0xff]
        %v532 = vld [vmem:[%s529 + $0x10] sm:$0xff]
        %v533 = vld [vmem:[%s529 + $0x18] sm:$0xff]
        %v534 = vld [vmem:[%s529 + $0x20] sm:$0xff]
        %v535 = vld [vmem:[%s529 + $0x28] sm:$0xff]
        %v536 = vld [vmem:[%s529 + $0x30] sm:$0xff]
        %v537 = vld [vmem:[%s529 + $0x38] sm:$0xff]
        %v538 = vld [vmem:[%s529 + $0x40] sm:$0xff]
        %v539 = vld [vmem:[%s529 + $0x48] sm:$0xff]
        %v540 = vld [vmem:[%s529 + $0x50] sm:$0xff]
        %v541 = vld [vmem:[%s529 + $0x58] sm:$0xff]
        %v542 = vld [vmem:[%s529 + $0x60] sm:$0xff]
        %v543 = vld [vmem:[%s529 + $0x68] sm:$0xff]
        %v544 = vld [vmem:[%s529 + $0x70] sm:$0xff]
        %v545 = vld [vmem:[%s529 + $0x78] sm:$0xff]
        %v546 = vlaneseq
        %v547 = vshrl.u32 %v546, 7
        %v548 = vsub.s32 0, %v547
        %v549 = vrot.slane %v527, %v548
        %v550 = vmul.f32 %v530, %v549
        %v551 = vmul.f32 %v531, %v549
        %v552 = vmul.f32 %v532, %v549
        %v553 = vmul.f32 %v533, %v549
        %v554 = vmul.f32 %v534, %v549
        %v555 = vmul.f32 %v535, %v549
        %v556 = vmul.f32 %v536, %v549
        %v557 = vmul.f32 %v537, %v549
        %v558 = vmul.f32 %v538, %v549
        %v559 = vmul.f32 %v539, %v549
        %v560 = vmul.f32 %v540, %v549
        %v561 = vmul.f32 %v541, %v549
        %v562 = vmul.f32 %v542, %v549
        %v563 = vmul.f32 %v543, %v549
        %v564 = vmul.f32 %v544, %v549
        %v565 = vmul.f32 %v545, %v549
        %v566 = vadd.f32 %v509, %v550
        %v567 = vadd.f32 %v510, %v551
        %v568 = vadd.f32 %v511, %v552
        %v569 = vadd.f32 %v512, %v553
        %v570 = vadd.f32 %v513, %v554
        %v571 = vadd.f32 %v514, %v555
        %v572 = vadd.f32 %v515, %v556
        %v573 = vadd.f32 %v516, %v557
        %v574 = vadd.f32 %v517, %v558
        %v575 = vadd.f32 %v518, %v559
        %v576 = vadd.f32 %v519, %v560
        %v577 = vadd.f32 %v520, %v561
        %v578 = vadd.f32 %v521, %v562
        %v579 = vadd.f32 %v522, %v563
        %v580 = vadd.f32 %v523, %v564
        %v581 = vadd.f32 %v524, %v565
        %s582 = sadd.s32 %s297, 5
        %s583 = scalar_lea.vmem %s218, %s582
        %v584 = vld [vmem:[%s583] sm:$0x1]
        %s585 = ssub.s32 123, %s297
        %s586 = scalar_lea.vmem %s223, %s585
        %v587 = vld [vmem:[%s586] sm:$0xff]
        %v588 = vld [vmem:[%s586 + $0x8] sm:$0xff]
        %v589 = vld [vmem:[%s586 + $0x10] sm:$0xff]
        %v590 = vld [vmem:[%s586 + $0x18] sm:$0xff]
        %v591 = vld [vmem:[%s586 + $0x20] sm:$0xff]
        %v592 = vld [vmem:[%s586 + $0x28] sm:$0xff]
        %v593 = vld [vmem:[%s586 + $0x30] sm:$0xff]
        %v594 = vld [vmem:[%s586 + $0x38] sm:$0xff]
        %v595 = vld [vmem:[%s586 + $0x40] sm:$0xff]
        %v596 = vld [vmem:[%s586 + $0x48] sm:$0xff]
        %v597 = vld [vmem:[%s586 + $0x50] sm:$0xff]
        %v598 = vld [vmem:[%s586 + $0x58] sm:$0xff]
        %v599 = vld [vmem:[%s586 + $0x60] sm:$0xff]
        %v600 = vld [vmem:[%s586 + $0x68] sm:$0xff]
        %v601 = vld [vmem:[%s586 + $0x70] sm:$0xff]
        %v602 = vld [vmem:[%s586 + $0x78] sm:$0xff]
        %v603 = vlaneseq
        %v604 = vshrl.u32 %v603, 7
        %v605 = vsub.s32 0, %v604
        %v606 = vrot.slane %v584, %v605
        %v607 = vmul.f32 %v587, %v606
        %v608 = vmul.f32 %v588, %v606
        %v609 = vmul.f32 %v589, %v606
        %v610 = vmul.f32 %v590, %v606
        %v611 = vmul.f32 %v591, %v606
        %v612 = vmul.f32 %v592, %v606
        %v613 = vmul.f32 %v593, %v606
        %v614 = vmul.f32 %v594, %v606
        %v615 = vmul.f32 %v595, %v606
        %v616 = vmul.f32 %v596, %v606
        %v617 = vmul.f32 %v597, %v606
        %v618 = vmul.f32 %v598, %v606
        %v619 = vmul.f32 %v599, %v606
        %v620 = vmul.f32 %v600, %v606
        %v621 = vmul.f32 %v601, %v606
        %v622 = vmul.f32 %v602, %v606
        %v623 = vadd.f32 %v566, %v607
        %v624 = vadd.f32 %v567, %v608
        %v625 = vadd.f32 %v568, %v609
        %v626 = vadd.f32 %v569, %v610
        %v627 = vadd.f32 %v570, %v611
        %v628 = vadd.f32 %v571, %v612
        %v629 = vadd.f32 %v572, %v613
        %v630 = vadd.f32 %v573, %v614
        %v631 = vadd.f32 %v574, %v615
        %v632 = vadd.f32 %v575, %v616
        %v633 = vadd.f32 %v576, %v617
        %v634 = vadd.f32 %v577, %v618
        %v635 = vadd.f32 %v578, %v619
        %v636 = vadd.f32 %v579, %v620
        %v637 = vadd.f32 %v580, %v621
        %v638 = vadd.f32 %v581, %v622
        %s639 = sadd.s32 %s297, 6
        %s640 = scalar_lea.vmem %s218, %s639
        %v641 = vld [vmem:[%s640] sm:$0x1]
        %s642 = ssub.s32 122, %s297
        %s643 = scalar_lea.vmem %s223, %s642
        %v644 = vld [vmem:[%s643] sm:$0xff]
        %v645 = vld [vmem:[%s643 + $0x8] sm:$0xff]
        %v646 = vld [vmem:[%s643 + $0x10] sm:$0xff]
        %v647 = vld [vmem:[%s643 + $0x18] sm:$0xff]
        %v648 = vld [vmem:[%s643 + $0x20] sm:$0xff]
        %v649 = vld [vmem:[%s643 + $0x28] sm:$0xff]
        %v650 = vld [vmem:[%s643 + $0x30] sm:$0xff]
        %v651 = vld [vmem:[%s643 + $0x38] sm:$0xff]
        %v652 = vld [vmem:[%s643 + $0x40] sm:$0xff]
        %v653 = vld [vmem:[%s643 + $0x48] sm:$0xff]
        %v654 = vld [vmem:[%s643 + $0x50] sm:$0xff]
        %v655 = vld [vmem:[%s643 + $0x58] sm:$0xff]
        %v656 = vld [vmem:[%s643 + $0x60] sm:$0xff]
        %v657 = vld [vmem:[%s643 + $0x68] sm:$0xff]
        %v658 = vld [vmem:[%s643 + $0x70] sm:$0xff]
        %v659 = vld [vmem:[%s643 + $0x78] sm:$0xff]
        %v660 = vlaneseq
        %v661 = vshrl.u32 %v660, 7
        %v662 = vsub.s32 0, %v661
        %v663 = vrot.slane %v641, %v662
        %v664 = vmul.f32 %v644, %v663
        %v665 = vmul.f32 %v645, %v663
        %v666 = vmul.f32 %v646, %v663
        %v667 = vmul.f32 %v647, %v663
        %v668 = vmul.f32 %v648, %v663
        %v669 = vmul.f32 %v649, %v663
        %v670 = vmul.f32 %v650, %v663
        %v671 = vmul.f32 %v651, %v663
        %v672 = vmul.f32 %v652, %v663
        %v673 = vmul.f32 %v653, %v663
        %v674 = vmul.f32 %v654, %v663
        %v675 = vmul.f32 %v655, %v663
        %v676 = vmul.f32 %v656, %v663
        %v677 = vmul.f32 %v657, %v663
        %v678 = vmul.f32 %v658, %v663
        %v679 = vmul.f32 %v659, %v663
        %v680 = vadd.f32 %v623, %v664
        %v681 = vadd.f32 %v624, %v665
        %v682 = vadd.f32 %v625, %v666
        %v683 = vadd.f32 %v626, %v667
        %v684 = vadd.f32 %v627, %v668
        %v685 = vadd.f32 %v628, %v669
        %v686 = vadd.f32 %v629, %v670
        %v687 = vadd.f32 %v630, %v671
        %v688 = vadd.f32 %v631, %v672
        %v689 = vadd.f32 %v632, %v673
        %v690 = vadd.f32 %v633, %v674
        %v691 = vadd.f32 %v634, %v675
        %v692 = vadd.f32 %v635, %v676
        %v693 = vadd.f32 %v636, %v677
        %v694 = vadd.f32 %v637, %v678
        %v695 = vadd.f32 %v638, %v679
        %s696 = sadd.s32 %s297, 7
        %s697 = scalar_lea.vmem %s218, %s696
        %v698 = vld [vmem:[%s697] sm:$0x1]
        %s699 = ssub.s32 121, %s297
        %s700 = scalar_lea.vmem %s223, %s699
        %v701 = vld [vmem:[%s700] sm:$0xff]
        %v702 = vld [vmem:[%s700 + $0x8] sm:$0xff]
        %v703 = vld [vmem:[%s700 + $0x10] sm:$0xff]
        %v704 = vld [vmem:[%s700 + $0x18] sm:$0xff]
        %v705 = vld [vmem:[%s700 + $0x20] sm:$0xff]
        %v706 = vld [vmem:[%s700 + $0x28] sm:$0xff]
        %v707 = vld [vmem:[%s700 + $0x30] sm:$0xff]
        %v708 = vld [vmem:[%s700 + $0x38] sm:$0xff]
        %v709 = vld [vmem:[%s700 + $0x40] sm:$0xff]
        %v710 = vld [vmem:[%s700 + $0x48] sm:$0xff]
        %v711 = vld [vmem:[%s700 + $0x50] sm:$0xff]
        %v712 = vld [vmem:[%s700 + $0x58] sm:$0xff]
        %v713 = vld [vmem:[%s700 + $0x60] sm:$0xff]
        %v714 = vld [vmem:[%s700 + $0x68] sm:$0xff]
        %v715 = vld [vmem:[%s700 + $0x70] sm:$0xff]
        %v716 = vld [vmem:[%s700 + $0x78] sm:$0xff]
        %v717 = vlaneseq
        %v718 = vshrl.u32 %v717, 7
        %v719 = vsub.s32 0, %v718
        %v720 = vrot.slane %v698, %v719
        %v721 = vmul.f32 %v701, %v720
        %v722 = vmul.f32 %v702, %v720
        %v723 = vmul.f32 %v703, %v720
        %v724 = vmul.f32 %v704, %v720
        %v725 = vmul.f32 %v705, %v720
        %v726 = vmul.f32 %v706, %v720
        %v727 = vmul.f32 %v707, %v720
        %v728 = vmul.f32 %v708, %v720
        %v729 = vmul.f32 %v709, %v720
        %v730 = vmul.f32 %v710, %v720
        %v731 = vmul.f32 %v711, %v720
        %v732 = vmul.f32 %v712, %v720
        %v733 = vmul.f32 %v713, %v720
        %v734 = vmul.f32 %v714, %v720
        %v735 = vmul.f32 %v715, %v720
        %v736 = vmul.f32 %v716, %v720
        %v737 = vadd.f32 %v680, %v721
        %v738 = vadd.f32 %v681, %v722
        %v739 = vadd.f32 %v682, %v723
        %v740 = vadd.f32 %v683, %v724
        %v741 = vadd.f32 %v684, %v725
        %v742 = vadd.f32 %v685, %v726
        %v743 = vadd.f32 %v686, %v727
        %v744 = vadd.f32 %v687, %v728
        %v745 = vadd.f32 %v688, %v729
        %v746 = vadd.f32 %v689, %v730
        %v747 = vadd.f32 %v690, %v731
        %v748 = vadd.f32 %v691, %v732
        %v749 = vadd.f32 %v692, %v733
        %v750 = vadd.f32 %v693, %v734
        %v751 = vadd.f32 %v694, %v735
        %v752 = vadd.f32 %v695, %v736
      $region37: #{gated_state_spaces_lm.8} parent=31 // loop_footer
        %s280 = sadd.s32 1, %s276
      $region38: #{gated_state_spaces_lm.8} parent=31 // loop_footer_branch
        %275 = sbr.rel target = $region34
      $region39: #{gated_state_spaces_lm.8} parent=31 // loop_exit
        _
      %v753 = vpack.c.bf16 %v282, %v281
      %v754 = vpack.c.bf16 %v284, %v283
      %v755 = vpack.c.bf16 %v286, %v285
      %v756 = vpack.c.bf16 %v288, %v287
      %v757 = vpack.c.bf16 %v290, %v289
      %v758 = vpack.c.bf16 %v292, %v291
      %v759 = vpack.c.bf16 %v294, %v293
      %v760 = vpack.c.bf16 %v296, %v295
      %v769 = vunpack.c.l.b16 %v753
      %v770 = vunpack.c.h.b16 %v753
      %v771 = vunpack.c.l.b16 %v754
      %v772 = vunpack.c.h.b16 %v754
      %v773 = vunpack.c.l.b16 %v755
      %v774 = vunpack.c.h.b16 %v755
      %v775 = vunpack.c.l.b16 %v756
      %v776 = vunpack.c.h.b16 %v756
      %v777 = vunpack.c.l.b16 %v757
      %v778 = vunpack.c.h.b16 %v757
      %v779 = vunpack.c.l.b16 %v758
      %v780 = vunpack.c.h.b16 %v758
      %v781 = vunpack.c.l.b16 %v759
      %v782 = vunpack.c.h.b16 %v759
      %v783 = vunpack.c.l.b16 %v760
      %v784 = vunpack.c.h.b16 %v760
      %v785 = vpack.c.b16 %v769, %v769
      %v786 = vpack.c.b16 %v770, %v770
      %v787 = vpack.c.b16 %v771, %v771
      %v788 = vpack.c.b16 %v772, %v772
      %v789 = vpack.c.b16 %v773, %v773
      %v790 = vpack.c.b16 %v774, %v774
      %v791 = vpack.c.b16 %v775, %v775
      %v792 = vpack.c.b16 %v776, %v776
      %v793 = vpack.c.b16 %v777, %v777
      %v794 = vpack.c.b16 %v778, %v778
      %v795 = vpack.c.b16 %v779, %v779
      %v796 = vpack.c.b16 %v780, %v780
      %v797 = vpack.c.b16 %v781, %v781
      %v798 = vpack.c.b16 %v782, %v782
      %v799 = vpack.c.b16 %v783, %v783
      %v800 = vpack.c.b16 %v784, %v784
      %817 = vst [vmem:[%s234] sm:$0xf] %v785
      %818 = vst [vmem:[%s234 + $0x4] sm:$0xf] %v786
      %819 = vst [vmem:[%s234 + $0x8] sm:$0xf] %v787
      %820 = vst [vmem:[%s234 + $0xc] sm:$0xf] %v788
      %821 = vst [vmem:[%s234 + $0x10] sm:$0xf] %v789
      %822 = vst [vmem:[%s234 + $0x14] sm:$0xf] %v790
      %823 = vst [vmem:[%s234 + $0x18] sm:$0xf] %v791
      %824 = vst [vmem:[%s234 + $0x1c] sm:$0xf] %v792
      %825 = vst [vmem:[%s234 + $0x20] sm:$0xf] %v793
      %826 = vst [vmem:[%s234 + $0x24] sm:$0xf] %v794
      %827 = vst [vmem:[%s234 + $0x28] sm:$0xf] %v795
      %828 = vst [vmem:[%s234 + $0x2c] sm:$0xf] %v796
      %829 = vst [vmem:[%s234 + $0x30] sm:$0xf] %v797
      %830 = vst [vmem:[%s234 + $0x34] sm:$0xf] %v798
      %831 = vst [vmem:[%s234 + $0x38] sm:$0xf] %v799
      %832 = vst [vmem:[%s234 + $0x3c] sm:$0xf] %v800
      %s833 = smul.u32 16, %s18
      %p834 = scmp.lt.s32.totalorder %s833, 31
      %s835 = scalar_select %p834, %s833, 31
      %p836 = scmp.lt.s32.totalorder %s19, 0
      %s837 = scalar_select %p836, %s19, 0
      %s838 = sadd.s32 %s837, %s835
      %s839 = smul.addr %s838, 4
      %s840 = scalar_lea.vmem %s3, %s839
      // Predicated region
      $region40: #{gated_state_spaces_lm.8} parent=31 // pred_check
        %p841 = pneg %p126
      $region41: #{gated_state_spaces_lm.8} parent=31 // pred_check_branch
        %843 = sbr.rel (%p841) target = $region43
      $region42: #{gated_state_spaces_lm.8} parent=31 // pred_region
        %s844 = smul.u32 16, %s18
      $region43: #{gated_state_spaces_lm.8} parent=31 // pred_fallthru
        _
    $region32: #{gated_state_spaces_lm.8} parent=5 // pred_fallthru
      _
    %p845 = scmp.le.s32.totalorder 2, %s9
    // Predicated region
    $region44: #{gated_state_spaces_lm.8} parent=5 // pred_check
      %p846 = pneg %p845
    $region45: #{gated_state_spaces_lm.8} parent=5 // pred_check_branch
      %848 = sbr.rel (%p846) target = $region47
    $region46: #{gated_state_spaces_lm.8} parent=5 // pred_region
      %s849 = ssub.s32 %s9, 2
      // Predicated region
      $region48: #{gated_state_spaces_lm.8} parent=46 // pred_check
        %p850 = pneg %p132
      $region49: #{gated_state_spaces_lm.8} parent=46 // pred_check_branch
        %852 = sbr.rel (%p850) target = $region51
      $region50: #{gated_state_spaces_lm.8} parent=46 // pred_region
        %s853 = smul.u32 16, %s20
        %p854 = scmp.lt.s32.totalorder %s853, 31
        %s855 = scalar_select %p854, %s853, 31
        %p856 = scmp.lt.s32.totalorder %s21, 0
        %s857 = scalar_select %p856, %s21, 0
        %s858 = sadd.s32 %s857, %s855
        %s859 = smul.addr %s858, 4
        %s860 = scalar_lea.vmem %s3, %s859
      $region51: #{gated_state_spaces_lm.8} parent=46 // pred_fallthru
        _
    $region47: #{gated_state_spaces_lm.8} parent=5 // pred_fallthru
      _
  $region6: #{gated_state_spaces_lm.8} parent=0 // loop_footer
    %s13 = sadd.s32 1, %s9
  $region7: #{gated_state_spaces_lm.8} parent=0 // loop_footer_branch
    %8 = sbr.rel target = $region3
  $region8: #{gated_state_spaces_lm.8} parent=0 // loop_exit
    _

// kernel: gated_state_spaces_lm.9
$region0: #{gated_state_spaces_lm.9}
  #allocation0 [shape = 'u32[]', space=smem, size = 0x4, offset = 0x4, fixed_abs, tag = 'smem constant byte address 0x4 - core index']
  #allocation1 [shape = 'u32[144,128]{1,0:T(1,128)}', space=vmem, size = 0x12000, scoped, tag = 'internal scratch']
  %s0 = inlined_call_operand.vmem [shape: bf16[256,128], index: 0, kind: input, shape index: {}]
  %s1 = inlined_call_operand.vmem [shape: bf16[256,256], index: 1, kind: input, shape index: {}]
  %s2 = inlined_call_operand.vmem [shape: f32[256,128], index: 2, kind: input, shape index: {}]
  %s3 = inlined_call_operand.vmem [shape: bf16[128,256], index: 3, kind: input, shape index: {}]
  %s4 = inlined_call_operand.vmem [shape: bf16[256,128], index: 4, kind: input, shape index: {}]
  %s5 = inlined_call_operand.vmem [shape: f32[1,128], index: 5, kind: input, shape index: {}]
  %s6 = inlined_call_operand.vmem [shape: f32[256,128], index: 6, kind: output, shape index: {}]
  %s7 = sld [smem:[#allocation0]]
  $region57: #{gated_state_spaces_lm.9} parent=0
    _
  %s9 = ssub.s32 1, %s7
  %s10 = scalar_select 0, %s9, %s7
  loop: start=0, step=1, limit=4
  $region2: #{gated_state_spaces_lm.9} parent=0 // loop_pre_header
    _
  $region3: #{gated_state_spaces_lm.9} parent=0 // loop_header
    %s12 = sphi 0, %s16
    %p13 = scmp.ge.s32.totalorder %s12, 4
    %s22 = sphi 0, %s24
    %s25 = sphi 0, %s22
    %s26 = sphi 0, %s25
    %s42 = sphi 0, %s26
    %s48 = sphi 0, %s50
    %s51 = sphi 0, %s48
    %s52 = sphi 0, %s51
    %s68 = sphi 0, %s52
    %s74 = sphi 0, %s76
    %s77 = sphi 0, %s74
    %s78 = sphi 0, %s77
    %s94 = sphi 0, %s78
    %s98 = sphi 0, %s98
    %s100 = sphi 0, %s98
    %s101 = sphi 0, %s100
    %s115 = sphi 0, %s101
    %s119 = sphi 0, %s119
    %s121 = sphi 0, %s119
    %s122 = sphi 0, %s121
    %s136 = sphi 0, %s122
    %s140 = sphi 0, %s140
    %s142 = sphi 0, %s140
    %s143 = sphi 0, %s142
    %s157 = sphi 0, %s143
    %s163 = sphi 0, %s165
    %s166 = sphi 0, %s163
    %s167 = sphi 0, %s166
    %s183 = sphi 0, %s167
  $region4: #{gated_state_spaces_lm.9} parent=0 // loop_header_branch
    %15 = sbr.rel (%p13) target = $region8
  $region5: #{gated_state_spaces_lm.9} parent=0 // loop_body
    %s17 = ssub.s32 %s12, 1
    %s18 = ssub.s32 %s12, 2
    %s19 = sadd.s32 %s12, 1
    %s20 = ssub.s32 %s12, %s19
    %p21 = scmp.eq.s32.totalorder %s20, 0
    %s23 = sadd.s32 %s22, 1
    %s24 = scalar_select %p21, %s22, %s23
    %p27 = pneg %p21
    %p28 = scmp.eq.s32.totalorder %s12, 1
    %p29 = por %p27, %p28
    %p30 = scmp.ne.s32.totalorder %s22, %s25
    %p31 = scmp.eq.s32.totalorder %s12, 0
    %p32 = por %p30, %p31
    %p33 = scmp.ne.s32.totalorder %s22, %s25
    %p34 = scmp.eq.s32.totalorder %s17, 1
    %p35 = por %p33, %p34
    %p36 = scmp.ne.s32.totalorder %s25, %s26
    %p37 = scmp.eq.s32.totalorder %s17, 0
    %p38 = por %p36, %p37
    %p39 = scmp.ne.s32.totalorder %s25, %s26
    %p40 = scmp.eq.s32.totalorder %s18, 1
    %p41 = por %p39, %p40
    %p43 = scmp.ne.s32.totalorder %s26, %s42
    %p44 = scmp.eq.s32.totalorder %s18, 0
    %p45 = por %p43, %p44
    %s46 = ssub.s32 %s12, %s19
    %p47 = scmp.eq.s32.totalorder %s46, 0
    %s49 = sadd.s32 %s48, 1
    %s50 = scalar_select %p47, %s48, %s49
    %p53 = pneg %p47
    %p54 = scmp.eq.s32.totalorder %s12, 1
    %p55 = por %p53, %p54
    %p56 = scmp.ne.s32.totalorder %s48, %s51
    %p57 = scmp.eq.s32.totalorder %s12, 0
    %p58 = por %p56, %p57
    %p59 = scmp.ne.s32.totalorder %s48, %s51
    %p60 = scmp.eq.s32.totalorder %s17, 1
    %p61 = por %p59, %p60
    %p62 = scmp.ne.s32.totalorder %s51, %s52
    %p63 = scmp.eq.s32.totalorder %s17, 0
    %p64 = por %p62, %p63
    %p65 = scmp.ne.s32.totalorder %s51, %s52
    %p66 = scmp.eq.s32.totalorder %s18, 1
    %p67 = por %p65, %p66
    %p69 = scmp.ne.s32.totalorder %s52, %s68
    %p70 = scmp.eq.s32.totalorder %s18, 0
    %p71 = por %p69, %p70
    %s72 = ssub.s32 %s12, %s19
    %p73 = scmp.eq.s32.totalorder %s72, 0
    %s75 = sadd.s32 %s74, 1
    %s76 = scalar_select %p73, %s74, %s75
    %p79 = pneg %p73
    %p80 = scmp.eq.s32.totalorder %s12, 1
    %p81 = por %p79, %p80
    %p82 = scmp.ne.s32.totalorder %s74, %s77
    %p83 = scmp.eq.s32.totalorder %s12, 0
    %p84 = por %p82, %p83
    %p85 = scmp.ne.s32.totalorder %s74, %s77
    %p86 = scmp.eq.s32.totalorder %s17, 1
    %p87 = por %p85, %p86
    %p88 = scmp.ne.s32.totalorder %s77, %s78
    %p89 = scmp.eq.s32.totalorder %s17, 0
    %p90 = por %p88, %p89
    %p91 = scmp.ne.s32.totalorder %s77, %s78
    %p92 = scmp.eq.s32.totalorder %s18, 1
    %p93 = por %p91, %p92
    %p95 = scmp.ne.s32.totalorder %s78, %s94
    %p96 = scmp.eq.s32.totalorder %s18, 0
    %p97 = por %p95, %p96
    %s99 = sadd.s32 %s98, 1
    %p102 = scmp.eq.s32.totalorder %s12, 1
    %p103 = scmp.ne.s32.totalorder %s98, %s100
    %p104 = scmp.eq.s32.totalorder %s12, 0
    %p105 = por %p103, %p104
    %p106 = scmp.ne.s32.totalorder %s98, %s100
    %p107 = scmp.eq.s32.totalorder %s17, 1
    %p108 = por %p106, %p107
    %p109 = scmp.ne.s32.totalorder %s100, %s101
    %p110 = scmp.eq.s32.totalorder %s17, 0
    %p111 = por %p109, %p110
    %p112 = scmp.ne.s32.totalorder %s100, %s101
    %p113 = scmp.eq.s32.totalorder %s18, 1
    %p114 = por %p112, %p113
    %p116 = scmp.ne.s32.totalorder %s101, %s115
    %p117 = scmp.eq.s32.totalorder %s18, 0
    %p118 = por %p116, %p117
    %s120 = sadd.s32 %s119, 1
    %p123 = scmp.eq.s32.totalorder %s12, 1
    %p124 = scmp.ne.s32.totalorder %s119, %s121
    %p125 = scmp.eq.s32.totalorder %s12, 0
    %p126 = por %p124, %p125
    %p127 = scmp.ne.s32.totalorder %s119, %s121
    %p128 = scmp.eq.s32.totalorder %s17, 1
    %p129 = por %p127, %p128
    %p130 = scmp.ne.s32.totalorder %s121, %s122
    %p131 = scmp.eq.s32.totalorder %s17, 0
    %p132 = por %p130, %p131
    %p133 = scmp.ne.s32.totalorder %s121, %s122
    %p134 = scmp.eq.s32.totalorder %s18, 1
    %p135 = por %p133, %p134
    %p137 = scmp.ne.s32.totalorder %s122, %s136
    %p138 = scmp.eq.s32.totalorder %s18, 0
    %p139 = por %p137, %p138
    %s141 = sadd.s32 %s140, 1
    %p144 = scmp.eq.s32.totalorder %s12, 1
    %p145 = scmp.ne.s32.totalorder %s140, %s142
    %p146 = scmp.eq.s32.totalorder %s12, 0
    %p147 = por %p145, %p146
    %p148 = scmp.ne.s32.totalorder %s140, %s142
    %p149 = scmp.eq.s32.totalorder %s17, 1
    %p150 = por %p148, %p149
    %p151 = scmp.ne.s32.totalorder %s142, %s143
    %p152 = scmp.eq.s32.totalorder %s17, 0
    %p153 = por %p151, %p152
    %p154 = scmp.ne.s32.totalorder %s142, %s143
    %p155 = scmp.eq.s32.totalorder %s18, 1
    %p156 = por %p154, %p155
    %p158 = scmp.ne.s32.totalorder %s143, %s157
    %p159 = scmp.eq.s32.totalorder %s18, 0
    %p160 = por %p158, %p159
    %s161 = ssub.s32 %s12, %s19
    %p162 = scmp.eq.s32.totalorder %s161, 0
    %s164 = sadd.s32 %s163, 1
    %s165 = scalar_select %p162, %s163, %s164
    %p168 = pneg %p162
    %p169 = scmp.eq.s32.totalorder %s12, 1
    %p170 = por %p168, %p169
    %p171 = scmp.ne.s32.totalorder %s163, %s166
    %p172 = scmp.eq.s32.totalorder %s12, 0
    %p173 = por %p171, %p172
    %p174 = scmp.ne.s32.totalorder %s163, %s166
    %p175 = scmp.eq.s32.totalorder %s17, 1
    %p176 = por %p174, %p175
    %p177 = scmp.ne.s32.totalorder %s166, %s167
    %p178 = scmp.eq.s32.totalorder %s17, 0
    %p179 = por %p177, %p178
    %p180 = scmp.ne.s32.totalorder %s166, %s167
    %p181 = scmp.eq.s32.totalorder %s18, 1
    %p182 = por %p180, %p181
    %p184 = scmp.ne.s32.totalorder %s167, %s183
    %p185 = scmp.eq.s32.totalorder %s18, 0
    %p186 = por %p184, %p185
    %p187 = scmp.le.s32.totalorder 1, %s12
    %p188 = scmp.lt.s32.totalorder %s12, 3
    %p189 = pnand %p187, %p188
    %p190 = pneg %p189
    // Predicated region
    $region9: #{gated_state_spaces_lm.9} parent=5 // pred_check
      _
    $region10: #{gated_state_spaces_lm.9} parent=5 // pred_check_branch
      %192 = sbr.rel (%p189) target = $region12
    $region11: #{gated_state_spaces_lm.9} parent=5 // pred_region
      %s193 = ssub.s32 %s12, 1
      // Predicated region
      $region13: #{gated_state_spaces_lm.9} parent=11 // pred_check
        %p194 = pneg %p111
      $region14: #{gated_state_spaces_lm.9} parent=11 // pred_check_branch
        %196 = sbr.rel (%p194) target = $region16
      $region15: #{gated_state_spaces_lm.9} parent=11 // pred_region
        _
      $region16: #{gated_state_spaces_lm.9} parent=11 // pred_fallthru
        _
      // Predicated region
      $region17: #{gated_state_spaces_lm.9} parent=11 // pred_check
        %p197 = pneg %p132
      $region18: #{gated_state_spaces_lm.9} parent=11 // pred_check_branch
        %199 = sbr.rel (%p197) target = $region20
      $region19: #{gated_state_spaces_lm.9} parent=11 // pred_region
        _
      $region20: #{gated_state_spaces_lm.9} parent=11 // pred_fallthru
        _
      // Predicated region
      $region21: #{gated_state_spaces_lm.9} parent=11 // pred_check
        %p200 = pneg %p153
      $region22: #{gated_state_spaces_lm.9} parent=11 // pred_check_branch
        %202 = sbr.rel (%p200) target = $region24
      $region23: #{gated_state_spaces_lm.9} parent=11 // pred_region
        _
      $region24: #{gated_state_spaces_lm.9} parent=11 // pred_fallthru
        _
    $region12: #{gated_state_spaces_lm.9} parent=5 // pred_fallthru
      _
    %p203 = scmp.lt.s32.totalorder %s12, 2
    // Predicated region
    $region25: #{gated_state_spaces_lm.9} parent=5 // pred_check
      %p204 = pneg %p203
    $region26: #{gated_state_spaces_lm.9} parent=5 // pred_check_branch
      %206 = sbr.rel (%p204) target = $region28
    $region27: #{gated_state_spaces_lm.9} parent=5 // pred_region
      // Predicated region
      $region29: #{gated_state_spaces_lm.9} parent=27 // pred_check
        %p207 = pneg %p32
      $region30: #{gated_state_spaces_lm.9} parent=27 // pred_check_branch
        %209 = sbr.rel (%p207) target = $region32
      $region31: #{gated_state_spaces_lm.9} parent=27 // pred_region
        %s210 = smul.u32 16, %s12
        %p211 = scmp.lt.s32.totalorder %s210, 31
        %s212 = scalar_select %p211, %s210, 31
        %s213 = smul.addr %s212, 4
        %s214 = scalar_lea.vmem %s0, %s213
        %s215 = smul.u32 16, %s12
      $region32: #{gated_state_spaces_lm.9} parent=27 // pred_fallthru
        _
      // Predicated region
      $region33: #{gated_state_spaces_lm.9} parent=27 // pred_check
        %p216 = pneg %p58
      $region34: #{gated_state_spaces_lm.9} parent=27 // pred_check_branch
        %218 = sbr.rel (%p216) target = $region36
      $region35: #{gated_state_spaces_lm.9} parent=27 // pred_region
        %s219 = smul.u32 16, %s12
        %p220 = scmp.lt.s32.totalorder %s219, 31
        %s221 = scalar_select %p220, %s219, 31
        %s222 = smul.addr %s221, 2
        %s223 = smul.addr %s222, 4
        %s224 = scalar_lea.vmem %s1, %s223
        %s225 = smul.u32 16, %s12
      $region36: #{gated_state_spaces_lm.9} parent=27 // pred_fallthru
        _
      // Predicated region
      $region37: #{gated_state_spaces_lm.9} parent=27 // pred_check
        %p226 = pneg %p84
      $region38: #{gated_state_spaces_lm.9} parent=27 // pred_check_branch
        %228 = sbr.rel (%p226) target = $region40
      $region39: #{gated_state_spaces_lm.9} parent=27 // pred_region
        %s229 = smul.u32 16, %s12
        %p230 = scmp.lt.s32.totalorder %s229, 31
        %s231 = scalar_select %p230, %s229, 31
        %s232 = smul.addr %s231, 8
        %s233 = scalar_lea.vmem %s2, %s232
        %s234 = smul.u32 16, %s12
      $region40: #{gated_state_spaces_lm.9} parent=27 // pred_fallthru
        _
    $region28: #{gated_state_spaces_lm.9} parent=5 // pred_fallthru
      _
    %p235 = scmp.le.s32.totalorder 1, %s12
    %p236 = scmp.lt.s32.totalorder %s12, 3
    %p237 = pnand %p235, %p236
    %p238 = pneg %p237
    // Predicated region
    $region41: #{gated_state_spaces_lm.9} parent=5 // pred_check
      _
    $region42: #{gated_state_spaces_lm.9} parent=5 // pred_check_branch
      %240 = sbr.rel (%p237) target = $region44
    $region43: #{gated_state_spaces_lm.9} parent=5 // pred_region
      %s241 = ssub.s32 %s12, 1
      %s242 = smul.u32 16, %s17
      %p243 = scmp.lt.s32.totalorder %s242, 31
      %s244 = scalar_select %p243, %s242, 31
      %s245 = smul.addr %s244, 4
      %s246 = scalar_lea.vmem %s0, %s245
      %p247 = pneg %p38
      %p248 = pneg %p35
      %s249 = smul.u32 16, %s17
      %p250 = scmp.lt.s32.totalorder %s249, 31
      %s251 = scalar_select %p250, %s249, 31
      %s252 = smul.addr %s251, 2
      %s253 = smul.addr %s252, 4
      %s254 = scalar_lea.vmem %s1, %s253
      %p255 = pneg %p64
      %p256 = pneg %p61
      %s257 = smul.u32 16, %s17
      %p258 = scmp.lt.s32.totalorder %s257, 31
      %s259 = scalar_select %p258, %s257, 31
      %s260 = smul.addr %s259, 8
      %s261 = scalar_lea.vmem %s2, %s260
      %p262 = pneg %p90
      %p263 = pneg %p87
      %p264 = pneg %p111
      %p265 = pneg %p108
      %p266 = pneg %p132
      %p267 = pneg %p129
      %p268 = pneg %p153
      %p269 = pneg %p150
      %p270 = pneg %p179
      %p271 = pneg %p176
      %s272 = smul.u32 16, %s17
      %p273 = scmp.lt.s32.totalorder %s272, 31
      %s274 = scalar_select %p273, %s272, 31
      %s275 = smul.addr %s274, 8
      %s276 = scalar_lea.vmem %s6, %s275
      %s277 = smul.u32 16, %s17
      %p278 = scmp.lt.s32.totalorder %s277, 31
      %s279 = scalar_select %p278, %s277, 31
      %s280 = smul.addr %s279, 4
      %s281 = scalar_lea.vmem %s0, %s280
      %s282 = smul.u32 16, %s17
      %s283 = smul.u32 16, %s17
      %p284 = scmp.lt.s32.totalorder %s283, 31
      %s285 = scalar_select %p284, %s283, 31
      %s286 = smul.addr %s285, 2
      %s287 = smul.addr %s286, 4
      %s288 = scalar_lea.vmem %s1, %s287
      %s289 = smul.u32 16, %s17
      %s290 = smul.u32 16, %s17
      %p291 = scmp.lt.s32.totalorder %s290, 31
      %s292 = scalar_select %p291, %s290, 31
      %s293 = smul.addr %s292, 8
      %s294 = scalar_lea.vmem %s2, %s293
      %s295 = smul.u32 16, %s17
      %s296 = smul.u32 16, %s17
      %p297 = scmp.lt.s32.totalorder %s296, 31
      %s298 = scalar_select %p297, %s296, 31
      %s299 = smul.addr %s298, 8
      %s300 = scalar_lea.vmem %s6, %s299
      %s301 = smul.u32 16, %s17
      %v303 = vld [vmem:[%s281] sm:$0xf]
      %v304 = vld [vmem:[%s281 + $0x4] sm:$0xf]
      %v305 = vld [vmem:[%s281 + $0x8] sm:$0xf]
      %v306 = vld [vmem:[%s281 + $0xc] sm:$0xf]
      %v307 = vld [vmem:[%s281 + $0x10] sm:$0xf]
      %v308 = vld [vmem:[%s281 + $0x14] sm:$0xf]
      %v309 = vld [vmem:[%s281 + $0x18] sm:$0xf]
      %v310 = vld [vmem:[%s281 + $0x1c] sm:$0xf]
      %v311 = vld [vmem:[%s281 + $0x20] sm:$0xf]
      %v312 = vld [vmem:[%s281 + $0x24] sm:$0xf]
      %v313 = vld [vmem:[%s281 + $0x28] sm:$0xf]
      %v314 = vld [vmem:[%s281 + $0x2c] sm:$0xf]
      %v315 = vld [vmem:[%s281 + $0x30] sm:$0xf]
      %v316 = vld [vmem:[%s281 + $0x34] sm:$0xf]
      %v317 = vld [vmem:[%s281 + $0x38] sm:$0xf]
      %v318 = vld [vmem:[%s281 + $0x3c] sm:$0xf]
      %v319 = vld [vmem:[%s3] sm:$0xff]
      %v320 = vld [vmem:[%s3 + $0x8] sm:$0xff]
      %v321 = vld [vmem:[%s3 + $0x10] sm:$0xff]
      %v322 = vld [vmem:[%s3 + $0x18] sm:$0xff]
      %v323 = vld [vmem:[%s3 + $0x20] sm:$0xff]
      %v324 = vld [vmem:[%s3 + $0x28] sm:$0xff]
      %v325 = vld [vmem:[%s3 + $0x30] sm:$0xff]
      %v326 = vld [vmem:[%s3 + $0x38] sm:$0xff]
      %v327 = vld [vmem:[%s3 + $0x40] sm:$0xff]
      %v328 = vld [vmem:[%s3 + $0x48] sm:$0xff]
      %v329 = vld [vmem:[%s3 + $0x50] sm:$0xff]
      %v330 = vld [vmem:[%s3 + $0x58] sm:$0xff]
      %v331 = vld [vmem:[%s3 + $0x60] sm:$0xff]
      %v332 = vld [vmem:[%s3 + $0x68] sm:$0xff]
      %v333 = vld [vmem:[%s3 + $0x70] sm:$0xff]
      %v334 = vld [vmem:[%s3 + $0x78] sm:$0xff]
      %v351 = vunpack.c.l.b16 %v303
      %v352 = vunpack.c.l.b16 %v304
      %v353 = vunpack.c.l.b16 %v305
      %v354 = vunpack.c.l.b16 %v306
      %v355 = vunpack.c.l.b16 %v307
      %v356 = vunpack.c.l.b16 %v308
      %v357 = vunpack.c.l.b16 %v309
      %v358 = vunpack.c.l.b16 %v310
      %v359 = vunpack.c.l.b16 %v311
      %v360 = vunpack.c.l.b16 %v312
      %v361 = vunpack.c.l.b16 %v313
      %v362 = vunpack.c.l.b16 %v314
      %v363 = vunpack.c.l.b16 %v315
      %v364 = vunpack.c.l.b16 %v316
      %v365 = vunpack.c.l.b16 %v317
      %v366 = vunpack.c.l.b16 %v318
      %v367 = vpack.c.b16 %v352, %v351
      %v368 = vpack.c.b16 %v354, %v353
      %v369 = vpack.c.b16 %v356, %v355
      %v370 = vpack.c.b16 %v358, %v357
      %v371 = vpack.c.b16 %v360, %v359
      %v372 = vpack.c.b16 %v362, %v361
      %v373 = vpack.c.b16 %v364, %v363
      %v374 = vpack.c.b16 %v366, %v365
      %v399 = vunpack.c.l.b16 %v319
      %v400 = vunpack.c.h.b16 %v319
      %v401 = vunpack.c.l.b16 %v320
      %v402 = vunpack.c.h.b16 %v320
      %v403 = vunpack.c.l.b16 %v321
      %v404 = vunpack.c.h.b16 %v321
      %v405 = vunpack.c.l.b16 %v322
      %v406 = vunpack.c.h.b16 %v322
      %v407 = vunpack.c.l.b16 %v323
      %v408 = vunpack.c.h.b16 %v323
      %v409 = vunpack.c.l.b16 %v324
      %v410 = vunpack.c.h.b16 %v324
      %v411 = vunpack.c.l.b16 %v325
      %v412 = vunpack.c.h.b16 %v325
      %v413 = vunpack.c.l.b16 %v326
      %v414 = vunpack.c.h.b16 %v326
      %v415 = vunpack.c.l.b16 %v327
      %v416 = vunpack.c.h.b16 %v327
      %v417 = vunpack.c.l.b16 %v328
      %v418 = vunpack.c.h.b16 %v328
      %v419 = vunpack.c.l.b16 %v329
      %v420 = vunpack.c.h.b16 %v329
      %v421 = vunpack.c.l.b16 %v330
      %v422 = vunpack.c.h.b16 %v330
      %v423 = vunpack.c.l.b16 %v331
      %v424 = vunpack.c.h.b16 %v331
      %v425 = vunpack.c.l.b16 %v332
      %v426 = vunpack.c.h.b16 %v332
      %v427 = vunpack.c.l.b16 %v333
      %v428 = vunpack.c.h.b16 %v333
      %v429 = vunpack.c.l.b16 %v334
      %v430 = vunpack.c.h.b16 %v334
      %v431 = vpack.c.b16 %v401, %v399
      %v432 = vpack.c.b16 %v402, %v400
      %v433 = vpack.c.b16 %v405, %v403
      %v434 = vpack.c.b16 %v406, %v404
      %v435 = vpack.c.b16 %v409, %v407
      %v436 = vpack.c.b16 %v410, %v408
      %v437 = vpack.c.b16 %v413, %v411
      %v438 = vpack.c.b16 %v414, %v412
      %v439 = vpack.c.b16 %v417, %v415
      %v440 = vpack.c.b16 %v418, %v416
      %v441 = vpack.c.b16 %v421, %v419
      %v442 = vpack.c.b16 %v422, %v420
      %v443 = vpack.c.b16 %v425, %v423
      %v444 = vpack.c.b16 %v426, %v424
      %v445 = vpack.c.b16 %v429, %v427
      %v446 = vpack.c.b16 %v430, %v428
      %463 = vmatprep.subr.bf16.mxu0 %v446
      %464 = vmatpush1.bf16.msra.mxu0 %v445
      %465 = vmatprep.subr.bf16.mxu0 %v444
      %466 = vmatpush1.bf16.msra.mxu0 %v443
      %467 = vmatprep.subr.bf16.mxu0 %v442
      %468 = vmatpush1.bf16.msra.mxu0 %v441
      %469 = vmatprep.subr.bf16.mxu0 %v440
      %470 = vmatpush1.bf16.msra.mxu0 %v439
      %471 = vmatprep.subr.bf16.mxu0 %v438
      %472 = vmatpush1.bf16.msra.mxu0 %v437
      %473 = vmatprep.subr.bf16.mxu0 %v436
      %474 = vmatpush1.bf16.msra.mxu0 %v435
      %475 = vmatprep.subr.bf16.mxu0 %v434
      %476 = vmatpush1.bf16.msra.mxu0 %v433
      %477 = vmatprep.subr.bf16.mxu0 %v432
      %478 = vmatpush1.bf16.msra.mxu0 %v431
      %479 = vmatprep.subr.bf16.mxu0 0
      %480 = vmatpush2.bf16.msra.mxu0 0
      %481 = vmatprep.subr.bf16.mxu0 0
      %482 = vmatpush2.bf16.msra.mxu0 0
      %483 = vmatprep.subr.bf16.mxu0 0
      %484 = vmatpush2.bf16.msra.mxu0 0
      %485 = vmatprep.subr.bf16.mxu0 0
      %486 = vmatpush2.bf16.msra.mxu0 0
      %487 = vmatprep.subr.bf16.mxu0 0
      %488 = vmatpush2.bf16.msra.mxu0 0
      %489 = vmatprep.subr.bf16.mxu0 0
      %490 = vmatpush2.bf16.msra.mxu0 0
      %491 = vmatprep.subr.bf16.mxu0 0
      %492 = vmatpush2.bf16.msra.mxu0 0
      %493 = vmatprep.subr.bf16.mxu0 0
      %494 = vmatpush2.bf16.msra.mxu0 0
      %495 = vmatprep.mubr.bf16.mxu0 0
      %496 = vmatmul.mubr.bf16.gmra.mxu0 %v367
      %v497 = vpop.f32.mrf.mxu0
      %v498 = vadd.f32 0.0, %v497
      %v499 = vpop.f32.mrf.mxu0
      %v500 = vadd.f32 0.0, %v499
      %v501 = vpop.f32.mrf.mxu0
      %v502 = vadd.f32 0.0, %v501
      %v503 = vpop.f32.mrf.mxu0
      %v504 = vadd.f32 0.0, %v503
      %505 = vmatprep.mubr.bf16.mxu0 0
      %506 = vmatmul.mubr.bf16.gmra.mxu0 %v368
      %v507 = vpop.f32.mrf.mxu0
      %v508 = vadd.f32 0.0, %v507
      %v509 = vpop.f32.mrf.mxu0
      %v510 = vadd.f32 0.0, %v509
      %v511 = vpop.f32.mrf.mxu0
      %v512 = vadd.f32 0.0, %v511
      %v513 = vpop.f32.mrf.mxu0
      %v514 = vadd.f32 0.0, %v513
      %515 = vmatprep.mubr.bf16.mxu0 0
      %516 = vmatmul.mubr.bf16.gmra.mxu0 %v369
      %v517 = vpop.f32.mrf.mxu0
      %v518 = vadd.f32 0.0, %v517
      %v519 = vpop.f32.mrf.mxu0
      %v520 = vadd.f32 0.0, %v519
      %v521 = vpop.f32.mrf.mxu0
      %v522 = vadd.f32 0.0, %v521
      %v523 = vpop.f32.mrf.mxu0
      %v524 = vadd.f32 0.0, %v523
      %525 = vmatprep.mubr.bf16.mxu0 0
      %526 = vmatmul.mubr.bf16.gmra.mxu0 %v370
      %v527 = vpop.f32.mrf.mxu0
      %v528 = vadd.f32 0.0, %v527
      %v529 = vpop.f32.mrf.mxu0
      %v530 = vadd.f32 0.0, %v529
      %v531 = vpop.f32.mrf.mxu0
      %v532 = vadd.f32 0.0, %v531
      %v533 = vpop.f32.mrf.mxu0
      %v534 = vadd.f32 0.0, %v533
      %535 = vmatprep.mubr.bf16.mxu0 0
      %536 = vmatmul.mubr.bf16.gmra.mxu0 %v371
      %v537 = vpop.f32.mrf.mxu0
      %v538 = vadd.f32 0.0, %v537
      %v539 = vpop.f32.mrf.mxu0
      %v540 = vadd.f32 0.0, %v539
      %v541 = vpop.f32.mrf.mxu0
      %v542 = vadd.f32 0.0, %v541
      %v543 = vpop.f32.mrf.mxu0
      %v544 = vadd.f32 0.0, %v543
      %545 = vmatprep.mubr.bf16.mxu0 0
      %546 = vmatmul.mubr.bf16.gmra.mxu0 %v372
      %v547 = vpop.f32.mrf.mxu0
      %v548 = vadd.f32 0.0, %v547
      %v549 = vpop.f32.mrf.mxu0
      %v550 = vadd.f32 0.0, %v549
      %v551 = vpop.f32.mrf.mxu0
      %v552 = vadd.f32 0.0, %v551
      %v553 = vpop.f32.mrf.mxu0
      %v554 = vadd.f32 0.0, %v553
      %555 = vmatprep.mubr.bf16.mxu0 0
      %556 = vmatmul.mubr.bf16.gmra.mxu0 %v373
      %v557 = vpop.f32.mrf.mxu0
      %v558 = vadd.f32 0.0, %v557
      %v559 = vpop.f32.mrf.mxu0
      %v560 = vadd.f32 0.0, %v559
      %v561 = vpop.f32.mrf.mxu0
      %v562 = vadd.f32 0.0, %v561
      %v563 = vpop.f32.mrf.mxu0
      %v564 = vadd.f32 0.0, %v563
      %565 = vmatprep.mubr.bf16.mxu0 0
      %566 = vmatmul.mubr.bf16.gmra.mxu0 %v374
      %v567 = vpop.f32.mrf.mxu0
      %v568 = vadd.f32 0.0, %v567
      %v569 = vpop.f32.mrf.mxu0
      %v570 = vadd.f32 0.0, %v569
      %v571 = vpop.f32.mrf.mxu0
      %v572 = vadd.f32 0.0, %v571
      %v573 = vpop.f32.mrf.mxu0
      %v574 = vadd.f32 0.0, %v573
      %575 = vdwg.mxu0
      %v576 = vpack.c.bf16 %v502, %v498
      %v577 = vpack.c.bf16 %v504, %v500
      %v578 = vpack.c.bf16 %v512, %v508
      %v579 = vpack.c.bf16 %v514, %v510
      %v580 = vpack.c.bf16 %v522, %v518
      %v581 = vpack.c.bf16 %v524, %v520
      %v582 = vpack.c.bf16 %v532, %v528
      %v583 = vpack.c.bf16 %v534, %v530
      %v584 = vpack.c.bf16 %v542, %v538
      %v585 = vpack.c.bf16 %v544, %v540
      %v586 = vpack.c.bf16 %v552, %v548
      %v587 = vpack.c.bf16 %v554, %v550
      %v588 = vpack.c.bf16 %v562, %v558
      %v589 = vpack.c.bf16 %v564, %v560
      %v590 = vpack.c.bf16 %v572, %v568
      %v591 = vpack.c.bf16 %v574, %v570
      %v592 = vld [vmem:[%s288] sm:$0xff]
      %v593 = vld [vmem:[%s288 + $0x8] sm:$0xff]
      %v594 = vld [vmem:[%s288 + $0x10] sm:$0xff]
      %v595 = vld [vmem:[%s288 + $0x18] sm:$0xff]
      %v596 = vld [vmem:[%s288 + $0x20] sm:$0xff]
      %v597 = vld [vmem:[%s288 + $0x28] sm:$0xff]
      %v598 = vld [vmem:[%s288 + $0x30] sm:$0xff]
      %v599 = vld [vmem:[%s288 + $0x38] sm:$0xff]
      %v600 = vld [vmem:[%s288 + $0x40] sm:$0xff]
      %v601 = vld [vmem:[%s288 + $0x48] sm:$0xff]
      %v602 = vld [vmem:[%s288 + $0x50] sm:$0xff]
      %v603 = vld [vmem:[%s288 + $0x58] sm:$0xff]
      %v604 = vld [vmem:[%s288 + $0x60] sm:$0xff]
      %v605 = vld [vmem:[%s288 + $0x68] sm:$0xff]
      %v606 = vld [vmem:[%s288 + $0x70] sm:$0xff]
      %v607 = vld [vmem:[%s288 + $0x78] sm:$0xff]
      %v624 = vunpack.c.l.b16 %v592
      %v625 = vunpack.c.h.b16 %v592
      %v626 = vunpack.c.l.b16 %v593
      %v627 = vunpack.c.h.b16 %v593
      %v628 = vunpack.c.l.b16 %v594
      %v629 = vunpack.c.h.b16 %v594
      %v630 = vunpack.c.l.b16 %v595
      %v631 = vunpack.c.h.b16 %v595
      %v632 = vunpack.c.l.b16 %v596
      %v633 = vunpack.c.h.b16 %v596
      %v634 = vunpack.c.l.b16 %v597
      %v635 = vunpack.c.h.b16 %v597
      %v636 = vunpack.c.l.b16 %v598
      %v637 = vunpack.c.h.b16 %v598
      %v638 = vunpack.c.l.b16 %v599
      %v639 = vunpack.c.h.b16 %v599
      %v640 = vunpack.c.l.b16 %v600
      %v641 = vunpack.c.h.b16 %v600
      %v642 = vunpack.c.l.b16 %v601
      %v643 = vunpack.c.h.b16 %v601
      %v644 = vunpack.c.l.b16 %v602
      %v645 = vunpack.c.h.b16 %v602
      %v646 = vunpack.c.l.b16 %v603
      %v647 = vunpack.c.h.b16 %v603
      %v648 = vunpack.c.l.b16 %v604
      %v649 = vunpack.c.h.b16 %v604
      %v650 = vunpack.c.l.b16 %v605
      %v651 = vunpack.c.h.b16 %v605
      %v652 = vunpack.c.l.b16 %v606
      %v653 = vunpack.c.h.b16 %v606
      %v654 = vunpack.c.l.b16 %v607
      %v655 = vunpack.c.h.b16 %v607
      %v656 = vpack.c.b16 %v626, %v624
      %v657 = vpack.c.b16 %v627, %v625
      %v658 = vpack.c.b16 %v630, %v628
      %v659 = vpack.c.b16 %v631, %v629
      %v660 = vpack.c.b16 %v634, %v632
      %v661 = vpack.c.b16 %v635, %v633
      %v662 = vpack.c.b16 %v638, %v636
      %v663 = vpack.c.b16 %v639, %v637
      %v664 = vpack.c.b16 %v642, %v640
      %v665 = vpack.c.b16 %v643, %v641
      %v666 = vpack.c.b16 %v646, %v644
      %v667 = vpack.c.b16 %v647, %v645
      %v668 = vpack.c.b16 %v650, %v648
      %v669 = vpack.c.b16 %v651, %v649
      %v670 = vpack.c.b16 %v654, %v652
      %v671 = vpack.c.b16 %v655, %v653
      %v688 = vmul.bf16 %v576, %v656
      %v689 = vmul.bf16 %v577, %v657
      %v690 = vmul.bf16 %v578, %v658
      %v691 = vmul.bf16 %v579, %v659
      %v692 = vmul.bf16 %v580, %v660
      %v693 = vmul.bf16 %v581, %v661
      %v694 = vmul.bf16 %v582, %v662
      %v695 = vmul.bf16 %v583, %v663
      %v696 = vmul.bf16 %v584, %v664
      %v697 = vmul.bf16 %v585, %v665
      %v698 = vmul.bf16 %v586, %v666
      %v699 = vmul.bf16 %v587, %v667
      %v700 = vmul.bf16 %v588, %v668
      %v701 = vmul.bf16 %v589, %v669
      %v702 = vmul.bf16 %v590, %v670
      %v703 = vmul.bf16 %v591, %v671
      %v704 = vld [vmem:[%s4] sm:$0xf]
      %v705 = vld [vmem:[%s4 + $0x4] sm:$0xf]
      %v706 = vld [vmem:[%s4 + $0x8] sm:$0xf]
      %v707 = vld [vmem:[%s4 + $0xc] sm:$0xf]
      %v708 = vld [vmem:[%s4 + $0x10] sm:$0xf]
      %v709 = vld [vmem:[%s4 + $0x14] sm:$0xf]
      %v710 = vld [vmem:[%s4 + $0x18] sm:$0xf]
      %v711 = vld [vmem:[%s4 + $0x1c] sm:$0xf]
      %v712 = vld [vmem:[%s4 + $0x20] sm:$0xf]
      %v713 = vld [vmem:[%s4 + $0x24] sm:$0xf]
      %v714 = vld [vmem:[%s4 + $0x28] sm:$0xf]
      %v715 = vld [vmem:[%s4 + $0x2c] sm:$0xf]
      %v716 = vld [vmem:[%s4 + $0x30] sm:$0xf]
      %v717 = vld [vmem:[%s4 + $0x34] sm:$0xf]
      %v718 = vld [vmem:[%s4 + $0x38] sm:$0xf]
      %v719 = vld [vmem:[%s4 + $0x3c] sm:$0xf]
      %v720 = vld [vmem:[%s4 + $0x40] sm:$0xf]
      %v721 = vld [vmem:[%s4 + $0x44] sm:$0xf]
      %v722 = vld [vmem:[%s4 + $0x48] sm:$0xf]
      %v723 = vld [vmem:[%s4 + $0x4c] sm:$0xf]
      %v724 = vld [vmem:[%s4 + $0x50] sm:$0xf]
      %v725 = vld [vmem:[%s4 + $0x54] sm:$0xf]
      %v726 = vld [vmem:[%s4 + $0x58] sm:$0xf]
      %v727 = vld [vmem:[%s4 + $0x5c] sm:$0xf]
      %v728 = vld [vmem:[%s4 + $0x60] sm:$0xf]
      %v729 = vld [vmem:[%s4 + $0x64] sm:$0xf]
      %v730 = vld [vmem:[%s4 + $0x68] sm:$0xf]
      %v731 = vld [vmem:[%s4 + $0x6c] sm:$0xf]
      %v732 = vld [vmem:[%s4 + $0x70] sm:$0xf]
      %v733 = vld [vmem:[%s4 + $0x74] sm:$0xf]
      %v734 = vld [vmem:[%s4 + $0x78] sm:$0xf]
      %v735 = vld [vmem:[%s4 + $0x7c] sm:$0xf]
      %v736 = vld [vmem:[%s5] sm:$0x1]
      %v738 = vlaneseq
      %v739 = vshrl.u32 %v738, 7
      %v740 = vsub.s32 0, %v739
      %v741 = vrot.slane %v736, %v740
      %v775 = vunpack.c.l.b16 %v704
      %v776 = vunpack.c.l.b16 %v705
      %v777 = vunpack.c.l.b16 %v706
      %v778 = vunpack.c.l.b16 %v707
      %v779 = vunpack.c.l.b16 %v708
      %v780 = vunpack.c.l.b16 %v709
      %v781 = vunpack.c.l.b16 %v710
      %v782 = vunpack.c.l.b16 %v711
      %v783 = vunpack.c.l.b16 %v712
      %v784 = vunpack.c.l.b16 %v713
      %v785 = vunpack.c.l.b16 %v714
      %v786 = vunpack.c.l.b16 %v715
      %v787 = vunpack.c.l.b16 %v716
      %v788 = vunpack.c.l.b16 %v717
      %v789 = vunpack.c.l.b16 %v718
      %v790 = vunpack.c.l.b16 %v719
      %v791 = vunpack.c.l.b16 %v720
      %v792 = vunpack.c.l.b16 %v721
      %v793 = vunpack.c.l.b16 %v722
      %v794 = vunpack.c.l.b16 %v723
      %v795 = vunpack.c.l.b16 %v724
      %v796 = vunpack.c.l.b16 %v725
      %v797 = vunpack.c.l.b16 %v726
      %v798 = vunpack.c.l.b16 %v727
      %v799 = vunpack.c.l.b16 %v728
      %v800 = vunpack.c.l.b16 %v729
      %v801 = vunpack.c.l.b16 %v730
      %v802 = vunpack.c.l.b16 %v731
      %v803 = vunpack.c.l.b16 %v732
      %v804 = vunpack.c.l.b16 %v733
      %v805 = vunpack.c.l.b16 %v734
      %v806 = vunpack.c.l.b16 %v735
      %v807 = vpack.c.b16 %v776, %v775
      %v808 = vpack.c.b16 %v778, %v777
      %v809 = vpack.c.b16 %v780, %v779
      %v810 = vpack.c.b16 %v782, %v781
      %v811 = vpack.c.b16 %v784, %v783
      %v812 = vpack.c.b16 %v786, %v785
      %v813 = vpack.c.b16 %v788, %v787
      %v814 = vpack.c.b16 %v790, %v789
      %v815 = vpack.c.b16 %v792, %v791
      %v816 = vpack.c.b16 %v794, %v793
      %v817 = vpack.c.b16 %v796, %v795
      %v818 = vpack.c.b16 %v798, %v797
      %v819 = vpack.c.b16 %v800, %v799
      %v820 = vpack.c.b16 %v802, %v801
      %v821 = vpack.c.b16 %v804, %v803
      %v822 = vpack.c.b16 %v806, %v805
      %839 = vmatprep.subr.bf16.mxu0 0
      %840 = vmatpush1.bf16.msra.mxu0 %v814
      %841 = vmatprep.subr.bf16.mxu0 0
      %842 = vmatpush1.bf16.msra.mxu0 %v813
      %843 = vmatprep.subr.bf16.mxu0 0
      %844 = vmatpush1.bf16.msra.mxu0 %v812
      %845 = vmatprep.subr.bf16.mxu0 0
      %846 = vmatpush1.bf16.msra.mxu0 %v811
      %847 = vmatprep.subr.bf16.mxu0 0
      %848 = vmatpush1.bf16.msra.mxu0 %v810
      %849 = vmatprep.subr.bf16.mxu0 0
      %850 = vmatpush1.bf16.msra.mxu0 %v809
      %851 = vmatprep.subr.bf16.mxu0 0
      %852 = vmatpush1.bf16.msra.mxu0 %v808
      %853 = vmatprep.subr.bf16.mxu0 0
      %854 = vmatpush1.bf16.msra.mxu0 %v807
      %855 = vmatprep.subr.bf16.mxu0 0
      %856 = vmatpush2.bf16.msra.mxu0 %v822
      %857 = vmatprep.subr.bf16.mxu0 0
      %858 = vmatpush2.bf16.msra.mxu0 %v821
      %859 = vmatprep.subr.bf16.mxu0 0
      %860 = vmatpush2.bf16.msra.mxu0 %v820
      %861 = vmatprep.subr.bf16.mxu0 0
      %862 = vmatpush2.bf16.msra.mxu0 %v819
      %863 = vmatprep.subr.bf16.mxu0 0
      %864 = vmatpush2.bf16.msra.mxu0 %v818
      %865 = vmatprep.subr.bf16.mxu0 0
      %866 = vmatpush2.bf16.msra.mxu0 %v817
      %867 = vmatprep.subr.bf16.mxu0 0
      %868 = vmatpush2.bf16.msra.mxu0 %v816
      %869 = vmatprep.subr.bf16.mxu0 0
      %870 = vmatpush2.bf16.msra.mxu0 %v815
      %871 = vmatprep.mubr.bf16.mxu0 %v689
      %872 = vmatmul.mubr.bf16.gmra.mxu0 %v688
      %v873 = vpop.f32.mrf.mxu0
      %v874 = vadd.f32 %v741, %v873
      %v875 = vpop.f32.mrf.mxu0
      %v876 = vpop.f32.mrf.mxu0
      %v877 = vadd.f32 %v741, %v876
      %v878 = vpop.f32.mrf.mxu0
      %879 = vmatprep.mubr.bf16.mxu0 %v691
      %880 = vmatmul.mubr.bf16.gmra.mxu0 %v690
      %v881 = vpop.f32.mrf.mxu0
      %v882 = vadd.f32 %v741, %v881
      %v883 = vpop.f32.mrf.mxu0
      %v884 = vpop.f32.mrf.mxu0
      %v885 = vadd.f32 %v741, %v884
      %v886 = vpop.f32.mrf.mxu0
      %887 = vmatprep.mubr.bf16.mxu0 %v693
      %888 = vmatmul.mubr.bf16.gmra.mxu0 %v692
      %v889 = vpop.f32.mrf.mxu0
      %v890 = vadd.f32 %v741, %v889
      %v891 = vpop.f32.mrf.mxu0
      %v892 = vpop.f32.mrf.mxu0
      %v893 = vadd.f32 %v741, %v892
      %v894 = vpop.f32.mrf.mxu0
      %895 = vmatprep.mubr.bf16.mxu0 %v695
      %896 = vmatmul.mubr.bf16.gmra.mxu0 %v694
      %v897 = vpop.f32.mrf.mxu0
      %v898 = vadd.f32 %v741, %v897
      %v899 = vpop.f32.mrf.mxu0
      %v900 = vpop.f32.mrf.mxu0
      %v901 = vadd.f32 %v741, %v900
      %v902 = vpop.f32.mrf.mxu0
      %903 = vmatprep.mubr.bf16.mxu0 %v697
      %904 = vmatmul.mubr.bf16.gmra.mxu0 %v696
      %v905 = vpop.f32.mrf.mxu0
      %v906 = vadd.f32 %v741, %v905
      %v907 = vpop.f32.mrf.mxu0
      %v908 = vpop.f32.mrf.mxu0
      %v909 = vadd.f32 %v741, %v908
      %v910 = vpop.f32.mrf.mxu0
      %911 = vmatprep.mubr.bf16.mxu0 %v699
      %912 = vmatmul.mubr.bf16.gmra.mxu0 %v698
      %v913 = vpop.f32.mrf.mxu0
      %v914 = vadd.f32 %v741, %v913
      %v915 = vpop.f32.mrf.mxu0
      %v916 = vpop.f32.mrf.mxu0
      %v917 = vadd.f32 %v741, %v916
      %v918 = vpop.f32.mrf.mxu0
      %919 = vmatprep.mubr.bf16.mxu0 %v701
      %920 = vmatmul.mubr.bf16.gmra.mxu0 %v700
      %v921 = vpop.f32.mrf.mxu0
      %v922 = vadd.f32 %v741, %v921
      %v923 = vpop.f32.mrf.mxu0
      %v924 = vpop.f32.mrf.mxu0
      %v925 = vadd.f32 %v741, %v924
      %v926 = vpop.f32.mrf.mxu0
      %927 = vmatprep.mubr.bf16.mxu0 %v703
      %928 = vmatmul.mubr.bf16.gmra.mxu0 %v702
      %v929 = vpop.f32.mrf.mxu0
      %v930 = vadd.f32 %v741, %v929
      %v931 = vpop.f32.mrf.mxu0
      %v932 = vpop.f32.mrf.mxu0
      %v933 = vadd.f32 %v741, %v932
      %v934 = vpop.f32.mrf.mxu0
      %935 = vdwg.mxu0
      %v936 = vld [vmem:[%s294] sm:$0xff]
      %v937 = vld [vmem:[%s294 + $0x8] sm:$0xff]
      %v938 = vld [vmem:[%s294 + $0x10] sm:$0xff]
      %v939 = vld [vmem:[%s294 + $0x18] sm:$0xff]
      %v940 = vld [vmem:[%s294 + $0x20] sm:$0xff]
      %v941 = vld [vmem:[%s294 + $0x28] sm:$0xff]
      %v942 = vld [vmem:[%s294 + $0x30] sm:$0xff]
      %v943 = vld [vmem:[%s294 + $0x38] sm:$0xff]
      %v944 = vld [vmem:[%s294 + $0x40] sm:$0xff]
      %v945 = vld [vmem:[%s294 + $0x48] sm:$0xff]
      %v946 = vld [vmem:[%s294 + $0x50] sm:$0xff]
      %v947 = vld [vmem:[%s294 + $0x58] sm:$0xff]
      %v948 = vld [vmem:[%s294 + $0x60] sm:$0xff]
      %v949 = vld [vmem:[%s294 + $0x68] sm:$0xff]
      %v950 = vld [vmem:[%s294 + $0x70] sm:$0xff]
      %v951 = vld [vmem:[%s294 + $0x78] sm:$0xff]
      %v952 = vadd.f32 %v874, %v936
      %v953 = vadd.f32 %v877, %v937
      %v954 = vadd.f32 %v882, %v938
      %v955 = vadd.f32 %v885, %v939
      %v956 = vadd.f32 %v890, %v940
      %v957 = vadd.f32 %v893, %v941
      %v958 = vadd.f32 %v898, %v942
      %v959 = vadd.f32 %v901, %v943
      %v960 = vadd.f32 %v906, %v944
      %v961 = vadd.f32 %v909, %v945
      %v962 = vadd.f32 %v914, %v946
      %v963 = vadd.f32 %v917, %v947
      %v964 = vadd.f32 %v922, %v948
      %v965 = vadd.f32 %v925, %v949
      %v966 = vadd.f32 %v930, %v950
      %v967 = vadd.f32 %v933, %v951
      %968 = vst [vmem:[%s300] sm:$0xff] %v952
      %969 = vst [vmem:[%s300 + $0x8] sm:$0xff] %v953
      %970 = vst [vmem:[%s300 + $0x10] sm:$0xff] %v954
      %971 = vst [vmem:[%s300 + $0x18] sm:$0xff] %v955
      %972 = vst [vmem:[%s300 + $0x20] sm:$0xff] %v956
      %973 = vst [vmem:[%s300 + $0x28] sm:$0xff] %v957
      %974 = vst [vmem:[%s300 + $0x30] sm:$0xff] %v958
      %975 = vst [vmem:[%s300 + $0x38] sm:$0xff] %v959
      %976 = vst [vmem:[%s300 + $0x40] sm:$0xff] %v960
      %977 = vst [vmem:[%s300 + $0x48] sm:$0xff] %v961
      %978 = vst [vmem:[%s300 + $0x50] sm:$0xff] %v962
      %979 = vst [vmem:[%s300 + $0x58] sm:$0xff] %v963
      %980 = vst [vmem:[%s300 + $0x60] sm:$0xff] %v964
      %981 = vst [vmem:[%s300 + $0x68] sm:$0xff] %v965
      %982 = vst [vmem:[%s300 + $0x70] sm:$0xff] %v966
      %983 = vst [vmem:[%s300 + $0x78] sm:$0xff] %v967
      %s984 = smul.u32 16, %s17
      %p985 = scmp.lt.s32.totalorder %s984, 31
      %s986 = scalar_select %p985, %s984, 31
      %s987 = smul.addr %s986, 8
      %s988 = scalar_lea.vmem %s6, %s987
      // Predicated region
      $region45: #{gated_state_spaces_lm.9} parent=43 // pred_check
        %p989 = pneg %p176
      $region46: #{gated_state_spaces_lm.9} parent=43 // pred_check_branch
        %991 = sbr.rel (%p989) target = $region48
      $region47: #{gated_state_spaces_lm.9} parent=43 // pred_region
        %s992 = smul.u32 16, %s17
      $region48: #{gated_state_spaces_lm.9} parent=43 // pred_fallthru
        _
    $region44: #{gated_state_spaces_lm.9} parent=5 // pred_fallthru
      _
    %p993 = scmp.le.s32.totalorder 2, %s12
    // Predicated region
    $region49: #{gated_state_spaces_lm.9} parent=5 // pred_check
      %p994 = pneg %p993
    $region50: #{gated_state_spaces_lm.9} parent=5 // pred_check_branch
      %996 = sbr.rel (%p994) target = $region52
    $region51: #{gated_state_spaces_lm.9} parent=5 // pred_region
      %s997 = ssub.s32 %s12, 2
      // Predicated region
      $region53: #{gated_state_spaces_lm.9} parent=51 // pred_check
        %p998 = pneg %p182
      $region54: #{gated_state_spaces_lm.9} parent=51 // pred_check_branch
        %1000 = sbr.rel (%p998) target = $region56
      $region55: #{gated_state_spaces_lm.9} parent=51 // pred_region
        %s1001 = smul.u32 16, %s18
        %p1002 = scmp.lt.s32.totalorder %s1001, 31
        %s1003 = scalar_select %p1002, %s1001, 31
        %s1004 = smul.addr %s1003, 8
        %s1005 = scalar_lea.vmem %s6, %s1004
      $region56: #{gated_state_spaces_lm.9} parent=51 // pred_fallthru
        _
    $region52: #{gated_state_spaces_lm.9} parent=5 // pred_fallthru
      _
  $region6: #{gated_state_spaces_lm.9} parent=0 // loop_footer
    %s16 = sadd.s32 1, %s12
  $region7: #{gated_state_spaces_lm.9} parent=0 // loop_footer_branch
    %11 = sbr.rel target = $region3
  $region8: #{gated_state_spaces_lm.9} parent=0 // loop_exit
    _

// kernel: gated_state_spaces_lm.7
$region0: #{gated_state_spaces_lm.7}
  #allocation0 [shape = 'u32[]', space=smem, size = 0x4, offset = 0x4, fixed_abs, tag = 'smem constant byte address 0x4 - core index']
  #allocation1 [shape = 'u32[144,128]{1,0:T(1,128)}', space=vmem, size = 0x12000, scoped, tag = 'internal scratch']
  %s0 = inlined_call_operand.vmem [shape: f32[256,128], index: 0, kind: input, shape index: {}]
  %s1 = inlined_call_operand.vmem [shape: f32[1,128], index: 1, kind: input, shape index: {}]
  %s2 = inlined_call_operand.vmem [shape: f32[1,128], index: 2, kind: input, shape index: {}]
  %s3 = inlined_call_operand.vmem [shape: bf16[128,256], index: 3, kind: input, shape index: {}]
  %s4 = inlined_call_operand.vmem [shape: bf16[128,128], index: 4, kind: input, shape index: {}]
  %s5 = inlined_call_operand.vmem [shape: f32[1,128], index: 5, kind: input, shape index: {}]
  %s6 = inlined_call_operand.vmem [shape: f32[1,128], index: 6, kind: input, shape index: {}]
  %s7 = inlined_call_operand.vmem [shape: bf16[256,256], index: 7, kind: output, shape index: {0}]
  %s8 = inlined_call_operand.vmem [shape: f32[256,128], index: 8, kind: output, shape index: {1}]
  %9 = xla_tuple %s7, %s8
  %s10 = sld [smem:[#allocation0]]
  $region69: #{gated_state_spaces_lm.7} parent=0
    _
  %s12 = ssub.s32 1, %s10
  %s13 = scalar_select 0, %s12, %s10
  loop: start=0, step=1, limit=4
  $region2: #{gated_state_spaces_lm.7} parent=0 // loop_pre_header
    _
  $region3: #{gated_state_spaces_lm.7} parent=0 // loop_header
    %s15 = sphi 0, %s19
    %p16 = scmp.ge.s32.totalorder %s15, 4
    %s25 = sphi 0, %s27
    %s28 = sphi 0, %s25
    %s29 = sphi 0, %s28
    %s45 = sphi 0, %s29
    %s49 = sphi 0, %s49
    %s51 = sphi 0, %s49
    %s52 = sphi 0, %s51
    %s66 = sphi 0, %s52
    %s70 = sphi 0, %s70
    %s72 = sphi 0, %s70
    %s73 = sphi 0, %s72
    %s87 = sphi 0, %s73
    %s91 = sphi 0, %s91
    %s93 = sphi 0, %s91
    %s94 = sphi 0, %s93
    %s108 = sphi 0, %s94
    %s112 = sphi 0, %s112
    %s114 = sphi 0, %s112
    %s115 = sphi 0, %s114
    %s129 = sphi 0, %s115
    %s133 = sphi 0, %s133
    %s135 = sphi 0, %s133
    %s136 = sphi 0, %s135
    %s150 = sphi 0, %s136
    %s154 = sphi 0, %s154
    %s156 = sphi 0, %s154
    %s157 = sphi 0, %s156
    %s171 = sphi 0, %s157
    %s177 = sphi 0, %s179
    %s180 = sphi 0, %s177
    %s181 = sphi 0, %s180
    %s197 = sphi 0, %s181
    %s203 = sphi 0, %s205
    %s206 = sphi 0, %s203
    %s207 = sphi 0, %s206
    %s223 = sphi 0, %s207
  $region4: #{gated_state_spaces_lm.7} parent=0 // loop_header_branch
    %18 = sbr.rel (%p16) target = $region8
  $region5: #{gated_state_spaces_lm.7} parent=0 // loop_body
    %s20 = ssub.s32 %s15, 1
    %s21 = ssub.s32 %s15, 2
    %s22 = sadd.s32 %s15, 1
    %s23 = ssub.s32 %s15, %s22
    %p24 = scmp.eq.s32.totalorder %s23, 0
    %s26 = sadd.s32 %s25, 1
    %s27 = scalar_select %p24, %s25, %s26
    %p30 = pneg %p24
    %p31 = scmp.eq.s32.totalorder %s15, 1
    %p32 = por %p30, %p31
    %p33 = scmp.ne.s32.totalorder %s25, %s28
    %p34 = scmp.eq.s32.totalorder %s15, 0
    %p35 = por %p33, %p34
    %p36 = scmp.ne.s32.totalorder %s25, %s28
    %p37 = scmp.eq.s32.totalorder %s20, 1
    %p38 = por %p36, %p37
    %p39 = scmp.ne.s32.totalorder %s28, %s29
    %p40 = scmp.eq.s32.totalorder %s20, 0
    %p41 = por %p39, %p40
    %p42 = scmp.ne.s32.totalorder %s28, %s29
    %p43 = scmp.eq.s32.totalorder %s21, 1
    %p44 = por %p42, %p43
    %p46 = scmp.ne.s32.totalorder %s29, %s45
    %p47 = scmp.eq.s32.totalorder %s21, 0
    %p48 = por %p46, %p47
    %s50 = sadd.s32 %s49, 1
    %p53 = scmp.eq.s32.totalorder %s15, 1
    %p54 = scmp.ne.s32.totalorder %s49, %s51
    %p55 = scmp.eq.s32.totalorder %s15, 0
    %p56 = por %p54, %p55
    %p57 = scmp.ne.s32.totalorder %s49, %s51
    %p58 = scmp.eq.s32.totalorder %s20, 1
    %p59 = por %p57, %p58
    %p60 = scmp.ne.s32.totalorder %s51, %s52
    %p61 = scmp.eq.s32.totalorder %s20, 0
    %p62 = por %p60, %p61
    %p63 = scmp.ne.s32.totalorder %s51, %s52
    %p64 = scmp.eq.s32.totalorder %s21, 1
    %p65 = por %p63, %p64
    %p67 = scmp.ne.s32.totalorder %s52, %s66
    %p68 = scmp.eq.s32.totalorder %s21, 0
    %p69 = por %p67, %p68
    %s71 = sadd.s32 %s70, 1
    %p74 = scmp.eq.s32.totalorder %s15, 1
    %p75 = scmp.ne.s32.totalorder %s70, %s72
    %p76 = scmp.eq.s32.totalorder %s15, 0
    %p77 = por %p75, %p76
    %p78 = scmp.ne.s32.totalorder %s70, %s72
    %p79 = scmp.eq.s32.totalorder %s20, 1
    %p80 = por %p78, %p79
    %p81 = scmp.ne.s32.totalorder %s72, %s73
    %p82 = scmp.eq.s32.totalorder %s20, 0
    %p83 = por %p81, %p82
    %p84 = scmp.ne.s32.totalorder %s72, %s73
    %p85 = scmp.eq.s32.totalorder %s21, 1
    %p86 = por %p84, %p85
    %p88 = scmp.ne.s32.totalorder %s73, %s87
    %p89 = scmp.eq.s32.totalorder %s21, 0
    %p90 = por %p88, %p89
    %s92 = sadd.s32 %s91, 1
    %p95 = scmp.eq.s32.totalorder %s15, 1
    %p96 = scmp.ne.s32.totalorder %s91, %s93
    %p97 = scmp.eq.s32.totalorder %s15, 0
    %p98 = por %p96, %p97
    %p99 = scmp.ne.s32.totalorder %s91, %s93
    %p100 = scmp.eq.s32.totalorder %s20, 1
    %p101 = por %p99, %p100
    %p102 = scmp.ne.s32.totalorder %s93, %s94
    %p103 = scmp.eq.s32.totalorder %s20, 0
    %p104 = por %p102, %p103
    %p105 = scmp.ne.s32.totalorder %s93, %s94
    %p106 = scmp.eq.s32.totalorder %s21, 1
    %p107 = por %p105, %p106
    %p109 = scmp.ne.s32.totalorder %s94, %s108
    %p110 = scmp.eq.s32.totalorder %s21, 0
    %p111 = por %p109, %p110
    %s113 = sadd.s32 %s112, 1
    %p116 = scmp.eq.s32.totalorder %s15, 1
    %p117 = scmp.ne.s32.totalorder %s112, %s114
    %p118 = scmp.eq.s32.totalorder %s15, 0
    %p119 = por %p117, %p118
    %p120 = scmp.ne.s32.totalorder %s112, %s114
    %p121 = scmp.eq.s32.totalorder %s20, 1
    %p122 = por %p120, %p121
    %p123 = scmp.ne.s32.totalorder %s114, %s115
    %p124 = scmp.eq.s32.totalorder %s20, 0
    %p125 = por %p123, %p124
    %p126 = scmp.ne.s32.totalorder %s114, %s115
    %p127 = scmp.eq.s32.totalorder %s21, 1
    %p128 = por %p126, %p127
    %p130 = scmp.ne.s32.totalorder %s115, %s129
    %p131 = scmp.eq.s32.totalorder %s21, 0
    %p132 = por %p130, %p131
    %s134 = sadd.s32 %s133, 1
    %p137 = scmp.eq.s32.totalorder %s15, 1
    %p138 = scmp.ne.s32.totalorder %s133, %s135
    %p139 = scmp.eq.s32.totalorder %s15, 0
    %p140 = por %p138, %p139
    %p141 = scmp.ne.s32.totalorder %s133, %s135
    %p142 = scmp.eq.s32.totalorder %s20, 1
    %p143 = por %p141, %p142
    %p144 = scmp.ne.s32.totalorder %s135, %s136
    %p145 = scmp.eq.s32.totalorder %s20, 0
    %p146 = por %p144, %p145
    %p147 = scmp.ne.s32.totalorder %s135, %s136
    %p148 = scmp.eq.s32.totalorder %s21, 1
    %p149 = por %p147, %p148
    %p151 = scmp.ne.s32.totalorder %s136, %s150
    %p152 = scmp.eq.s32.totalorder %s21, 0
    %p153 = por %p151, %p152
    %s155 = sadd.s32 %s154, 1
    %p158 = scmp.eq.s32.totalorder %s15, 1
    %p159 = scmp.ne.s32.totalorder %s154, %s156
    %p160 = scmp.eq.s32.totalorder %s15, 0
    %p161 = por %p159, %p160
    %p162 = scmp.ne.s32.totalorder %s154, %s156
    %p163 = scmp.eq.s32.totalorder %s20, 1
    %p164 = por %p162, %p163
    %p165 = scmp.ne.s32.totalorder %s156, %s157
    %p166 = scmp.eq.s32.totalorder %s20, 0
    %p167 = por %p165, %p166
    %p168 = scmp.ne.s32.totalorder %s156, %s157
    %p169 = scmp.eq.s32.totalorder %s21, 1
    %p170 = por %p168, %p169
    %p172 = scmp.ne.s32.totalorder %s157, %s171
    %p173 = scmp.eq.s32.totalorder %s21, 0
    %p174 = por %p172, %p173
    %s175 = ssub.s32 %s15, %s22
    %p176 = scmp.eq.s32.totalorder %s175, 0
    %s178 = sadd.s32 %s177, 1
    %s179 = scalar_select %p176, %s177, %s178
    %p182 = pneg %p176
    %p183 = scmp.eq.s32.totalorder %s15, 1
    %p184 = por %p182, %p183
    %p185 = scmp.ne.s32.totalorder %s177, %s180
    %p186 = scmp.eq.s32.totalorder %s15, 0
    %p187 = por %p185, %p186
    %p188 = scmp.ne.s32.totalorder %s177, %s180
    %p189 = scmp.eq.s32.totalorder %s20, 1
    %p190 = por %p188, %p189
    %p191 = scmp.ne.s32.totalorder %s180, %s181
    %p192 = scmp.eq.s32.totalorder %s20, 0
    %p193 = por %p191, %p192
    %p194 = scmp.ne.s32.totalorder %s180, %s181
    %p195 = scmp.eq.s32.totalorder %s21, 1
    %p196 = por %p194, %p195
    %p198 = scmp.ne.s32.totalorder %s181, %s197
    %p199 = scmp.eq.s32.totalorder %s21, 0
    %p200 = por %p198, %p199
    %s201 = ssub.s32 %s15, %s22
    %p202 = scmp.eq.s32.totalorder %s201, 0
    %s204 = sadd.s32 %s203, 1
    %s205 = scalar_select %p202, %s203, %s204
    %p208 = pneg %p202
    %p209 = scmp.eq.s32.totalorder %s15, 1
    %p210 = por %p208, %p209
    %p211 = scmp.ne.s32.totalorder %s203, %s206
    %p212 = scmp.eq.s32.totalorder %s15, 0
    %p213 = por %p211, %p212
    %p214 = scmp.ne.s32.totalorder %s203, %s206
    %p215 = scmp.eq.s32.totalorder %s20, 1
    %p216 = por %p214, %p215
    %p217 = scmp.ne.s32.totalorder %s206, %s207
    %p218 = scmp.eq.s32.totalorder %s20, 0
    %p219 = por %p217, %p218
    %p220 = scmp.ne.s32.totalorder %s206, %s207
    %p221 = scmp.eq.s32.totalorder %s21, 1
    %p222 = por %p220, %p221
    %p224 = scmp.ne.s32.totalorder %s207, %s223
    %p225 = scmp.eq.s32.totalorder %s21, 0
    %p226 = por %p224, %p225
    %p227 = scmp.le.s32.totalorder 1, %s15
    %p228 = scmp.lt.s32.totalorder %s15, 3
    %p229 = pnand %p227, %p228
    %p230 = pneg %p229
    // Predicated region
    $region9: #{gated_state_spaces_lm.7} parent=5 // pred_check
      _
    $region10: #{gated_state_spaces_lm.7} parent=5 // pred_check_branch
      %232 = sbr.rel (%p229) target = $region12
    $region11: #{gated_state_spaces_lm.7} parent=5 // pred_region
      %s233 = ssub.s32 %s15, 1
      // Predicated region
      $region13: #{gated_state_spaces_lm.7} parent=11 // pred_check
        %p234 = pneg %p62
      $region14: #{gated_state_spaces_lm.7} parent=11 // pred_check_branch
        %236 = sbr.rel (%p234) target = $region16
      $region15: #{gated_state_spaces_lm.7} parent=11 // pred_region
        _
      $region16: #{gated_state_spaces_lm.7} parent=11 // pred_fallthru
        _
      // Predicated region
      $region17: #{gated_state_spaces_lm.7} parent=11 // pred_check
        %p237 = pneg %p83
      $region18: #{gated_state_spaces_lm.7} parent=11 // pred_check_branch
        %239 = sbr.rel (%p237) target = $region20
      $region19: #{gated_state_spaces_lm.7} parent=11 // pred_region
        _
      $region20: #{gated_state_spaces_lm.7} parent=11 // pred_fallthru
        _
      // Predicated region
      $region21: #{gated_state_spaces_lm.7} parent=11 // pred_check
        %p240 = pneg %p104
      $region22: #{gated_state_spaces_lm.7} parent=11 // pred_check_branch
        %242 = sbr.rel (%p240) target = $region24
      $region23: #{gated_state_spaces_lm.7} parent=11 // pred_region
        _
      $region24: #{gated_state_spaces_lm.7} parent=11 // pred_fallthru
        _
      // Predicated region
      $region25: #{gated_state_spaces_lm.7} parent=11 // pred_check
        %p243 = pneg %p125
      $region26: #{gated_state_spaces_lm.7} parent=11 // pred_check_branch
        %245 = sbr.rel (%p243) target = $region28
      $region27: #{gated_state_spaces_lm.7} parent=11 // pred_region
        _
      $region28: #{gated_state_spaces_lm.7} parent=11 // pred_fallthru
        _
      // Predicated region
      $region29: #{gated_state_spaces_lm.7} parent=11 // pred_check
        %p246 = pneg %p146
      $region30: #{gated_state_spaces_lm.7} parent=11 // pred_check_branch
        %248 = sbr.rel (%p246) target = $region32
      $region31: #{gated_state_spaces_lm.7} parent=11 // pred_region
        _
      $region32: #{gated_state_spaces_lm.7} parent=11 // pred_fallthru
        _
      // Predicated region
      $region33: #{gated_state_spaces_lm.7} parent=11 // pred_check
        %p249 = pneg %p167
      $region34: #{gated_state_spaces_lm.7} parent=11 // pred_check_branch
        %251 = sbr.rel (%p249) target = $region36
      $region35: #{gated_state_spaces_lm.7} parent=11 // pred_region
        _
      $region36: #{gated_state_spaces_lm.7} parent=11 // pred_fallthru
        _
    $region12: #{gated_state_spaces_lm.7} parent=5 // pred_fallthru
      _
    %p252 = scmp.lt.s32.totalorder %s15, 2
    // Predicated region
    $region37: #{gated_state_spaces_lm.7} parent=5 // pred_check
      %p253 = pneg %p252
    $region38: #{gated_state_spaces_lm.7} parent=5 // pred_check_branch
      %255 = sbr.rel (%p253) target = $region40
    $region39: #{gated_state_spaces_lm.7} parent=5 // pred_region
      // Predicated region
      $region41: #{gated_state_spaces_lm.7} parent=39 // pred_check
        %p256 = pneg %p35
      $region42: #{gated_state_spaces_lm.7} parent=39 // pred_check_branch
        %258 = sbr.rel (%p256) target = $region44
      $region43: #{gated_state_spaces_lm.7} parent=39 // pred_region
        %s259 = smul.u32 16, %s15
        %p260 = scmp.lt.s32.totalorder %s259, 31
        %s261 = scalar_select %p260, %s259, 31
        %s262 = smul.addr %s261, 8
        %s263 = scalar_lea.vmem %s0, %s262
        %s264 = smul.u32 16, %s15
      $region44: #{gated_state_spaces_lm.7} parent=39 // pred_fallthru
        _
    $region40: #{gated_state_spaces_lm.7} parent=5 // pred_fallthru
      _
    %p265 = scmp.le.s32.totalorder 1, %s15
    %p266 = scmp.lt.s32.totalorder %s15, 3
    %p267 = pnand %p265, %p266
    %p268 = pneg %p267
    // Predicated region
    $region45: #{gated_state_spaces_lm.7} parent=5 // pred_check
      _
    $region46: #{gated_state_spaces_lm.7} parent=5 // pred_check_branch
      %270 = sbr.rel (%p267) target = $region48
    $region47: #{gated_state_spaces_lm.7} parent=5 // pred_region
      %s271 = ssub.s32 %s15, 1
      %s272 = smul.u32 16, %s20
      %p273 = scmp.lt.s32.totalorder %s272, 31
      %s274 = scalar_select %p273, %s272, 31
      %s275 = smul.addr %s274, 8
      %s276 = scalar_lea.vmem %s0, %s275
      %p277 = pneg %p41
      %p278 = pneg %p38
      %p279 = pneg %p62
      %p280 = pneg %p59
      %p281 = pneg %p83
      %p282 = pneg %p80
      %p283 = pneg %p104
      %p284 = pneg %p101
      %p285 = pneg %p125
      %p286 = pneg %p122
      %p287 = pneg %p146
      %p288 = pneg %p143
      %p289 = pneg %p167
      %p290 = pneg %p164
      %p291 = pneg %p193
      %p292 = pneg %p190
      %s293 = smul.u32 16, %s20
      %p294 = scmp.lt.s32.totalorder %s293, 31
      %s295 = scalar_select %p294, %s293, 31
      %s296 = smul.addr %s295, 2
      %s297 = smul.addr %s296, 4
      %s298 = scalar_lea.vmem %s7, %s297
      %p299 = pneg %p219
      %p300 = pneg %p216
      %s301 = smul.u32 16, %s20
      %p302 = scmp.lt.s32.totalorder %s301, 31
      %s303 = scalar_select %p302, %s301, 31
      %s304 = smul.addr %s303, 8
      %s305 = scalar_lea.vmem %s8, %s304
      %s306 = smul.u32 16, %s20
      %p307 = scmp.lt.s32.totalorder %s306, 31
      %s308 = scalar_select %p307, %s306, 31
      %s309 = smul.addr %s308, 8
      %s310 = scalar_lea.vmem %s0, %s309
      %s311 = smul.u32 16, %s20
      %s312 = smul.u32 16, %s20
      %p313 = scmp.lt.s32.totalorder %s312, 31
      %s314 = scalar_select %p313, %s312, 31
      %s315 = smul.addr %s314, 2
      %s316 = smul.addr %s315, 4
      %s317 = scalar_lea.vmem %s7, %s316
      %s318 = smul.u32 16, %s20
      %s319 = smul.u32 16, %s20
      %p320 = scmp.lt.s32.totalorder %s319, 31
      %s321 = scalar_select %p320, %s319, 31
      %s322 = smul.addr %s321, 8
      %s323 = scalar_lea.vmem %s8, %s322
      %s324 = smul.u32 16, %s20
      %v326 = vld [vmem:[%s310] sm:$0xff]
      %v327 = vld [vmem:[%s310 + $0x8] sm:$0xff]
      %v328 = vld [vmem:[%s310 + $0x10] sm:$0xff]
      %v329 = vld [vmem:[%s310 + $0x18] sm:$0xff]
      %v330 = vld [vmem:[%s310 + $0x20] sm:$0xff]
      %v331 = vld [vmem:[%s310 + $0x28] sm:$0xff]
      %v332 = vld [vmem:[%s310 + $0x30] sm:$0xff]
      %v333 = vld [vmem:[%s310 + $0x38] sm:$0xff]
      %v334 = vld [vmem:[%s310 + $0x40] sm:$0xff]
      %v335 = vld [vmem:[%s310 + $0x48] sm:$0xff]
      %v336 = vld [vmem:[%s310 + $0x50] sm:$0xff]
      %v337 = vld [vmem:[%s310 + $0x58] sm:$0xff]
      %v338 = vld [vmem:[%s310 + $0x60] sm:$0xff]
      %v339 = vld [vmem:[%s310 + $0x68] sm:$0xff]
      %v340 = vld [vmem:[%s310 + $0x70] sm:$0xff]
      %v341 = vld [vmem:[%s310 + $0x78] sm:$0xff]
      %v342 = vld [vmem:[%s1] sm:$0x1]
      %v343 = vld [vmem:[%s2] sm:$0x1]
      %344 = vadd.xlane.f32.xlu0 %v326
      %v345 = vpop.xlane.xlu0 %344
      %346 = vadd.xlane.f32.xlu0 %v327
      %v347 = vpop.xlane.xlu0 %346
      %348 = vadd.xlane.f32.xlu0 %v328
      %v349 = vpop.xlane.xlu0 %348
      %350 = vadd.xlane.f32.xlu0 %v329
      %v351 = vpop.xlane.xlu0 %350
      %352 = vadd.xlane.f32.xlu0 %v330
      %v353 = vpop.xlane.xlu0 %352
      %354 = vadd.xlane.f32.xlu0 %v331
      %v355 = vpop.xlane.xlu0 %354
      %356 = vadd.xlane.f32.xlu0 %v332
      %v357 = vpop.xlane.xlu0 %356
      %358 = vadd.xlane.f32.xlu0 %v333
      %v359 = vpop.xlane.xlu0 %358
      %360 = vadd.xlane.f32.xlu0 %v334
      %v361 = vpop.xlane.xlu0 %360
      %362 = vadd.xlane.f32.xlu0 %v335
      %v363 = vpop.xlane.xlu0 %362
      %364 = vadd.xlane.f32.xlu0 %v336
      %v365 = vpop.xlane.xlu0 %364
      %366 = vadd.xlane.f32.xlu0 %v337
      %v367 = vpop.xlane.xlu0 %366
      %368 = vadd.xlane.f32.xlu0 %v338
      %v369 = vpop.xlane.xlu0 %368
      %370 = vadd.xlane.f32.xlu0 %v339
      %v371 = vpop.xlane.xlu0 %370
      %372 = vadd.xlane.f32.xlu0 %v340
      %v373 = vpop.xlane.xlu0 %372
      %374 = vadd.xlane.f32.xlu0 %v341
      %v375 = vpop.xlane.xlu0 %374
      %v376 = vrcp.pop 128.0
      %v377 = vmul.f32 %v345, %v376
      %v378 = vmul.f32 %v347, %v376
      %v379 = vmul.f32 %v349, %v376
      %v380 = vmul.f32 %v351, %v376
      %v381 = vmul.f32 %v353, %v376
      %v382 = vmul.f32 %v355, %v376
      %v383 = vmul.f32 %v357, %v376
      %v384 = vmul.f32 %v359, %v376
      %v385 = vmul.f32 %v361, %v376
      %v386 = vmul.f32 %v363, %v376
      %v387 = vmul.f32 %v365, %v376
      %v388 = vmul.f32 %v367, %v376
      %v389 = vmul.f32 %v369, %v376
      %v390 = vmul.f32 %v371, %v376
      %v391 = vmul.f32 %v373, %v376
      %v392 = vmul.f32 %v375, %v376
      %v393 = vsub.f32 %v326, %v377
      %v394 = vsub.f32 %v327, %v378
      %v395 = vsub.f32 %v328, %v379
      %v396 = vsub.f32 %v329, %v380
      %v397 = vsub.f32 %v330, %v381
      %v398 = vsub.f32 %v331, %v382
      %v399 = vsub.f32 %v332, %v383
      %v400 = vsub.f32 %v333, %v384
      %v401 = vsub.f32 %v334, %v385
      %v402 = vsub.f32 %v335, %v386
      %v403 = vsub.f32 %v336, %v387
      %v404 = vsub.f32 %v337, %v388
      %v405 = vsub.f32 %v338, %v389
      %v406 = vsub.f32 %v339, %v390
      %v407 = vsub.f32 %v340, %v391
      %v408 = vsub.f32 %v341, %v392
      %v409 = vmul.f32 %v393, %v393
      %v410 = vmul.f32 %v394, %v394
      %v411 = vmul.f32 %v395, %v395
      %v412 = vmul.f32 %v396, %v396
      %v413 = vmul.f32 %v397, %v397
      %v414 = vmul.f32 %v398, %v398
      %v415 = vmul.f32 %v399, %v399
      %v416 = vmul.f32 %v400, %v400
      %v417 = vmul.f32 %v401, %v401
      %v418 = vmul.f32 %v402, %v402
      %v419 = vmul.f32 %v403, %v403
      %v420 = vmul.f32 %v404, %v404
      %v421 = vmul.f32 %v405, %v405
      %v422 = vmul.f32 %v406, %v406
      %v423 = vmul.f32 %v407, %v407
      %v424 = vmul.f32 %v408, %v408
      %425 = vadd.xlane.f32.xlu0 %v409
      %v426 = vpop.xlane.xlu0 %425
      %427 = vadd.xlane.f32.xlu0 %v410
      %v428 = vpop.xlane.xlu0 %427
      %429 = vadd.xlane.f32.xlu0 %v411
      %v430 = vpop.xlane.xlu0 %429
      %431 = vadd.xlane.f32.xlu0 %v412
      %v432 = vpop.xlane.xlu0 %431
      %433 = vadd.xlane.f32.xlu0 %v413
      %v434 = vpop.xlane.xlu0 %433
      %435 = vadd.xlane.f32.xlu0 %v414
      %v436 = vpop.xlane.xlu0 %435
      %437 = vadd.xlane.f32.xlu0 %v415
      %v438 = vpop.xlane.xlu0 %437
      %439 = vadd.xlane.f32.xlu0 %v416
      %v440 = vpop.xlane.xlu0 %439
      %441 = vadd.xlane.f32.xlu0 %v417
      %v442 = vpop.xlane.xlu0 %441
      %443 = vadd.xlane.f32.xlu0 %v418
      %v444 = vpop.xlane.xlu0 %443
      %445 = vadd.xlane.f32.xlu0 %v419
      %v446 = vpop.xlane.xlu0 %445
      %447 = vadd.xlane.f32.xlu0 %v420
      %v448 = vpop.xlane.xlu0 %447
      %449 = vadd.xlane.f32.xlu0 %v421
      %v450 = vpop.xlane.xlu0 %449
      %451 = vadd.xlane.f32.xlu0 %v422
      %v452 = vpop.xlane.xlu0 %451
      %453 = vadd.xlane.f32.xlu0 %v423
      %v454 = vpop.xlane.xlu0 %453
      %455 = vadd.xlane.f32.xlu0 %v424
      %v456 = vpop.xlane.xlu0 %455
      %v457 = vmul.f32 %v426, %v376
      %v458 = vmul.f32 %v428, %v376
      %v459 = vmul.f32 %v430, %v376
      %v460 = vmul.f32 %v432, %v376
      %v461 = vmul.f32 %v434, %v376
      %v462 = vmul.f32 %v436, %v376
      %v463 = vmul.f32 %v438, %v376
      %v464 = vmul.f32 %v440, %v376
      %v465 = vmul.f32 %v442, %v376
      %v466 = vmul.f32 %v444, %v376
      %v467 = vmul.f32 %v446, %v376
      %v468 = vmul.f32 %v448, %v376
      %v469 = vmul.f32 %v450, %v376
      %v470 = vmul.f32 %v452, %v376
      %v471 = vmul.f32 %v454, %v376
      %v472 = vmul.f32 %v456, %v376
      %v473 = vadd.f32 %v457, 1e-05
      %v474 = vadd.f32 %v458, 1e-05
      %v475 = vadd.f32 %v459, 1e-05
      %v476 = vadd.f32 %v460, 1e-05
      %v477 = vadd.f32 %v461, 1e-05
      %v478 = vadd.f32 %v462, 1e-05
      %v479 = vadd.f32 %v463, 1e-05
      %v480 = vadd.f32 %v464, 1e-05
      %v481 = vadd.f32 %v465, 1e-05
      %v482 = vadd.f32 %v466, 1e-05
      %v483 = vadd.f32 %v467, 1e-05
      %v484 = vadd.f32 %v468, 1e-05
      %v485 = vadd.f32 %v469, 1e-05
      %v486 = vadd.f32 %v470, 1e-05
      %v487 = vadd.f32 %v471, 1e-05
      %v488 = vadd.f32 %v472, 1e-05
      %v489 = vrsqrt.pop %v473
      %v490 = vrsqrt.pop %v474
      %v491 = vrsqrt.pop %v475
      %v492 = vrsqrt.pop %v476
      %v493 = vrsqrt.pop %v477
      %v494 = vrsqrt.pop %v478
      %v495 = vrsqrt.pop %v479
      %v496 = vrsqrt.pop %v480
      %v497 = vrsqrt.pop %v481
      %v498 = vrsqrt.pop %v482
      %v499 = vrsqrt.pop %v483
      %v500 = vrsqrt.pop %v484
      %v501 = vrsqrt.pop %v485
      %v502 = vrsqrt.pop %v486
      %v503 = vrsqrt.pop %v487
      %v504 = vrsqrt.pop %v488
      %v505 = vmul.f32 %v393, %v489
      %v506 = vmul.f32 %v394, %v490
      %v507 = vmul.f32 %v395, %v491
      %v508 = vmul.f32 %v396, %v492
      %v509 = vmul.f32 %v397, %v493
      %v510 = vmul.f32 %v398, %v494
      %v511 = vmul.f32 %v399, %v495
      %v512 = vmul.f32 %v400, %v496
      %v513 = vmul.f32 %v401, %v497
      %v514 = vmul.f32 %v402, %v498
      %v515 = vmul.f32 %v403, %v499
      %v516 = vmul.f32 %v404, %v500
      %v517 = vmul.f32 %v405, %v501
      %v518 = vmul.f32 %v406, %v502
      %v519 = vmul.f32 %v407, %v503
      %v520 = vmul.f32 %v408, %v504
      %v522 = vlaneseq
      %v523 = vshrl.u32 %v522, 7
      %v524 = vsub.s32 0, %v523
      %v525 = vrot.slane %v342, %v524
      %v527 = vmul.f32 %v505, %v525
      %v528 = vmul.f32 %v506, %v525
      %v529 = vmul.f32 %v507, %v525
      %v530 = vmul.f32 %v508, %v525
      %v531 = vmul.f32 %v509, %v525
      %v532 = vmul.f32 %v510, %v525
      %v533 = vmul.f32 %v511, %v525
      %v534 = vmul.f32 %v512, %v525
      %v535 = vmul.f32 %v513, %v525
      %v536 = vmul.f32 %v514, %v525
      %v537 = vmul.f32 %v515, %v525
      %v538 = vmul.f32 %v516, %v525
      %v539 = vmul.f32 %v517, %v525
      %v540 = vmul.f32 %v518, %v525
      %v541 = vmul.f32 %v519, %v525
      %v542 = vmul.f32 %v520, %v525
      %v544 = vlaneseq
      %v545 = vshrl.u32 %v544, 7
      %v546 = vsub.s32 0, %v545
      %v547 = vrot.slane %v343, %v546
      %v549 = vadd.f32 %v527, %v547
      %v550 = vadd.f32 %v528, %v547
      %v551 = vadd.f32 %v529, %v547
      %v552 = vadd.f32 %v530, %v547
      %v553 = vadd.f32 %v531, %v547
      %v554 = vadd.f32 %v532, %v547
      %v555 = vadd.f32 %v533, %v547
      %v556 = vadd.f32 %v534, %v547
      %v557 = vadd.f32 %v535, %v547
      %v558 = vadd.f32 %v536, %v547
      %v559 = vadd.f32 %v537, %v547
      %v560 = vadd.f32 %v538, %v547
      %v561 = vadd.f32 %v539, %v547
      %v562 = vadd.f32 %v540, %v547
      %v563 = vadd.f32 %v541, %v547
      %v564 = vadd.f32 %v542, %v547
      %v565 = vpack.c.bf16 %v550, %v549
      %v566 = vpack.c.bf16 %v552, %v551
      %v567 = vpack.c.bf16 %v554, %v553
      %v568 = vpack.c.bf16 %v556, %v555
      %v569 = vpack.c.bf16 %v558, %v557
      %v570 = vpack.c.bf16 %v560, %v559
      %v571 = vpack.c.bf16 %v562, %v561
      %v572 = vpack.c.bf16 %v564, %v563
      %v573 = vld [vmem:[%s3] sm:$0xff]
      %v574 = vld [vmem:[%s3 + $0x8] sm:$0xff]
      %v575 = vld [vmem:[%s3 + $0x10] sm:$0xff]
      %v576 = vld [vmem:[%s3 + $0x18] sm:$0xff]
      %v577 = vld [vmem:[%s3 + $0x20] sm:$0xff]
      %v578 = vld [vmem:[%s3 + $0x28] sm:$0xff]
      %v579 = vld [vmem:[%s3 + $0x30] sm:$0xff]
      %v580 = vld [vmem:[%s3 + $0x38] sm:$0xff]
      %v581 = vld [vmem:[%s3 + $0x40] sm:$0xff]
      %v582 = vld [vmem:[%s3 + $0x48] sm:$0xff]
      %v583 = vld [vmem:[%s3 + $0x50] sm:$0xff]
      %v584 = vld [vmem:[%s3 + $0x58] sm:$0xff]
      %v585 = vld [vmem:[%s3 + $0x60] sm:$0xff]
      %v586 = vld [vmem:[%s3 + $0x68] sm:$0xff]
      %v587 = vld [vmem:[%s3 + $0x70] sm:$0xff]
      %v588 = vld [vmem:[%s3 + $0x78] sm:$0xff]
      %v605 = vunpack.c.l.b16 %v573
      %v606 = vunpack.c.h.b16 %v573
      %v607 = vunpack.c.l.b16 %v574
      %v608 = vunpack.c.h.b16 %v574
      %v609 = vunpack.c.l.b16 %v575
      %v610 = vunpack.c.h.b16 %v575
      %v611 = vunpack.c.l.b16 %v576
      %v612 = vunpack.c.h.b16 %v576
      %v613 = vunpack.c.l.b16 %v577
      %v614 = vunpack.c.h.b16 %v577
      %v615 = vunpack.c.l.b16 %v578
      %v616 = vunpack.c.h.b16 %v578
      %v617 = vunpack.c.l.b16 %v579
      %v618 = vunpack.c.h.b16 %v579
      %v619 = vunpack.c.l.b16 %v580
      %v620 = vunpack.c.h.b16 %v580
      %v621 = vunpack.c.l.b16 %v581
      %v622 = vunpack.c.h.b16 %v581
      %v623 = vunpack.c.l.b16 %v582
      %v624 = vunpack.c.h.b16 %v582
      %v625 = vunpack.c.l.b16 %v583
      %v626 = vunpack.c.h.b16 %v583
      %v627 = vunpack.c.l.b16 %v584
      %v628 = vunpack.c.h.b16 %v584
      %v629 = vunpack.c.l.b16 %v585
      %v630 = vunpack.c.h.b16 %v585
      %v631 = vunpack.c.l.b16 %v586
      %v632 = vunpack.c.h.b16 %v586
      %v633 = vunpack.c.l.b16 %v587
      %v634 = vunpack.c.h.b16 %v587
      %v635 = vunpack.c.l.b16 %v588
      %v636 = vunpack.c.h.b16 %v588
      %v637 = vpack.c.b16 %v607, %v605
      %v638 = vpack.c.b16 %v608, %v606
      %v639 = vpack.c.b16 %v611, %v609
      %v640 = vpack.c.b16 %v612, %v610
      %v641 = vpack.c.b16 %v615, %v613
      %v642 = vpack.c.b16 %v616, %v614
      %v643 = vpack.c.b16 %v619, %v617
      %v644 = vpack.c.b16 %v620, %v618
      %v645 = vpack.c.b16 %v623, %v621
      %v646 = vpack.c.b16 %v624, %v622
      %v647 = vpack.c.b16 %v627, %v625
      %v648 = vpack.c.b16 %v628, %v626
      %v649 = vpack.c.b16 %v631, %v629
      %v650 = vpack.c.b16 %v632, %v630
      %v651 = vpack.c.b16 %v635, %v633
      %v652 = vpack.c.b16 %v636, %v634
      %669 = vmatprep.subr.bf16.mxu0 %v652
      %670 = vmatpush1.bf16.msra.mxu0 %v651
      %671 = vmatprep.subr.bf16.mxu0 %v650
      %672 = vmatpush1.bf16.msra.mxu0 %v649
      %673 = vmatprep.subr.bf16.mxu0 %v648
      %674 = vmatpush1.bf16.msra.mxu0 %v647
      %675 = vmatprep.subr.bf16.mxu0 %v646
      %676 = vmatpush1.bf16.msra.mxu0 %v645
      %677 = vmatprep.subr.bf16.mxu0 %v644
      %678 = vmatpush1.bf16.msra.mxu0 %v643
      %679 = vmatprep.subr.bf16.mxu0 %v642
      %680 = vmatpush1.bf16.msra.mxu0 %v641
      %681 = vmatprep.subr.bf16.mxu0 %v640
      %682 = vmatpush1.bf16.msra.mxu0 %v639
      %683 = vmatprep.subr.bf16.mxu0 %v638
      %684 = vmatpush1.bf16.msra.mxu0 %v637
      %685 = vmatprep.subr.bf16.mxu0 0
      %686 = vmatpush2.bf16.msra.mxu0 0
      %687 = vmatprep.subr.bf16.mxu0 0
      %688 = vmatpush2.bf16.msra.mxu0 0
      %689 = vmatprep.subr.bf16.mxu0 0
      %690 = vmatpush2.bf16.msra.mxu0 0
      %691 = vmatprep.subr.bf16.mxu0 0
      %692 = vmatpush2.bf16.msra.mxu0 0
      %693 = vmatprep.subr.bf16.mxu0 0
      %694 = vmatpush2.bf16.msra.mxu0 0
      %695 = vmatprep.subr.bf16.mxu0 0
      %696 = vmatpush2.bf16.msra.mxu0 0
      %697 = vmatprep.subr.bf16.mxu0 0
      %698 = vmatpush2.bf16.msra.mxu0 0
      %699 = vmatprep.subr.bf16.mxu0 0
      %700 = vmatpush2.bf16.msra.mxu0 0
      %701 = vmatprep.mubr.bf16.mxu0 0
      %702 = vmatmul.mubr.bf16.gmra.mxu0 %v565
      %v703 = vpop.f32.mrf.mxu0
      %v704 = vadd.f32 0.0, %v703
      %v705 = vpop.f32.mrf.mxu0
      %v706 = vadd.f32 0.0, %v705
      %v707 = vpop.f32.mrf.mxu0
      %v708 = vadd.f32 0.0, %v707
      %v709 = vpop.f32.mrf.mxu0
      %v710 = vadd.f32 0.0, %v709
      %711 = vmatprep.mubr.bf16.mxu0 0
      %712 = vmatmul.mubr.bf16.gmra.mxu0 %v566
      %v713 = vpop.f32.mrf.mxu0
      %v714 = vadd.f32 0.0, %v713
      %v715 = vpop.f32.mrf.mxu0
      %v716 = vadd.f32 0.0, %v715
      %v717 = vpop.f32.mrf.mxu0
      %v718 = vadd.f32 0.0, %v717
      %v719 = vpop.f32.mrf.mxu0
      %v720 = vadd.f32 0.0, %v719
      %721 = vmatprep.mubr.bf16.mxu0 0
      %722 = vmatmul.mubr.bf16.gmra.mxu0 %v567
      %v723 = vpop.f32.mrf.mxu0
      %v724 = vadd.f32 0.0, %v723
      %v725 = vpop.f32.mrf.mxu0
      %v726 = vadd.f32 0.0, %v725
      %v727 = vpop.f32.mrf.mxu0
      %v728 = vadd.f32 0.0, %v727
      %v729 = vpop.f32.mrf.mxu0
      %v730 = vadd.f32 0.0, %v729
      %731 = vmatprep.mubr.bf16.mxu0 0
      %732 = vmatmul.mubr.bf16.gmra.mxu0 %v568
      %v733 = vpop.f32.mrf.mxu0
      %v734 = vadd.f32 0.0, %v733
      %v735 = vpop.f32.mrf.mxu0
      %v736 = vadd.f32 0.0, %v735
      %v737 = vpop.f32.mrf.mxu0
      %v738 = vadd.f32 0.0, %v737
      %v739 = vpop.f32.mrf.mxu0
      %v740 = vadd.f32 0.0, %v739
      %741 = vmatprep.mubr.bf16.mxu0 0
      %742 = vmatmul.mubr.bf16.gmra.mxu0 %v569
      %v743 = vpop.f32.mrf.mxu0
      %v744 = vadd.f32 0.0, %v743
      %v745 = vpop.f32.mrf.mxu0
      %v746 = vadd.f32 0.0, %v745
      %v747 = vpop.f32.mrf.mxu0
      %v748 = vadd.f32 0.0, %v747
      %v749 = vpop.f32.mrf.mxu0
      %v750 = vadd.f32 0.0, %v749
      %751 = vmatprep.mubr.bf16.mxu0 0
      %752 = vmatmul.mubr.bf16.gmra.mxu0 %v570
      %v753 = vpop.f32.mrf.mxu0
      %v754 = vadd.f32 0.0, %v753
      %v755 = vpop.f32.mrf.mxu0
      %v756 = vadd.f32 0.0, %v755
      %v757 = vpop.f32.mrf.mxu0
      %v758 = vadd.f32 0.0, %v757
      %v759 = vpop.f32.mrf.mxu0
      %v760 = vadd.f32 0.0, %v759
      %761 = vmatprep.mubr.bf16.mxu0 0
      %762 = vmatmul.mubr.bf16.gmra.mxu0 %v571
      %v763 = vpop.f32.mrf.mxu0
      %v764 = vadd.f32 0.0, %v763
      %v765 = vpop.f32.mrf.mxu0
      %v766 = vadd.f32 0.0, %v765
      %v767 = vpop.f32.mrf.mxu0
      %v768 = vadd.f32 0.0, %v767
      %v769 = vpop.f32.mrf.mxu0
      %v770 = vadd.f32 0.0, %v769
      %771 = vmatprep.mubr.bf16.mxu0 0
      %772 = vmatmul.mubr.bf16.gmra.mxu0 %v572
      %v773 = vpop.f32.mrf.mxu0
      %v774 = vadd.f32 0.0, %v773
      %v775 = vpop.f32.mrf.mxu0
      %v776 = vadd.f32 0.0, %v775
      %v777 = vpop.f32.mrf.mxu0
      %v778 = vadd.f32 0.0, %v777
      %v779 = vpop.f32.mrf.mxu0
      %v780 = vadd.f32 0.0, %v779
      %781 = vdwg.mxu0
      %v782 = vmul.f32 %v704, 0.5
      %v783 = vmul.f32 %v706, 0.5
      %v784 = vmul.f32 %v708, 0.5
      %v785 = vmul.f32 %v710, 0.5
      %v786 = vmul.f32 %v714, 0.5
      %v787 = vmul.f32 %v716, 0.5
      %v788 = vmul.f32 %v718, 0.5
      %v789 = vmul.f32 %v720, 0.5
      %v790 = vmul.f32 %v724, 0.5
      %v791 = vmul.f32 %v726, 0.5
      %v792 = vmul.f32 %v728, 0.5
      %v793 = vmul.f32 %v730, 0.5
      %v794 = vmul.f32 %v734, 0.5
      %v795 = vmul.f32 %v736, 0.5
      %v796 = vmul.f32 %v738, 0.5
      %v797 = vmul.f32 %v740, 0.5
      %v798 = vmul.f32 %v744, 0.5
      %v799 = vmul.f32 %v746, 0.5
      %v800 = vmul.f32 %v748, 0.5
      %v801 = vmul.f32 %v750, 0.5
      %v802 = vmul.f32 %v754, 0.5
      %v803 = vmul.f32 %v756, 0.5
      %v804 = vmul.f32 %v758, 0.5
      %v805 = vmul.f32 %v760, 0.5
      %v806 = vmul.f32 %v764, 0.5
      %v807 = vmul.f32 %v766, 0.5
      %v808 = vmul.f32 %v768, 0.5
      %v809 = vmul.f32 %v770, 0.5
      %v810 = vmul.f32 %v774, 0.5
      %v811 = vmul.f32 %v776, 0.5
      %v812 = vmul.f32 %v778, 0.5
      %v813 = vmul.f32 %v780, 0.5
      %v814 = vmul.f32 %v704, 0.70710677
      %v815 = vmul.f32 %v706, 0.70710677
      %v816 = vmul.f32 %v708, 0.70710677
      %v817 = vmul.f32 %v710, 0.70710677
      %v818 = vmul.f32 %v714, 0.70710677
      %v819 = vmul.f32 %v716, 0.70710677
      %v820 = vmul.f32 %v718, 0.70710677
      %v821 = vmul.f32 %v720, 0.70710677
      %v822 = vmul.f32 %v724, 0.70710677
      %v823 = vmul.f32 %v726, 0.70710677
      %v824 = vmul.f32 %v728, 0.70710677
      %v825 = vmul.f32 %v730, 0.70710677
      %v826 = vmul.f32 %v734, 0.70710677
      %v827 = vmul.f32 %v736, 0.70710677
      %v828 = vmul.f32 %v738, 0.70710677
      %v829 = vmul.f32 %v740, 0.70710677
      %v830 = vmul.f32 %v744, 0.70710677
      %v831 = vmul.f32 %v746, 0.70710677
      %v832 = vmul.f32 %v748, 0.70710677
      %v833 = vmul.f32 %v750, 0.70710677
      %v834 = vmul.f32 %v754, 0.70710677
      %v835 = vmul.f32 %v756, 0.70710677
      %v836 = vmul.f32 %v758, 0.70710677
      %v837 = vmul.f32 %v760, 0.70710677
      %v838 = vmul.f32 %v764, 0.70710677
      %v839 = vmul.f32 %v766, 0.70710677
      %v840 = vmul.f32 %v768, 0.70710677
      %v841 = vmul.f32 %v770, 0.70710677
      %v842 = vmul.f32 %v774, 0.70710677
      %v843 = vmul.f32 %v776, 0.70710677
      %v844 = vmul.f32 %v778, 0.70710677
      %v845 = vmul.f32 %v780, 0.70710677
      %vm846 = vcmp.ge.f32.partialorder %v814, 0.0
      %vm847 = vcmp.ge.f32.partialorder %v815, 0.0
      %vm848 = vcmp.ge.f32.partialorder %v816, 0.0
      %vm849 = vcmp.ge.f32.partialorder %v817, 0.0
      %vm850 = vcmp.ge.f32.partialorder %v818, 0.0
      %vm851 = vcmp.ge.f32.partialorder %v819, 0.0
      %vm852 = vcmp.ge.f32.partialorder %v820, 0.0
      %vm853 = vcmp.ge.f32.partialorder %v821, 0.0
      %vm854 = vcmp.ge.f32.partialorder %v822, 0.0
      %vm855 = vcmp.ge.f32.partialorder %v823, 0.0
      %vm856 = vcmp.ge.f32.partialorder %v824, 0.0
      %vm857 = vcmp.ge.f32.partialorder %v825, 0.0
      %vm858 = vcmp.ge.f32.partialorder %v826, 0.0
      %vm859 = vcmp.ge.f32.partialorder %v827, 0.0
      %vm860 = vcmp.ge.f32.partialorder %v828, 0.0
      %vm861 = vcmp.ge.f32.partialorder %v829, 0.0
      %vm862 = vcmp.ge.f32.partialorder %v830, 0.0
      %vm863 = vcmp.ge.f32.partialorder %v831, 0.0
      %vm864 = vcmp.ge.f32.partialorder %v832, 0.0
      %vm865 = vcmp.ge.f32.partialorder %v833, 0.0
      %vm866 = vcmp.ge.f32.partialorder %v834, 0.0
      %vm867 = vcmp.ge.f32.partialorder %v835, 0.0
      %vm868 = vcmp.ge.f32.partialorder %v836, 0.0
      %vm869 = vcmp.ge.f32.partialorder %v837, 0.0
      %vm870 = vcmp.ge.f32.partialorder %v838, 0.0
      %vm871 = vcmp.ge.f32.partialorder %v839, 0.0
      %vm872 = vcmp.ge.f32.partialorder %v840, 0.0
      %vm873 = vcmp.ge.f32.partialorder %v841, 0.0
      %vm874 = vcmp.ge.f32.partialorder %v842, 0.0
      %vm875 = vcmp.ge.f32.partialorder %v843, 0.0
      %vm876 = vcmp.ge.f32.partialorder %v844, 0.0
      %vm877 = vcmp.ge.f32.partialorder %v845, 0.0
      %v878 = vsel %vm846, 1.0, -1.0
      %v879 = vsel %vm847, 1.0, -1.0
      %v880 = vsel %vm848, 1.0, -1.0
      %v881 = vsel %vm849, 1.0, -1.0
      %v882 = vsel %vm850, 1.0, -1.0
      %v883 = vsel %vm851, 1.0, -1.0
      %v884 = vsel %vm852, 1.0, -1.0
      %v885 = vsel %vm853, 1.0, -1.0
      %v886 = vsel %vm854, 1.0, -1.0
      %v887 = vsel %vm855, 1.0, -1.0
      %v888 = vsel %vm856, 1.0, -1.0
      %v889 = vsel %vm857, 1.0, -1.0
      %v890 = vsel %vm858, 1.0, -1.0
      %v891 = vsel %vm859, 1.0, -1.0
      %v892 = vsel %vm860, 1.0, -1.0
      %v893 = vsel %vm861, 1.0, -1.0
      %v894 = vsel %vm862, 1.0, -1.0
      %v895 = vsel %vm863, 1.0, -1.0
      %v896 = vsel %vm864, 1.0, -1.0
      %v897 = vsel %vm865, 1.0, -1.0
      %v898 = vsel %vm866, 1.0, -1.0
      %v899 = vsel %vm867, 1.0, -1.0
      %v900 = vsel %vm868, 1.0, -1.0
      %v901 = vsel %vm869, 1.0, -1.0
      %v902 = vsel %vm870, 1.0, -1.0
      %v903 = vsel %vm871, 1.0, -1.0
      %v904 = vsel %vm872, 1.0, -1.0
      %v905 = vsel %vm873, 1.0, -1.0
      %v906 = vsel %vm874, 1.0, -1.0
      %v907 = vsel %vm875, 1.0, -1.0
      %v908 = vsel %vm876, 1.0, -1.0
      %v909 = vsel %vm877, 1.0, -1.0
      %v910 = vand.u32 2147483647, %v814
      %v911 = vand.u32 2147483647, %v815
      %v912 = vand.u32 2147483647, %v816
      %v913 = vand.u32 2147483647, %v817
      %v914 = vand.u32 2147483647, %v818
      %v915 = vand.u32 2147483647, %v819
      %v916 = vand.u32 2147483647, %v820
      %v917 = vand.u32 2147483647, %v821
      %v918 = vand.u32 2147483647, %v822
      %v919 = vand.u32 2147483647, %v823
      %v920 = vand.u32 2147483647, %v824
      %v921 = vand.u32 2147483647, %v825
      %v922 = vand.u32 2147483647, %v826
      %v923 = vand.u32 2147483647, %v827
      %v924 = vand.u32 2147483647, %v828
      %v925 = vand.u32 2147483647, %v829
      %v926 = vand.u32 2147483647, %v830
      %v927 = vand.u32 2147483647, %v831
      %v928 = vand.u32 2147483647, %v832
      %v929 = vand.u32 2147483647, %v833
      %v930 = vand.u32 2147483647, %v834
      %v931 = vand.u32 2147483647, %v835
      %v932 = vand.u32 2147483647, %v836
      %v933 = vand.u32 2147483647, %v837
      %v934 = vand.u32 2147483647, %v838
      %v935 = vand.u32 2147483647, %v839
      %v936 = vand.u32 2147483647, %v840
      %v937 = vand.u32 2147483647, %v841
      %v938 = vand.u32 2147483647, %v842
      %v939 = vand.u32 2147483647, %v843
      %v940 = vand.u32 2147483647, %v844
      %v941 = vand.u32 2147483647, %v845
      %v942 = vmul.f32 %v910, 0.3275911
      %v943 = vmul.f32 %v911, 0.3275911
      %v944 = vmul.f32 %v912, 0.3275911
      %v945 = vmul.f32 %v913, 0.3275911
      %v946 = vmul.f32 %v914, 0.3275911
      %v947 = vmul.f32 %v915, 0.3275911
      %v948 = vmul.f32 %v916, 0.3275911
      %v949 = vmul.f32 %v917, 0.3275911
      %v950 = vmul.f32 %v918, 0.3275911
      %v951 = vmul.f32 %v919, 0.3275911
      %v952 = vmul.f32 %v920, 0.3275911
      %v953 = vmul.f32 %v921, 0.3275911
      %v954 = vmul.f32 %v922, 0.3275911
      %v955 = vmul.f32 %v923, 0.3275911
      %v956 = vmul.f32 %v924, 0.3275911
      %v957 = vmul.f32 %v925, 0.3275911
      %v958 = vmul.f32 %v926, 0.3275911
      %v959 = vmul.f32 %v927, 0.3275911
      %v960 = vmul.f32 %v928, 0.3275911
      %v961 = vmul.f32 %v929, 0.3275911
      %v962 = vmul.f32 %v930, 0.3275911
      %v963 = vmul.f32 %v931, 0.3275911
      %v964 = vmul.f32 %v932, 0.3275911
      %v965 = vmul.f32 %v933, 0.3275911
      %v966 = vmul.f32 %v934, 0.3275911
      %v967 = vmul.f32 %v935, 0.3275911
      %v968 = vmul.f32 %v936, 0.3275911
      %v969 = vmul.f32 %v937, 0.3275911
      %v970 = vmul.f32 %v938, 0.3275911
      %v971 = vmul.f32 %v939, 0.3275911
      %v972 = vmul.f32 %v940, 0.3275911
      %v973 = vmul.f32 %v941, 0.3275911
      %v974 = vadd.f32 %v942, 1.0
      %v975 = vadd.f32 %v943, 1.0
      %v976 = vadd.f32 %v944, 1.0
      %v977 = vadd.f32 %v945, 1.0
      %v978 = vadd.f32 %v946, 1.0
      %v979 = vadd.f32 %v947, 1.0
      %v980 = vadd.f32 %v948, 1.0
      %v981 = vadd.f32 %v949, 1.0
      %v982 = vadd.f32 %v950, 1.0
      %v983 = vadd.f32 %v951, 1.0
      %v984 = vadd.f32 %v952, 1.0
      %v985 = vadd.f32 %v953, 1.0
      %v986 = vadd.f32 %v954, 1.0
      %v987 = vadd.f32 %v955, 1.0
      %v988 = vadd.f32 %v956, 1.0
      %v989 = vadd.f32 %v957, 1.0
      %v990 = vadd.f32 %v958, 1.0
      %v991 = vadd.f32 %v959, 1.0
      %v992 = vadd.f32 %v960, 1.0
      %v993 = vadd.f32 %v961, 1.0
      %v994 = vadd.f32 %v962, 1.0
      %v995 = vadd.f32 %v963, 1.0
      %v996 = vadd.f32 %v964, 1.0
      %v997 = vadd.f32 %v965, 1.0
      %v998 = vadd.f32 %v966, 1.0
      %v999 = vadd.f32 %v967, 1.0
      %v1000 = vadd.f32 %v968, 1.0
      %v1001 = vadd.f32 %v969, 1.0
      %v1002 = vadd.f32 %v970, 1.0
      %v1003 = vadd.f32 %v971, 1.0
      %v1004 = vadd.f32 %v972, 1.0
      %v1005 = vadd.f32 %v973, 1.0
      %v1006 = vrcp.pop %v974
      %v1007 = vrcp.pop %v975
      %v1008 = vrcp.pop %v976
      %v1009 = vrcp.pop %v977
      %v1010 = vrcp.pop %v978
      %v1011 = vrcp.pop %v979
      %v1012 = vrcp.pop %v980
      %v1013 = vrcp.pop %v981
      %v1014 = vrcp.pop %v982
      %v1015 = vrcp.pop %v983
      %v1016 = vrcp.pop %v984
      %v1017 = vrcp.pop %v985
      %v1018 = vrcp.pop %v986
      %v1019 = vrcp.pop %v987
      %v1020 = vrcp.pop %v988
      %v1021 = vrcp.pop %v989
      %v1022 = vrcp.pop %v990
      %v1023 = vrcp.pop %v991
      %v1024 = vrcp.pop %v992
      %v1025 = vrcp.pop %v993
      %v1026 = vrcp.pop %v994
      %v1027 = vrcp.pop %v995
      %v1028 = vrcp.pop %v996
      %v1029 = vrcp.pop %v997
      %v1030 = vrcp.pop %v998
      %v1031 = vrcp.pop %v999
      %v1032 = vrcp.pop %v1000
      %v1033 = vrcp.pop %v1001
      %v1034 = vrcp.pop %v1002
      %v1035 = vrcp.pop %v1003
      %v1036 = vrcp.pop %v1004
      %v1037 = vrcp.pop %v1005
      %v1038 = vmul.f32 %v1006, 1.0614054
      %v1039 = vmul.f32 %v1007, 1.0614054
      %v1040 = vmul.f32 %v1008, 1.0614054
      %v1041 = vmul.f32 %v1009, 1.0614054
      %v1042 = vmul.f32 %v1010, 1.0614054
      %v1043 = vmul.f32 %v1011, 1.0614054
      %v1044 = vmul.f32 %v1012, 1.0614054
      %v1045 = vmul.f32 %v1013, 1.0614054
      %v1046 = vmul.f32 %v1014, 1.0614054
      %v1047 = vmul.f32 %v1015, 1.0614054
      %v1048 = vmul.f32 %v1016, 1.0614054
      %v1049 = vmul.f32 %v1017, 1.0614054
      %v1050 = vmul.f32 %v1018, 1.0614054
      %v1051 = vmul.f32 %v1019, 1.0614054
      %v1052 = vmul.f32 %v1020, 1.0614054
      %v1053 = vmul.f32 %v1021, 1.0614054
      %v1054 = vmul.f32 %v1022, 1.0614054
      %v1055 = vmul.f32 %v1023, 1.0614054
      %v1056 = vmul.f32 %v1024, 1.0614054
      %v1057 = vmul.f32 %v1025, 1.0614054
      %v1058 = vmul.f32 %v1026, 1.0614054
      %v1059 = vmul.f32 %v1027, 1.0614054
      %v1060 = vmul.f32 %v1028, 1.0614054
      %v1061 = vmul.f32 %v1029, 1.0614054
      %v1062 = vmul.f32 %v1030, 1.0614054
      %v1063 = vmul.f32 %v1031, 1.0614054
      %v1064 = vmul.f32 %v1032, 1.0614054
      %v1065 = vmul.f32 %v1033, 1.0614054
      %v1066 = vmul.f32 %v1034, 1.0614054
      %v1067 = vmul.f32 %v1035, 1.0614054
      %v1068 = vmul.f32 %v1036, 1.0614054
      %v1069 = vmul.f32 %v1037, 1.0614054
      %v1070 = vadd.f32 %v1038, -1.4531521
      %v1071 = vadd.f32 %v1039, -1.4531521
      %v1072 = vadd.f32 %v1040, -1.4531521
      %v1073 = vadd.f32 %v1041, -1.4531521
      %v1074 = vadd.f32 %v1042, -1.4531521
      %v1075 = vadd.f32 %v1043, -1.4531521
      %v1076 = vadd.f32 %v1044, -1.4531521
      %v1077 = vadd.f32 %v1045, -1.4531521
      %v1078 = vadd.f32 %v1046, -1.4531521
      %v1079 = vadd.f32 %v1047, -1.4531521
      %v1080 = vadd.f32 %v1048, -1.4531521
      %v1081 = vadd.f32 %v1049, -1.4531521
      %v1082 = vadd.f32 %v1050, -1.4531521
      %v1083 = vadd.f32 %v1051, -1.4531521
      %v1084 = vadd.f32 %v1052, -1.4531521
      %v1085 = vadd.f32 %v1053, -1.4531521
      %v1086 = vadd.f32 %v1054, -1.4531521
      %v1087 = vadd.f32 %v1055, -1.4531521
      %v1088 = vadd.f32 %v1056, -1.4531521
      %v1089 = vadd.f32 %v1057, -1.4531521
      %v1090 = vadd.f32 %v1058, -1.4531521
      %v1091 = vadd.f32 %v1059, -1.4531521
      %v1092 = vadd.f32 %v1060, -1.4531521
      %v1093 = vadd.f32 %v1061, -1.4531521
      %v1094 = vadd.f32 %v1062, -1.4531521
      %v1095 = vadd.f32 %v1063, -1.4531521
      %v1096 = vadd.f32 %v1064, -1.4531521
      %v1097 = vadd.f32 %v1065, -1.4531521
      %v1098 = vadd.f32 %v1066, -1.4531521
      %v1099 = vadd.f32 %v1067, -1.4531521
      %v1100 = vadd.f32 %v1068, -1.4531521
      %v1101 = vadd.f32 %v1069, -1.4531521
      %v1102 = vmul.f32 %v1070, %v1006
      %v1103 = vmul.f32 %v1071, %v1007
      %v1104 = vmul.f32 %v1072, %v1008
      %v1105 = vmul.f32 %v1073, %v1009
      %v1106 = vmul.f32 %v1074, %v1010
      %v1107 = vmul.f32 %v1075, %v1011
      %v1108 = vmul.f32 %v1076, %v1012
      %v1109 = vmul.f32 %v1077, %v1013
      %v1110 = vmul.f32 %v1078, %v1014
      %v1111 = vmul.f32 %v1079, %v1015
      %v1112 = vmul.f32 %v1080, %v1016
      %v1113 = vmul.f32 %v1081, %v1017
      %v1114 = vmul.f32 %v1082, %v1018
      %v1115 = vmul.f32 %v1083, %v1019
      %v1116 = vmul.f32 %v1084, %v1020
      %v1117 = vmul.f32 %v1085, %v1021
      %v1118 = vmul.f32 %v1086, %v1022
      %v1119 = vmul.f32 %v1087, %v1023
      %v1120 = vmul.f32 %v1088, %v1024
      %v1121 = vmul.f32 %v1089, %v1025
      %v1122 = vmul.f32 %v1090, %v1026
      %v1123 = vmul.f32 %v1091, %v1027
      %v1124 = vmul.f32 %v1092, %v1028
      %v1125 = vmul.f32 %v1093, %v1029
      %v1126 = vmul.f32 %v1094, %v1030
      %v1127 = vmul.f32 %v1095, %v1031
      %v1128 = vmul.f32 %v1096, %v1032
      %v1129 = vmul.f32 %v1097, %v1033
      %v1130 = vmul.f32 %v1098, %v1034
      %v1131 = vmul.f32 %v1099, %v1035
      %v1132 = vmul.f32 %v1100, %v1036
      %v1133 = vmul.f32 %v1101, %v1037
      %v1134 = vadd.f32 %v1102, 1.4214138
      %v1135 = vadd.f32 %v1103, 1.4214138
      %v1136 = vadd.f32 %v1104, 1.4214138
      %v1137 = vadd.f32 %v1105, 1.4214138
      %v1138 = vadd.f32 %v1106, 1.4214138
      %v1139 = vadd.f32 %v1107, 1.4214138
      %v1140 = vadd.f32 %v1108, 1.4214138
      %v1141 = vadd.f32 %v1109, 1.4214138
      %v1142 = vadd.f32 %v1110, 1.4214138
      %v1143 = vadd.f32 %v1111, 1.4214138
      %v1144 = vadd.f32 %v1112, 1.4214138
      %v1145 = vadd.f32 %v1113, 1.4214138
      %v1146 = vadd.f32 %v1114, 1.4214138
      %v1147 = vadd.f32 %v1115, 1.4214138
      %v1148 = vadd.f32 %v1116, 1.4214138
      %v1149 = vadd.f32 %v1117, 1.4214138
      %v1150 = vadd.f32 %v1118, 1.4214138
      %v1151 = vadd.f32 %v1119, 1.4214138
      %v1152 = vadd.f32 %v1120, 1.4214138
      %v1153 = vadd.f32 %v1121, 1.4214138
      %v1154 = vadd.f32 %v1122, 1.4214138
      %v1155 = vadd.f32 %v1123, 1.4214138
      %v1156 = vadd.f32 %v1124, 1.4214138
      %v1157 = vadd.f32 %v1125, 1.4214138
      %v1158 = vadd.f32 %v1126, 1.4214138
      %v1159 = vadd.f32 %v1127, 1.4214138
      %v1160 = vadd.f32 %v1128, 1.4214138
      %v1161 = vadd.f32 %v1129, 1.4214138
      %v1162 = vadd.f32 %v1130, 1.4214138
      %v1163 = vadd.f32 %v1131, 1.4214138
      %v1164 = vadd.f32 %v1132, 1.4214138
      %v1165 = vadd.f32 %v1133, 1.4214138
      %v1166 = vmul.f32 %v1134, %v1006
      %v1167 = vmul.f32 %v1135, %v1007
      %v1168 = vmul.f32 %v1136, %v1008
      %v1169 = vmul.f32 %v1137, %v1009
      %v1170 = vmul.f32 %v1138, %v1010
      %v1171 = vmul.f32 %v1139, %v1011
      %v1172 = vmul.f32 %v1140, %v1012
      %v1173 = vmul.f32 %v1141, %v1013
      %v1174 = vmul.f32 %v1142, %v1014
      %v1175 = vmul.f32 %v1143, %v1015
      %v1176 = vmul.f32 %v1144, %v1016
      %v1177 = vmul.f32 %v1145, %v1017
      %v1178 = vmul.f32 %v1146, %v1018
      %v1179 = vmul.f32 %v1147, %v1019
      %v1180 = vmul.f32 %v1148, %v1020
      %v1181 = vmul.f32 %v1149, %v1021
      %v1182 = vmul.f32 %v1150, %v1022
      %v1183 = vmul.f32 %v1151, %v1023
      %v1184 = vmul.f32 %v1152, %v1024
      %v1185 = vmul.f32 %v1153, %v1025
      %v1186 = vmul.f32 %v1154, %v1026
      %v1187 = vmul.f32 %v1155, %v1027
      %v1188 = vmul.f32 %v1156, %v1028
      %v1189 = vmul.f32 %v1157, %v1029
      %v1190 = vmul.f32 %v1158, %v1030
      %v1191 = vmul.f32 %v1159, %v1031
      %v1192 = vmul.f32 %v1160, %v1032
      %v1193 = vmul.f32 %v1161, %v1033
      %v1194 = vmul.f32 %v1162, %v1034
      %v1195 = vmul.f32 %v1163, %v1035
      %v1196 = vmul.f32 %v1164, %v1036
      %v1197 = vmul.f32 %v1165, %v1037
      %v1198 = vadd.f32 %v1166, -0.28449672
      %v1199 = vadd.f32 %v1167, -0.28449672
      %v1200 = vadd.f32 %v1168, -0.28449672
      %v1201 = vadd.f32 %v1169, -0.28449672
      %v1202 = vadd.f32 %v1170, -0.28449672
      %v1203 = vadd.f32 %v1171, -0.28449672
      %v1204 = vadd.f32 %v1172, -0.28449672
      %v1205 = vadd.f32 %v1173, -0.28449672
      %v1206 = vadd.f32 %v1174, -0.28449672
      %v1207 = vadd.f32 %v1175, -0.28449672
      %v1208 = vadd.f32 %v1176, -0.28449672
      %v1209 = vadd.f32 %v1177, -0.28449672
      %v1210 = vadd.f32 %v1178, -0.28449672
      %v1211 = vadd.f32 %v1179, -0.28449672
      %v1212 = vadd.f32 %v1180, -0.28449672
      %v1213 = vadd.f32 %v1181, -0.28449672
      %v1214 = vadd.f32 %v1182, -0.28449672
      %v1215 = vadd.f32 %v1183, -0.28449672
      %v1216 = vadd.f32 %v1184, -0.28449672
      %v1217 = vadd.f32 %v1185, -0.28449672
      %v1218 = vadd.f32 %v1186, -0.28449672
      %v1219 = vadd.f32 %v1187, -0.28449672
      %v1220 = vadd.f32 %v1188, -0.28449672
      %v1221 = vadd.f32 %v1189, -0.28449672
      %v1222 = vadd.f32 %v1190, -0.28449672
      %v1223 = vadd.f32 %v1191, -0.28449672
      %v1224 = vadd.f32 %v1192, -0.28449672
      %v1225 = vadd.f32 %v1193, -0.28449672
      %v1226 = vadd.f32 %v1194, -0.28449672
      %v1227 = vadd.f32 %v1195, -0.28449672
      %v1228 = vadd.f32 %v1196, -0.28449672
      %v1229 = vadd.f32 %v1197, -0.28449672
      %v1230 = vmul.f32 %v1198, %v1006
      %v1231 = vmul.f32 %v1199, %v1007
      %v1232 = vmul.f32 %v1200, %v1008
      %v1233 = vmul.f32 %v1201, %v1009
      %v1234 = vmul.f32 %v1202, %v1010
      %v1235 = vmul.f32 %v1203, %v1011
      %v1236 = vmul.f32 %v1204, %v1012
      %v1237 = vmul.f32 %v1205, %v1013
      %v1238 = vmul.f32 %v1206, %v1014
      %v1239 = vmul.f32 %v1207, %v1015
      %v1240 = vmul.f32 %v1208, %v1016
      %v1241 = vmul.f32 %v1209, %v1017
      %v1242 = vmul.f32 %v1210, %v1018
      %v1243 = vmul.f32 %v1211, %v1019
      %v1244 = vmul.f32 %v1212, %v1020
      %v1245 = vmul.f32 %v1213, %v1021
      %v1246 = vmul.f32 %v1214, %v1022
      %v1247 = vmul.f32 %v1215, %v1023
      %v1248 = vmul.f32 %v1216, %v1024
      %v1249 = vmul.f32 %v1217, %v1025
      %v1250 = vmul.f32 %v1218, %v1026
      %v1251 = vmul.f32 %v1219, %v1027
      %v1252 = vmul.f32 %v1220, %v1028
      %v1253 = vmul.f32 %v1221, %v1029
      %v1254 = vmul.f32 %v1222, %v1030
      %v1255 = vmul.f32 %v1223, %v1031
      %v1256 = vmul.f32 %v1224, %v1032
      %v1257 = vmul.f32 %v1225, %v1033
      %v1258 = vmul.f32 %v1226, %v1034
      %v1259 = vmul.f32 %v1227, %v1035
      %v1260 = vmul.f32 %v1228, %v1036
      %v1261 = vmul.f32 %v1229, %v1037
      %v1262 = vadd.f32 %v1230, 0.2548296
      %v1263 = vadd.f32 %v1231, 0.2548296
      %v1264 = vadd.f32 %v1232, 0.2548296
      %v1265 = vadd.f32 %v1233, 0.2548296
      %v1266 = vadd.f32 %v1234, 0.2548296
      %v1267 = vadd.f32 %v1235, 0.2548296
      %v1268 = vadd.f32 %v1236, 0.2548296
      %v1269 = vadd.f32 %v1237, 0.2548296
      %v1270 = vadd.f32 %v1238, 0.2548296
      %v1271 = vadd.f32 %v1239, 0.2548296
      %v1272 = vadd.f32 %v1240, 0.2548296
      %v1273 = vadd.f32 %v1241, 0.2548296
      %v1274 = vadd.f32 %v1242, 0.2548296
      %v1275 = vadd.f32 %v1243, 0.2548296
      %v1276 = vadd.f32 %v1244, 0.2548296
      %v1277 = vadd.f32 %v1245, 0.2548296
      %v1278 = vadd.f32 %v1246, 0.2548296
      %v1279 = vadd.f32 %v1247, 0.2548296
      %v1280 = vadd.f32 %v1248, 0.2548296
      %v1281 = vadd.f32 %v1249, 0.2548296
      %v1282 = vadd.f32 %v1250, 0.2548296
      %v1283 = vadd.f32 %v1251, 0.2548296
      %v1284 = vadd.f32 %v1252, 0.2548296
      %v1285 = vadd.f32 %v1253, 0.2548296
      %v1286 = vadd.f32 %v1254, 0.2548296
      %v1287 = vadd.f32 %v1255, 0.2548296
      %v1288 = vadd.f32 %v1256, 0.2548296
      %v1289 = vadd.f32 %v1257, 0.2548296
      %v1290 = vadd.f32 %v1258, 0.2548296
      %v1291 = vadd.f32 %v1259, 0.2548296
      %v1292 = vadd.f32 %v1260, 0.2548296
      %v1293 = vadd.f32 %v1261, 0.2548296
      %v1294 = vmul.f32 %v1262, %v1006
      %v1295 = vmul.f32 %v1263, %v1007
      %v1296 = vmul.f32 %v1264, %v1008
      %v1297 = vmul.f32 %v1265, %v1009
      %v1298 = vmul.f32 %v1266, %v1010
      %v1299 = vmul.f32 %v1267, %v1011
      %v1300 = vmul.f32 %v1268, %v1012
      %v1301 = vmul.f32 %v1269, %v1013
      %v1302 = vmul.f32 %v1270, %v1014
      %v1303 = vmul.f32 %v1271, %v1015
      %v1304 = vmul.f32 %v1272, %v1016
      %v1305 = vmul.f32 %v1273, %v1017
      %v1306 = vmul.f32 %v1274, %v1018
      %v1307 = vmul.f32 %v1275, %v1019
      %v1308 = vmul.f32 %v1276, %v1020
      %v1309 = vmul.f32 %v1277, %v1021
      %v1310 = vmul.f32 %v1278, %v1022
      %v1311 = vmul.f32 %v1279, %v1023
      %v1312 = vmul.f32 %v1280, %v1024
      %v1313 = vmul.f32 %v1281, %v1025
      %v1314 = vmul.f32 %v1282, %v1026
      %v1315 = vmul.f32 %v1283, %v1027
      %v1316 = vmul.f32 %v1284, %v1028
      %v1317 = vmul.f32 %v1285, %v1029
      %v1318 = vmul.f32 %v1286, %v1030
      %v1319 = vmul.f32 %v1287, %v1031
      %v1320 = vmul.f32 %v1288, %v1032
      %v1321 = vmul.f32 %v1289, %v1033
      %v1322 = vmul.f32 %v1290, %v1034
      %v1323 = vmul.f32 %v1291, %v1035
      %v1324 = vmul.f32 %v1292, %v1036
      %v1325 = vmul.f32 %v1293, %v1037
      %v1326 = vsub.f32 0.0, %v910
      %v1327 = vsub.f32 0.0, %v911
      %v1328 = vsub.f32 0.0, %v912
      %v1329 = vsub.f32 0.0, %v913
      %v1330 = vsub.f32 0.0, %v914
      %v1331 = vsub.f32 0.0, %v915
      %v1332 = vsub.f32 0.0, %v916
      %v1333 = vsub.f32 0.0, %v917
      %v1334 = vsub.f32 0.0, %v918
      %v1335 = vsub.f32 0.0, %v919
      %v1336 = vsub.f32 0.0, %v920
      %v1337 = vsub.f32 0.0, %v921
      %v1338 = vsub.f32 0.0, %v922
      %v1339 = vsub.f32 0.0, %v923
      %v1340 = vsub.f32 0.0, %v924
      %v1341 = vsub.f32 0.0, %v925
      %v1342 = vsub.f32 0.0, %v926
      %v1343 = vsub.f32 0.0, %v927
      %v1344 = vsub.f32 0.0, %v928
      %v1345 = vsub.f32 0.0, %v929
      %v1346 = vsub.f32 0.0, %v930
      %v1347 = vsub.f32 0.0, %v931
      %v1348 = vsub.f32 0.0, %v932
      %v1349 = vsub.f32 0.0, %v933
      %v1350 = vsub.f32 0.0, %v934
      %v1351 = vsub.f32 0.0, %v935
      %v1352 = vsub.f32 0.0, %v936
      %v1353 = vsub.f32 0.0, %v937
      %v1354 = vsub.f32 0.0, %v938
      %v1355 = vsub.f32 0.0, %v939
      %v1356 = vsub.f32 0.0, %v940
      %v1357 = vsub.f32 0.0, %v941
      %v1358 = vmul.f32 %v1326, %v910
      %v1359 = vmul.f32 %v1327, %v911
      %v1360 = vmul.f32 %v1328, %v912
      %v1361 = vmul.f32 %v1329, %v913
      %v1362 = vmul.f32 %v1330, %v914
      %v1363 = vmul.f32 %v1331, %v915
      %v1364 = vmul.f32 %v1332, %v916
      %v1365 = vmul.f32 %v1333, %v917
      %v1366 = vmul.f32 %v1334, %v918
      %v1367 = vmul.f32 %v1335, %v919
      %v1368 = vmul.f32 %v1336, %v920
      %v1369 = vmul.f32 %v1337, %v921
      %v1370 = vmul.f32 %v1338, %v922
      %v1371 = vmul.f32 %v1339, %v923
      %v1372 = vmul.f32 %v1340, %v924
      %v1373 = vmul.f32 %v1341, %v925
      %v1374 = vmul.f32 %v1342, %v926
      %v1375 = vmul.f32 %v1343, %v927
      %v1376 = vmul.f32 %v1344, %v928
      %v1377 = vmul.f32 %v1345, %v929
      %v1378 = vmul.f32 %v1346, %v930
      %v1379 = vmul.f32 %v1347, %v931
      %v1380 = vmul.f32 %v1348, %v932
      %v1381 = vmul.f32 %v1349, %v933
      %v1382 = vmul.f32 %v1350, %v934
      %v1383 = vmul.f32 %v1351, %v935
      %v1384 = vmul.f32 %v1352, %v936
      %v1385 = vmul.f32 %v1353, %v937
      %v1386 = vmul.f32 %v1354, %v938
      %v1387 = vmul.f32 %v1355, %v939
      %v1388 = vmul.f32 %v1356, %v940
      %v1389 = vmul.f32 %v1357, %v941
      %v1390 = vmul.f32 %v1358, 1.442695
      %v1391 = vpow.pop %v1390
      %v1392 = vmul.f32 %v1359, 1.442695
      %v1393 = vpow.pop %v1392
      %v1394 = vmul.f32 %v1360, 1.442695
      %v1395 = vpow.pop %v1394
      %v1396 = vmul.f32 %v1361, 1.442695
      %v1397 = vpow.pop %v1396
      %v1398 = vmul.f32 %v1362, 1.442695
      %v1399 = vpow.pop %v1398
      %v1400 = vmul.f32 %v1363, 1.442695
      %v1401 = vpow.pop %v1400
      %v1402 = vmul.f32 %v1364, 1.442695
      %v1403 = vpow.pop %v1402
      %v1404 = vmul.f32 %v1365, 1.442695
      %v1405 = vpow.pop %v1404
      %v1406 = vmul.f32 %v1366, 1.442695
      %v1407 = vpow.pop %v1406
      %v1408 = vmul.f32 %v1367, 1.442695
      %v1409 = vpow.pop %v1408
      %v1410 = vmul.f32 %v1368, 1.442695
      %v1411 = vpow.pop %v1410
      %v1412 = vmul.f32 %v1369, 1.442695
      %v1413 = vpow.pop %v1412
      %v1414 = vmul.f32 %v1370, 1.442695
      %v1415 = vpow.pop %v1414
      %v1416 = vmul.f32 %v1371, 1.442695
      %v1417 = vpow.pop %v1416
      %v1418 = vmul.f32 %v1372, 1.442695
      %v1419 = vpow.pop %v1418
      %v1420 = vmul.f32 %v1373, 1.442695
      %v1421 = vpow.pop %v1420
      %v1422 = vmul.f32 %v1374, 1.442695
      %v1423 = vpow.pop %v1422
      %v1424 = vmul.f32 %v1375, 1.442695
      %v1425 = vpow.pop %v1424
      %v1426 = vmul.f32 %v1376, 1.442695
      %v1427 = vpow.pop %v1426
      %v1428 = vmul.f32 %v1377, 1.442695
      %v1429 = vpow.pop %v1428
      %v1430 = vmul.f32 %v1378, 1.442695
      %v1431 = vpow.pop %v1430
      %v1432 = vmul.f32 %v1379, 1.442695
      %v1433 = vpow.pop %v1432
      %v1434 = vmul.f32 %v1380, 1.442695
      %v1435 = vpow.pop %v1434
      %v1436 = vmul.f32 %v1381, 1.442695
      %v1437 = vpow.pop %v1436
      %v1438 = vmul.f32 %v1382, 1.442695
      %v1439 = vpow.pop %v1438
      %v1440 = vmul.f32 %v1383, 1.442695
      %v1441 = vpow.pop %v1440
      %v1442 = vmul.f32 %v1384, 1.442695
      %v1443 = vpow.pop %v1442
      %v1444 = vmul.f32 %v1385, 1.442695
      %v1445 = vpow.pop %v1444
      %v1446 = vmul.f32 %v1386, 1.442695
      %v1447 = vpow.pop %v1446
      %v1448 = vmul.f32 %v1387, 1.442695
      %v1449 = vpow.pop %v1448
      %v1450 = vmul.f32 %v1388, 1.442695
      %v1451 = vpow.pop %v1450
      %v1452 = vmul.f32 %v1389, 1.442695
      %v1453 = vpow.pop %v1452
      %v1454 = vmul.f32 %v1294, %v1391
      %v1455 = vmul.f32 %v1295, %v1393
      %v1456 = vmul.f32 %v1296, %v1395
      %v1457 = vmul.f32 %v1297, %v1397
      %v1458 = vmul.f32 %v1298, %v1399
      %v1459 = vmul.f32 %v1299, %v1401
      %v1460 = vmul.f32 %v1300, %v1403
      %v1461 = vmul.f32 %v1301, %v1405
      %v1462 = vmul.f32 %v1302, %v1407
      %v1463 = vmul.f32 %v1303, %v1409
      %v1464 = vmul.f32 %v1304, %v1411
      %v1465 = vmul.f32 %v1305, %v1413
      %v1466 = vmul.f32 %v1306, %v1415
      %v1467 = vmul.f32 %v1307, %v1417
      %v1468 = vmul.f32 %v1308, %v1419
      %v1469 = vmul.f32 %v1309, %v1421
      %v1470 = vmul.f32 %v1310, %v1423
      %v1471 = vmul.f32 %v1311, %v1425
      %v1472 = vmul.f32 %v1312, %v1427
      %v1473 = vmul.f32 %v1313, %v1429
      %v1474 = vmul.f32 %v1314, %v1431
      %v1475 = vmul.f32 %v1315, %v1433
      %v1476 = vmul.f32 %v1316, %v1435
      %v1477 = vmul.f32 %v1317, %v1437
      %v1478 = vmul.f32 %v1318, %v1439
      %v1479 = vmul.f32 %v1319, %v1441
      %v1480 = vmul.f32 %v1320, %v1443
      %v1481 = vmul.f32 %v1321, %v1445
      %v1482 = vmul.f32 %v1322, %v1447
      %v1483 = vmul.f32 %v1323, %v1449
      %v1484 = vmul.f32 %v1324, %v1451
      %v1485 = vmul.f32 %v1325, %v1453
      %v1486 = vsub.f32 1.0, %v1454
      %v1487 = vsub.f32 1.0, %v1455
      %v1488 = vsub.f32 1.0, %v1456
      %v1489 = vsub.f32 1.0, %v1457
      %v1490 = vsub.f32 1.0, %v1458
      %v1491 = vsub.f32 1.0, %v1459
      %v1492 = vsub.f32 1.0, %v1460
      %v1493 = vsub.f32 1.0, %v1461
      %v1494 = vsub.f32 1.0, %v1462
      %v1495 = vsub.f32 1.0, %v1463
      %v1496 = vsub.f32 1.0, %v1464
      %v1497 = vsub.f32 1.0, %v1465
      %v1498 = vsub.f32 1.0, %v1466
      %v1499 = vsub.f32 1.0, %v1467
      %v1500 = vsub.f32 1.0, %v1468
      %v1501 = vsub.f32 1.0, %v1469
      %v1502 = vsub.f32 1.0, %v1470
      %v1503 = vsub.f32 1.0, %v1471
      %v1504 = vsub.f32 1.0, %v1472
      %v1505 = vsub.f32 1.0, %v1473
      %v1506 = vsub.f32 1.0, %v1474
      %v1507 = vsub.f32 1.0, %v1475
      %v1508 = vsub.f32 1.0, %v1476
      %v1509 = vsub.f32 1.0, %v1477
      %v1510 = vsub.f32 1.0, %v1478
      %v1511 = vsub.f32 1.0, %v1479
      %v1512 = vsub.f32 1.0, %v1480
      %v1513 = vsub.f32 1.0, %v1481
      %v1514 = vsub.f32 1.0, %v1482
      %v1515 = vsub.f32 1.0, %v1483
      %v1516 = vsub.f32 1.0, %v1484
      %v1517 = vsub.f32 1.0, %v1485
      %v1518 = vmul.f32 %v878, %v1486
      %v1519 = vmul.f32 %v879, %v1487
      %v1520 = vmul.f32 %v880, %v1488
      %v1521 = vmul.f32 %v881, %v1489
      %v1522 = vmul.f32 %v882, %v1490
      %v1523 = vmul.f32 %v883, %v1491
      %v1524 = vmul.f32 %v884, %v1492
      %v1525 = vmul.f32 %v885, %v1493
      %v1526 = vmul.f32 %v886, %v1494
      %v1527 = vmul.f32 %v887, %v1495
      %v1528 = vmul.f32 %v888, %v1496
      %v1529 = vmul.f32 %v889, %v1497
      %v1530 = vmul.f32 %v890, %v1498
      %v1531 = vmul.f32 %v891, %v1499
      %v1532 = vmul.f32 %v892, %v1500
      %v1533 = vmul.f32 %v893, %v1501
      %v1534 = vmul.f32 %v894, %v1502
      %v1535 = vmul.f32 %v895, %v1503
      %v1536 = vmul.f32 %v896, %v1504
      %v1537 = vmul.f32 %v897, %v1505
      %v1538 = vmul.f32 %v898, %v1506
      %v1539 = vmul.f32 %v899, %v1507
      %v1540 = vmul.f32 %v900, %v1508
      %v1541 = vmul.f32 %v901, %v1509
      %v1542 = vmul.f32 %v902, %v1510
      %v1543 = vmul.f32 %v903, %v1511
      %v1544 = vmul.f32 %v904, %v1512
      %v1545 = vmul.f32 %v905, %v1513
      %v1546 = vmul.f32 %v906, %v1514
      %v1547 = vmul.f32 %v907, %v1515
      %v1548 = vmul.f32 %v908, %v1516
      %v1549 = vmul.f32 %v909, %v1517
      %v1550 = vadd.f32 %v1518, 1.0
      %v1551 = vadd.f32 %v1519, 1.0
      %v1552 = vadd.f32 %v1520, 1.0
      %v1553 = vadd.f32 %v1521, 1.0
      %v1554 = vadd.f32 %v1522, 1.0
      %v1555 = vadd.f32 %v1523, 1.0
      %v1556 = vadd.f32 %v1524, 1.0
      %v1557 = vadd.f32 %v1525, 1.0
      %v1558 = vadd.f32 %v1526, 1.0
      %v1559 = vadd.f32 %v1527, 1.0
      %v1560 = vadd.f32 %v1528, 1.0
      %v1561 = vadd.f32 %v1529, 1.0
      %v1562 = vadd.f32 %v1530, 1.0
      %v1563 = vadd.f32 %v1531, 1.0
      %v1564 = vadd.f32 %v1532, 1.0
      %v1565 = vadd.f32 %v1533, 1.0
      %v1566 = vadd.f32 %v1534, 1.0
      %v1567 = vadd.f32 %v1535, 1.0
      %v1568 = vadd.f32 %v1536, 1.0
      %v1569 = vadd.f32 %v1537, 1.0
      %v1570 = vadd.f32 %v1538, 1.0
      %v1571 = vadd.f32 %v1539, 1.0
      %v1572 = vadd.f32 %v1540, 1.0
      %v1573 = vadd.f32 %v1541, 1.0
      %v1574 = vadd.f32 %v1542, 1.0
      %v1575 = vadd.f32 %v1543, 1.0
      %v1576 = vadd.f32 %v1544, 1.0
      %v1577 = vadd.f32 %v1545, 1.0
      %v1578 = vadd.f32 %v1546, 1.0
      %v1579 = vadd.f32 %v1547, 1.0
      %v1580 = vadd.f32 %v1548, 1.0
      %v1581 = vadd.f32 %v1549, 1.0
      %v1582 = vmul.f32 %v782, %v1550
      %v1583 = vmul.f32 %v783, %v1551
      %v1584 = vmul.f32 %v784, %v1552
      %v1585 = vmul.f32 %v785, %v1553
      %v1586 = vmul.f32 %v786, %v1554
      %v1587 = vmul.f32 %v787, %v1555
      %v1588 = vmul.f32 %v788, %v1556
      %v1589 = vmul.f32 %v789, %v1557
      %v1590 = vmul.f32 %v790, %v1558
      %v1591 = vmul.f32 %v791, %v1559
      %v1592 = vmul.f32 %v792, %v1560
      %v1593 = vmul.f32 %v793, %v1561
      %v1594 = vmul.f32 %v794, %v1562
      %v1595 = vmul.f32 %v795, %v1563
      %v1596 = vmul.f32 %v796, %v1564
      %v1597 = vmul.f32 %v797, %v1565
      %v1598 = vmul.f32 %v798, %v1566
      %v1599 = vmul.f32 %v799, %v1567
      %v1600 = vmul.f32 %v800, %v1568
      %v1601 = vmul.f32 %v801, %v1569
      %v1602 = vmul.f32 %v802, %v1570
      %v1603 = vmul.f32 %v803, %v1571
      %v1604 = vmul.f32 %v804, %v1572
      %v1605 = vmul.f32 %v805, %v1573
      %v1606 = vmul.f32 %v806, %v1574
      %v1607 = vmul.f32 %v807, %v1575
      %v1608 = vmul.f32 %v808, %v1576
      %v1609 = vmul.f32 %v809, %v1577
      %v1610 = vmul.f32 %v810, %v1578
      %v1611 = vmul.f32 %v811, %v1579
      %v1612 = vmul.f32 %v812, %v1580
      %v1613 = vmul.f32 %v813, %v1581
      %v1614 = vld [vmem:[%s4] sm:$0xf]
      %v1615 = vld [vmem:[%s4 + $0x4] sm:$0xf]
      %v1616 = vld [vmem:[%s4 + $0x8] sm:$0xf]
      %v1617 = vld [vmem:[%s4 + $0xc] sm:$0xf]
      %v1618 = vld [vmem:[%s4 + $0x10] sm:$0xf]
      %v1619 = vld [vmem:[%s4 + $0x14] sm:$0xf]
      %v1620 = vld [vmem:[%s4 + $0x18] sm:$0xf]
      %v1621 = vld [vmem:[%s4 + $0x1c] sm:$0xf]
      %v1622 = vld [vmem:[%s4 + $0x20] sm:$0xf]
      %v1623 = vld [vmem:[%s4 + $0x24] sm:$0xf]
      %v1624 = vld [vmem:[%s4 + $0x28] sm:$0xf]
      %v1625 = vld [vmem:[%s4 + $0x2c] sm:$0xf]
      %v1626 = vld [vmem:[%s4 + $0x30] sm:$0xf]
      %v1627 = vld [vmem:[%s4 + $0x34] sm:$0xf]
      %v1628 = vld [vmem:[%s4 + $0x38] sm:$0xf]
      %v1629 = vld [vmem:[%s4 + $0x3c] sm:$0xf]
      %v1646 = vunpack.c.l.b16 %v1614
      %v1647 = vunpack.c.l.b16 %v1615
      %v1648 = vunpack.c.l.b16 %v1616
      %v1649 = vunpack.c.l.b16 %v1617
      %v1650 = vunpack.c.l.b16 %v1618
      %v1651 = vunpack.c.l.b16 %v1619
      %v1652 = vunpack.c.l.b16 %v1620
      %v1653 = vunpack.c.l.b16 %v1621
      %v1654 = vunpack.c.l.b16 %v1622
      %v1655 = vunpack.c.l.b16 %v1623
      %v1656 = vunpack.c.l.b16 %v1624
      %v1657 = vunpack.c.l.b16 %v1625
      %v1658 = vunpack.c.l.b16 %v1626
      %v1659 = vunpack.c.l.b16 %v1627
      %v1660 = vunpack.c.l.b16 %v1628
      %v1661 = vunpack.c.l.b16 %v1629
      %v1662 = vpack.c.b16 %v1647, %v1646
      %v1663 = vpack.c.b16 %v1649, %v1648
      %v1664 = vpack.c.b16 %v1651, %v1650
      %v1665 = vpack.c.b16 %v1653, %v1652
      %v1666 = vpack.c.b16 %v1655, %v1654
      %v1667 = vpack.c.b16 %v1657, %v1656
      %v1668 = vpack.c.b16 %v1659, %v1658
      %v1669 = vpack.c.b16 %v1661, %v1660
      %1678 = vmatprep.subr.bf16.mxu0 0
      %1679 = vmatpush1.bf16.msra.mxu0 %v1669
      %1680 = vmatprep.subr.bf16.mxu0 0
      %1681 = vmatpush1.bf16.msra.mxu0 %v1668
      %1682 = vmatprep.subr.bf16.mxu0 0
      %1683 = vmatpush1.bf16.msra.mxu0 %v1667
      %1684 = vmatprep.subr.bf16.mxu0 0
      %1685 = vmatpush1.bf16.msra.mxu0 %v1666
      %1686 = vmatprep.subr.bf16.mxu0 0
      %1687 = vmatpush1.bf16.msra.mxu0 %v1665
      %1688 = vmatprep.subr.bf16.mxu0 0
      %1689 = vmatpush1.bf16.msra.mxu0 %v1664
      %1690 = vmatprep.subr.bf16.mxu0 0
      %1691 = vmatpush1.bf16.msra.mxu0 %v1663
      %1692 = vmatprep.subr.bf16.mxu0 0
      %1693 = vmatpush1.bf16.msra.mxu0 %v1662
      %1694 = vmatprep.subr.bf16.mxu0 0
      %1695 = vmatpush2.bf16.msra.mxu0 0
      %1696 = vmatprep.subr.bf16.mxu0 0
      %1697 = vmatpush2.bf16.msra.mxu0 0
      %1698 = vmatprep.subr.bf16.mxu0 0
      %1699 = vmatpush2.bf16.msra.mxu0 0
      %1700 = vmatprep.subr.bf16.mxu0 0
      %1701 = vmatpush2.bf16.msra.mxu0 0
      %1702 = vmatprep.subr.bf16.mxu0 0
      %1703 = vmatpush2.bf16.msra.mxu0 0
      %1704 = vmatprep.subr.bf16.mxu0 0
      %1705 = vmatpush2.bf16.msra.mxu0 0
      %1706 = vmatprep.subr.bf16.mxu0 0
      %1707 = vmatpush2.bf16.msra.mxu0 0
      %1708 = vmatprep.subr.bf16.mxu0 0
      %1709 = vmatpush2.bf16.msra.mxu0 0
      %1710 = vmatprep.mubr.bf16.mxu0 0
      %1711 = vmatmul.mubr.bf16.gmra.mxu0 %v565
      %v1712 = vpop.f32.mrf.mxu0
      %v1713 = vadd.f32 0.0, %v1712
      %v1714 = vpop.f32.mrf.mxu0
      %v1715 = vpop.f32.mrf.mxu0
      %v1716 = vadd.f32 0.0, %v1715
      %v1717 = vpop.f32.mrf.mxu0
      %1718 = vmatprep.mubr.bf16.mxu0 0
      %1719 = vmatmul.mubr.bf16.gmra.mxu0 %v566
      %v1720 = vpop.f32.mrf.mxu0
      %v1721 = vadd.f32 0.0, %v1720
      %v1722 = vpop.f32.mrf.mxu0
      %v1723 = vpop.f32.mrf.mxu0
      %v1724 = vadd.f32 0.0, %v1723
      %v1725 = vpop.f32.mrf.mxu0
      %1726 = vmatprep.mubr.bf16.mxu0 0
      %1727 = vmatmul.mubr.bf16.gmra.mxu0 %v567
      %v1728 = vpop.f32.mrf.mxu0
      %v1729 = vadd.f32 0.0, %v1728
      %v1730 = vpop.f32.mrf.mxu0
      %v1731 = vpop.f32.mrf.mxu0
      %v1732 = vadd.f32 0.0, %v1731
      %v1733 = vpop.f32.mrf.mxu0
      %1734 = vmatprep.mubr.bf16.mxu0 0
      %1735 = vmatmul.mubr.bf16.gmra.mxu0 %v568
      %v1736 = vpop.f32.mrf.mxu0
      %v1737 = vadd.f32 0.0, %v1736
      %v1738 = vpop.f32.mrf.mxu0
      %v1739 = vpop.f32.mrf.mxu0
      %v1740 = vadd.f32 0.0, %v1739
      %v1741 = vpop.f32.mrf.mxu0
      %1742 = vmatprep.mubr.bf16.mxu0 0
      %1743 = vmatmul.mubr.bf16.gmra.mxu0 %v569
      %v1744 = vpop.f32.mrf.mxu0
      %v1745 = vadd.f32 0.0, %v1744
      %v1746 = vpop.f32.mrf.mxu0
      %v1747 = vpop.f32.mrf.mxu0
      %v1748 = vadd.f32 0.0, %v1747
      %v1749 = vpop.f32.mrf.mxu0
      %1750 = vmatprep.mubr.bf16.mxu0 0
      %1751 = vmatmul.mubr.bf16.gmra.mxu0 %v570
      %v1752 = vpop.f32.mrf.mxu0
      %v1753 = vadd.f32 0.0, %v1752
      %v1754 = vpop.f32.mrf.mxu0
      %v1755 = vpop.f32.mrf.mxu0
      %v1756 = vadd.f32 0.0, %v1755
      %v1757 = vpop.f32.mrf.mxu0
      %1758 = vmatprep.mubr.bf16.mxu0 0
      %1759 = vmatmul.mubr.bf16.gmra.mxu0 %v571
      %v1760 = vpop.f32.mrf.mxu0
      %v1761 = vadd.f32 0.0, %v1760
      %v1762 = vpop.f32.mrf.mxu0
      %v1763 = vpop.f32.mrf.mxu0
      %v1764 = vadd.f32 0.0, %v1763
      %v1765 = vpop.f32.mrf.mxu0
      %1766 = vmatprep.mubr.bf16.mxu0 0
      %1767 = vmatmul.mubr.bf16.gmra.mxu0 %v572
      %v1768 = vpop.f32.mrf.mxu0
      %v1769 = vadd.f32 0.0, %v1768
      %v1770 = vpop.f32.mrf.mxu0
      %v1771 = vpop.f32.mrf.mxu0
      %v1772 = vadd.f32 0.0, %v1771
      %v1773 = vpop.f32.mrf.mxu0
      %1774 = vdwg.mxu0
      %v1775 = vmul.f32 %v1713, 0.5
      %v1776 = vmul.f32 %v1716, 0.5
      %v1777 = vmul.f32 %v1721, 0.5
      %v1778 = vmul.f32 %v1724, 0.5
      %v1779 = vmul.f32 %v1729, 0.5
      %v1780 = vmul.f32 %v1732, 0.5
      %v1781 = vmul.f32 %v1737, 0.5
      %v1782 = vmul.f32 %v1740, 0.5
      %v1783 = vmul.f32 %v1745, 0.5
      %v1784 = vmul.f32 %v1748, 0.5
      %v1785 = vmul.f32 %v1753, 0.5
      %v1786 = vmul.f32 %v1756, 0.5
      %v1787 = vmul.f32 %v1761, 0.5
      %v1788 = vmul.f32 %v1764, 0.5
      %v1789 = vmul.f32 %v1769, 0.5
      %v1790 = vmul.f32 %v1772, 0.5
      %v1791 = vmul.f32 %v1713, 0.70710677
      %v1792 = vmul.f32 %v1716, 0.70710677
      %v1793 = vmul.f32 %v1721, 0.70710677
      %v1794 = vmul.f32 %v1724, 0.70710677
      %v1795 = vmul.f32 %v1729, 0.70710677
      %v1796 = vmul.f32 %v1732, 0.70710677
      %v1797 = vmul.f32 %v1737, 0.70710677
      %v1798 = vmul.f32 %v1740, 0.70710677
      %v1799 = vmul.f32 %v1745, 0.70710677
      %v1800 = vmul.f32 %v1748, 0.70710677
      %v1801 = vmul.f32 %v1753, 0.70710677
      %v1802 = vmul.f32 %v1756, 0.70710677
      %v1803 = vmul.f32 %v1761, 0.70710677
      %v1804 = vmul.f32 %v1764, 0.70710677
      %v1805 = vmul.f32 %v1769, 0.70710677
      %v1806 = vmul.f32 %v1772, 0.70710677
      %vm1807 = vcmp.ge.f32.partialorder %v1791, 0.0
      %vm1808 = vcmp.ge.f32.partialorder %v1792, 0.0
      %vm1809 = vcmp.ge.f32.partialorder %v1793, 0.0
      %vm1810 = vcmp.ge.f32.partialorder %v1794, 0.0
      %vm1811 = vcmp.ge.f32.partialorder %v1795, 0.0
      %vm1812 = vcmp.ge.f32.partialorder %v1796, 0.0
      %vm1813 = vcmp.ge.f32.partialorder %v1797, 0.0
      %vm1814 = vcmp.ge.f32.partialorder %v1798, 0.0
      %vm1815 = vcmp.ge.f32.partialorder %v1799, 0.0
      %vm1816 = vcmp.ge.f32.partialorder %v1800, 0.0
      %vm1817 = vcmp.ge.f32.partialorder %v1801, 0.0
      %vm1818 = vcmp.ge.f32.partialorder %v1802, 0.0
      %vm1819 = vcmp.ge.f32.partialorder %v1803, 0.0
      %vm1820 = vcmp.ge.f32.partialorder %v1804, 0.0
      %vm1821 = vcmp.ge.f32.partialorder %v1805, 0.0
      %vm1822 = vcmp.ge.f32.partialorder %v1806, 0.0
      %v1823 = vsel %vm1807, 1.0, -1.0
      %v1824 = vsel %vm1808, 1.0, -1.0
      %v1825 = vsel %vm1809, 1.0, -1.0
      %v1826 = vsel %vm1810, 1.0, -1.0
      %v1827 = vsel %vm1811, 1.0, -1.0
      %v1828 = vsel %vm1812, 1.0, -1.0
      %v1829 = vsel %vm1813, 1.0, -1.0
      %v1830 = vsel %vm1814, 1.0, -1.0
      %v1831 = vsel %vm1815, 1.0, -1.0
      %v1832 = vsel %vm1816, 1.0, -1.0
      %v1833 = vsel %vm1817, 1.0, -1.0
      %v1834 = vsel %vm1818, 1.0, -1.0
      %v1835 = vsel %vm1819, 1.0, -1.0
      %v1836 = vsel %vm1820, 1.0, -1.0
      %v1837 = vsel %vm1821, 1.0, -1.0
      %v1838 = vsel %vm1822, 1.0, -1.0
      %v1839 = vand.u32 2147483647, %v1791
      %v1840 = vand.u32 2147483647, %v1792
      %v1841 = vand.u32 2147483647, %v1793
      %v1842 = vand.u32 2147483647, %v1794
      %v1843 = vand.u32 2147483647, %v1795
      %v1844 = vand.u32 2147483647, %v1796
      %v1845 = vand.u32 2147483647, %v1797
      %v1846 = vand.u32 2147483647, %v1798
      %v1847 = vand.u32 2147483647, %v1799
      %v1848 = vand.u32 2147483647, %v1800
      %v1849 = vand.u32 2147483647, %v1801
      %v1850 = vand.u32 2147483647, %v1802
      %v1851 = vand.u32 2147483647, %v1803
      %v1852 = vand.u32 2147483647, %v1804
      %v1853 = vand.u32 2147483647, %v1805
      %v1854 = vand.u32 2147483647, %v1806
      %v1855 = vmul.f32 %v1839, 0.3275911
      %v1856 = vmul.f32 %v1840, 0.3275911
      %v1857 = vmul.f32 %v1841, 0.3275911
      %v1858 = vmul.f32 %v1842, 0.3275911
      %v1859 = vmul.f32 %v1843, 0.3275911
      %v1860 = vmul.f32 %v1844, 0.3275911
      %v1861 = vmul.f32 %v1845, 0.3275911
      %v1862 = vmul.f32 %v1846, 0.3275911
      %v1863 = vmul.f32 %v1847, 0.3275911
      %v1864 = vmul.f32 %v1848, 0.3275911
      %v1865 = vmul.f32 %v1849, 0.3275911
      %v1866 = vmul.f32 %v1850, 0.3275911
      %v1867 = vmul.f32 %v1851, 0.3275911
      %v1868 = vmul.f32 %v1852, 0.3275911
      %v1869 = vmul.f32 %v1853, 0.3275911
      %v1870 = vmul.f32 %v1854, 0.3275911
      %v1871 = vadd.f32 %v1855, 1.0
      %v1872 = vadd.f32 %v1856, 1.0
      %v1873 = vadd.f32 %v1857, 1.0
      %v1874 = vadd.f32 %v1858, 1.0
      %v1875 = vadd.f32 %v1859, 1.0
      %v1876 = vadd.f32 %v1860, 1.0
      %v1877 = vadd.f32 %v1861, 1.0
      %v1878 = vadd.f32 %v1862, 1.0
      %v1879 = vadd.f32 %v1863, 1.0
      %v1880 = vadd.f32 %v1864, 1.0
      %v1881 = vadd.f32 %v1865, 1.0
      %v1882 = vadd.f32 %v1866, 1.0
      %v1883 = vadd.f32 %v1867, 1.0
      %v1884 = vadd.f32 %v1868, 1.0
      %v1885 = vadd.f32 %v1869, 1.0
      %v1886 = vadd.f32 %v1870, 1.0
      %v1887 = vrcp.pop %v1871
      %v1888 = vrcp.pop %v1872
      %v1889 = vrcp.pop %v1873
      %v1890 = vrcp.pop %v1874
      %v1891 = vrcp.pop %v1875
      %v1892 = vrcp.pop %v1876
      %v1893 = vrcp.pop %v1877
      %v1894 = vrcp.pop %v1878
      %v1895 = vrcp.pop %v1879
      %v1896 = vrcp.pop %v1880
      %v1897 = vrcp.pop %v1881
      %v1898 = vrcp.pop %v1882
      %v1899 = vrcp.pop %v1883
      %v1900 = vrcp.pop %v1884
      %v1901 = vrcp.pop %v1885
      %v1902 = vrcp.pop %v1886
      %v1903 = vmul.f32 %v1887, 1.0614054
      %v1904 = vmul.f32 %v1888, 1.0614054
      %v1905 = vmul.f32 %v1889, 1.0614054
      %v1906 = vmul.f32 %v1890, 1.0614054
      %v1907 = vmul.f32 %v1891, 1.0614054
      %v1908 = vmul.f32 %v1892, 1.0614054
      %v1909 = vmul.f32 %v1893, 1.0614054
      %v1910 = vmul.f32 %v1894, 1.0614054
      %v1911 = vmul.f32 %v1895, 1.0614054
      %v1912 = vmul.f32 %v1896, 1.0614054
      %v1913 = vmul.f32 %v1897, 1.0614054
      %v1914 = vmul.f32 %v1898, 1.0614054
      %v1915 = vmul.f32 %v1899, 1.0614054
      %v1916 = vmul.f32 %v1900, 1.0614054
      %v1917 = vmul.f32 %v1901, 1.0614054
      %v1918 = vmul.f32 %v1902, 1.0614054
      %v1919 = vadd.f32 %v1903, -1.4531521
      %v1920 = vadd.f32 %v1904, -1.4531521
      %v1921 = vadd.f32 %v1905, -1.4531521
      %v1922 = vadd.f32 %v1906, -1.4531521
      %v1923 = vadd.f32 %v1907, -1.4531521
      %v1924 = vadd.f32 %v1908, -1.4531521
      %v1925 = vadd.f32 %v1909, -1.4531521
      %v1926 = vadd.f32 %v1910, -1.4531521
      %v1927 = vadd.f32 %v1911, -1.4531521
      %v1928 = vadd.f32 %v1912, -1.4531521
      %v1929 = vadd.f32 %v1913, -1.4531521
      %v1930 = vadd.f32 %v1914, -1.4531521
      %v1931 = vadd.f32 %v1915, -1.4531521
      %v1932 = vadd.f32 %v1916, -1.4531521
      %v1933 = vadd.f32 %v1917, -1.4531521
      %v1934 = vadd.f32 %v1918, -1.4531521
      %v1935 = vmul.f32 %v1919, %v1887
      %v1936 = vmul.f32 %v1920, %v1888
      %v1937 = vmul.f32 %v1921, %v1889
      %v1938 = vmul.f32 %v1922, %v1890
      %v1939 = vmul.f32 %v1923, %v1891
      %v1940 = vmul.f32 %v1924, %v1892
      %v1941 = vmul.f32 %v1925, %v1893
      %v1942 = vmul.f32 %v1926, %v1894
      %v1943 = vmul.f32 %v1927, %v1895
      %v1944 = vmul.f32 %v1928, %v1896
      %v1945 = vmul.f32 %v1929, %v1897
      %v1946 = vmul.f32 %v1930, %v1898
      %v1947 = vmul.f32 %v1931, %v1899
      %v1948 = vmul.f32 %v1932, %v1900
      %v1949 = vmul.f32 %v1933, %v1901
      %v1950 = vmul.f32 %v1934, %v1902
      %v1951 = vadd.f32 %v1935, 1.4214138
      %v1952 = vadd.f32 %v1936, 1.4214138
      %v1953 = vadd.f32 %v1937, 1.4214138
      %v1954 = vadd.f32 %v1938, 1.4214138
      %v1955 = vadd.f32 %v1939, 1.4214138
      %v1956 = vadd.f32 %v1940, 1.4214138
      %v1957 = vadd.f32 %v1941, 1.4214138
      %v1958 = vadd.f32 %v1942, 1.4214138
      %v1959 = vadd.f32 %v1943, 1.4214138
      %v1960 = vadd.f32 %v1944, 1.4214138
      %v1961 = vadd.f32 %v1945, 1.4214138
      %v1962 = vadd.f32 %v1946, 1.4214138
      %v1963 = vadd.f32 %v1947, 1.4214138
      %v1964 = vadd.f32 %v1948, 1.4214138
      %v1965 = vadd.f32 %v1949, 1.4214138
      %v1966 = vadd.f32 %v1950, 1.4214138
      %v1967 = vmul.f32 %v1951, %v1887
      %v1968 = vmul.f32 %v1952, %v1888
      %v1969 = vmul.f32 %v1953, %v1889
      %v1970 = vmul.f32 %v1954, %v1890
      %v1971 = vmul.f32 %v1955, %v1891
      %v1972 = vmul.f32 %v1956, %v1892
      %v1973 = vmul.f32 %v1957, %v1893
      %v1974 = vmul.f32 %v1958, %v1894
      %v1975 = vmul.f32 %v1959, %v1895
      %v1976 = vmul.f32 %v1960, %v1896
      %v1977 = vmul.f32 %v1961, %v1897
      %v1978 = vmul.f32 %v1962, %v1898
      %v1979 = vmul.f32 %v1963, %v1899
      %v1980 = vmul.f32 %v1964, %v1900
      %v1981 = vmul.f32 %v1965, %v1901
      %v1982 = vmul.f32 %v1966, %v1902
      %v1983 = vadd.f32 %v1967, -0.28449672
      %v1984 = vadd.f32 %v1968, -0.28449672
      %v1985 = vadd.f32 %v1969, -0.28449672
      %v1986 = vadd.f32 %v1970, -0.28449672
      %v1987 = vadd.f32 %v1971, -0.28449672
      %v1988 = vadd.f32 %v1972, -0.28449672
      %v1989 = vadd.f32 %v1973, -0.28449672
      %v1990 = vadd.f32 %v1974, -0.28449672
      %v1991 = vadd.f32 %v1975, -0.28449672
      %v1992 = vadd.f32 %v1976, -0.28449672
      %v1993 = vadd.f32 %v1977, -0.28449672
      %v1994 = vadd.f32 %v1978, -0.28449672
      %v1995 = vadd.f32 %v1979, -0.28449672
      %v1996 = vadd.f32 %v1980, -0.28449672
      %v1997 = vadd.f32 %v1981, -0.28449672
      %v1998 = vadd.f32 %v1982, -0.28449672
      %v1999 = vmul.f32 %v1983, %v1887
      %v2000 = vmul.f32 %v1984, %v1888
      %v2001 = vmul.f32 %v1985, %v1889
      %v2002 = vmul.f32 %v1986, %v1890
      %v2003 = vmul.f32 %v1987, %v1891
      %v2004 = vmul.f32 %v1988, %v1892
      %v2005 = vmul.f32 %v1989, %v1893
      %v2006 = vmul.f32 %v1990, %v1894
      %v2007 = vmul.f32 %v1991, %v1895
      %v2008 = vmul.f32 %v1992, %v1896
      %v2009 = vmul.f32 %v1993, %v1897
      %v2010 = vmul.f32 %v1994, %v1898
      %v2011 = vmul.f32 %v1995, %v1899
      %v2012 = vmul.f32 %v1996, %v1900
      %v2013 = vmul.f32 %v1997, %v1901
      %v2014 = vmul.f32 %v1998, %v1902
      %v2015 = vadd.f32 %v1999, 0.2548296
      %v2016 = vadd.f32 %v2000, 0.2548296
      %v2017 = vadd.f32 %v2001, 0.2548296
      %v2018 = vadd.f32 %v2002, 0.2548296
      %v2019 = vadd.f32 %v2003, 0.2548296
      %v2020 = vadd.f32 %v2004, 0.2548296
      %v2021 = vadd.f32 %v2005, 0.2548296
      %v2022 = vadd.f32 %v2006, 0.2548296
      %v2023 = vadd.f32 %v2007, 0.2548296
      %v2024 = vadd.f32 %v2008, 0.2548296
      %v2025 = vadd.f32 %v2009, 0.2548296
      %v2026 = vadd.f32 %v2010, 0.2548296
      %v2027 = vadd.f32 %v2011, 0.2548296
      %v2028 = vadd.f32 %v2012, 0.2548296
      %v2029 = vadd.f32 %v2013, 0.2548296
      %v2030 = vadd.f32 %v2014, 0.2548296
      %v2031 = vmul.f32 %v2015, %v1887
      %v2032 = vmul.f32 %v2016, %v1888
      %v2033 = vmul.f32 %v2017, %v1889
      %v2034 = vmul.f32 %v2018, %v1890
      %v2035 = vmul.f32 %v2019, %v1891
      %v2036 = vmul.f32 %v2020, %v1892
      %v2037 = vmul.f32 %v2021, %v1893
      %v2038 = vmul.f32 %v2022, %v1894
      %v2039 = vmul.f32 %v2023, %v1895
      %v2040 = vmul.f32 %v2024, %v1896
      %v2041 = vmul.f32 %v2025, %v1897
      %v2042 = vmul.f32 %v2026, %v1898
      %v2043 = vmul.f32 %v2027, %v1899
      %v2044 = vmul.f32 %v2028, %v1900
      %v2045 = vmul.f32 %v2029, %v1901
      %v2046 = vmul.f32 %v2030, %v1902
      %v2047 = vsub.f32 0.0, %v1839
      %v2048 = vsub.f32 0.0, %v1840
      %v2049 = vsub.f32 0.0, %v1841
      %v2050 = vsub.f32 0.0, %v1842
      %v2051 = vsub.f32 0.0, %v1843
      %v2052 = vsub.f32 0.0, %v1844
      %v2053 = vsub.f32 0.0, %v1845
      %v2054 = vsub.f32 0.0, %v1846
      %v2055 = vsub.f32 0.0, %v1847
      %v2056 = vsub.f32 0.0, %v1848
      %v2057 = vsub.f32 0.0, %v1849
      %v2058 = vsub.f32 0.0, %v1850
      %v2059 = vsub.f32 0.0, %v1851
      %v2060 = vsub.f32 0.0, %v1852
      %v2061 = vsub.f32 0.0, %v1853
      %v2062 = vsub.f32 0.0, %v1854
      %v2063 = vmul.f32 %v2047, %v1839
      %v2064 = vmul.f32 %v2048, %v1840
      %v2065 = vmul.f32 %v2049, %v1841
      %v2066 = vmul.f32 %v2050, %v1842
      %v2067 = vmul.f32 %v2051, %v1843
      %v2068 = vmul.f32 %v2052, %v1844
      %v2069 = vmul.f32 %v2053, %v1845
      %v2070 = vmul.f32 %v2054, %v1846
      %v2071 = vmul.f32 %v2055, %v1847
      %v2072 = vmul.f32 %v2056, %v1848
      %v2073 = vmul.f32 %v2057, %v1849
      %v2074 = vmul.f32 %v2058, %v1850
      %v2075 = vmul.f32 %v2059, %v1851
      %v2076 = vmul.f32 %v2060, %v1852
      %v2077 = vmul.f32 %v2061, %v1853
      %v2078 = vmul.f32 %v2062, %v1854
      %v2079 = vmul.f32 %v2063, 1.442695
      %v2080 = vpow.pop %v2079
      %v2081 = vmul.f32 %v2064, 1.442695
      %v2082 = vpow.pop %v2081
      %v2083 = vmul.f32 %v2065, 1.442695
      %v2084 = vpow.pop %v2083
      %v2085 = vmul.f32 %v2066, 1.442695
      %v2086 = vpow.pop %v2085
      %v2087 = vmul.f32 %v2067, 1.442695
      %v2088 = vpow.pop %v2087
      %v2089 = vmul.f32 %v2068, 1.442695
      %v2090 = vpow.pop %v2089
      %v2091 = vmul.f32 %v2069, 1.442695
      %v2092 = vpow.pop %v2091
      %v2093 = vmul.f32 %v2070, 1.442695
      %v2094 = vpow.pop %v2093
      %v2095 = vmul.f32 %v2071, 1.442695
      %v2096 = vpow.pop %v2095
      %v2097 = vmul.f32 %v2072, 1.442695
      %v2098 = vpow.pop %v2097
      %v2099 = vmul.f32 %v2073, 1.442695
      %v2100 = vpow.pop %v2099
      %v2101 = vmul.f32 %v2074, 1.442695
      %v2102 = vpow.pop %v2101
      %v2103 = vmul.f32 %v2075, 1.442695
      %v2104 = vpow.pop %v2103
      %v2105 = vmul.f32 %v2076, 1.442695
      %v2106 = vpow.pop %v2105
      %v2107 = vmul.f32 %v2077, 1.442695
      %v2108 = vpow.pop %v2107
      %v2109 = vmul.f32 %v2078, 1.442695
      %v2110 = vpow.pop %v2109
      %v2111 = vmul.f32 %v2031, %v2080
      %v2112 = vmul.f32 %v2032, %v2082
      %v2113 = vmul.f32 %v2033, %v2084
      %v2114 = vmul.f32 %v2034, %v2086
      %v2115 = vmul.f32 %v2035, %v2088
      %v2116 = vmul.f32 %v2036, %v2090
      %v2117 = vmul.f32 %v2037, %v2092
      %v2118 = vmul.f32 %v2038, %v2094
      %v2119 = vmul.f32 %v2039, %v2096
      %v2120 = vmul.f32 %v2040, %v2098
      %v2121 = vmul.f32 %v2041, %v2100
      %v2122 = vmul.f32 %v2042, %v2102
      %v2123 = vmul.f32 %v2043, %v2104
      %v2124 = vmul.f32 %v2044, %v2106
      %v2125 = vmul.f32 %v2045, %v2108
      %v2126 = vmul.f32 %v2046, %v2110
      %v2127 = vsub.f32 1.0, %v2111
      %v2128 = vsub.f32 1.0, %v2112
      %v2129 = vsub.f32 1.0, %v2113
      %v2130 = vsub.f32 1.0, %v2114
      %v2131 = vsub.f32 1.0, %v2115
      %v2132 = vsub.f32 1.0, %v2116
      %v2133 = vsub.f32 1.0, %v2117
      %v2134 = vsub.f32 1.0, %v2118
      %v2135 = vsub.f32 1.0, %v2119
      %v2136 = vsub.f32 1.0, %v2120
      %v2137 = vsub.f32 1.0, %v2121
      %v2138 = vsub.f32 1.0, %v2122
      %v2139 = vsub.f32 1.0, %v2123
      %v2140 = vsub.f32 1.0, %v2124
      %v2141 = vsub.f32 1.0, %v2125
      %v2142 = vsub.f32 1.0, %v2126
      %v2143 = vmul.f32 %v1823, %v2127
      %v2144 = vmul.f32 %v1824, %v2128
      %v2145 = vmul.f32 %v1825, %v2129
      %v2146 = vmul.f32 %v1826, %v2130
      %v2147 = vmul.f32 %v1827, %v2131
      %v2148 = vmul.f32 %v1828, %v2132
      %v2149 = vmul.f32 %v1829, %v2133
      %v2150 = vmul.f32 %v1830, %v2134
      %v2151 = vmul.f32 %v1831, %v2135
      %v2152 = vmul.f32 %v1832, %v2136
      %v2153 = vmul.f32 %v1833, %v2137
      %v2154 = vmul.f32 %v1834, %v2138
      %v2155 = vmul.f32 %v1835, %v2139
      %v2156 = vmul.f32 %v1836, %v2140
      %v2157 = vmul.f32 %v1837, %v2141
      %v2158 = vmul.f32 %v1838, %v2142
      %v2159 = vadd.f32 %v2143, 1.0
      %v2160 = vadd.f32 %v2144, 1.0
      %v2161 = vadd.f32 %v2145, 1.0
      %v2162 = vadd.f32 %v2146, 1.0
      %v2163 = vadd.f32 %v2147, 1.0
      %v2164 = vadd.f32 %v2148, 1.0
      %v2165 = vadd.f32 %v2149, 1.0
      %v2166 = vadd.f32 %v2150, 1.0
      %v2167 = vadd.f32 %v2151, 1.0
      %v2168 = vadd.f32 %v2152, 1.0
      %v2169 = vadd.f32 %v2153, 1.0
      %v2170 = vadd.f32 %v2154, 1.0
      %v2171 = vadd.f32 %v2155, 1.0
      %v2172 = vadd.f32 %v2156, 1.0
      %v2173 = vadd.f32 %v2157, 1.0
      %v2174 = vadd.f32 %v2158, 1.0
      %v2175 = vmul.f32 %v1775, %v2159
      %v2176 = vmul.f32 %v1776, %v2160
      %v2177 = vmul.f32 %v1777, %v2161
      %v2178 = vmul.f32 %v1778, %v2162
      %v2179 = vmul.f32 %v1779, %v2163
      %v2180 = vmul.f32 %v1780, %v2164
      %v2181 = vmul.f32 %v1781, %v2165
      %v2182 = vmul.f32 %v1782, %v2166
      %v2183 = vmul.f32 %v1783, %v2167
      %v2184 = vmul.f32 %v1784, %v2168
      %v2185 = vmul.f32 %v1785, %v2169
      %v2186 = vmul.f32 %v1786, %v2170
      %v2187 = vmul.f32 %v1787, %v2171
      %v2188 = vmul.f32 %v1788, %v2172
      %v2189 = vmul.f32 %v1789, %v2173
      %v2190 = vmul.f32 %v1790, %v2174
      %v2191 = vpack.c.bf16 %v1584, %v1582
      %v2192 = vpack.c.bf16 %v1585, %v1583
      %v2193 = vpack.c.bf16 %v1588, %v1586
      %v2194 = vpack.c.bf16 %v1589, %v1587
      %v2195 = vpack.c.bf16 %v1592, %v1590
      %v2196 = vpack.c.bf16 %v1593, %v1591
      %v2197 = vpack.c.bf16 %v1596, %v1594
      %v2198 = vpack.c.bf16 %v1597, %v1595
      %v2199 = vpack.c.bf16 %v1600, %v1598
      %v2200 = vpack.c.bf16 %v1601, %v1599
      %v2201 = vpack.c.bf16 %v1604, %v1602
      %v2202 = vpack.c.bf16 %v1605, %v1603
      %v2203 = vpack.c.bf16 %v1608, %v1606
      %v2204 = vpack.c.bf16 %v1609, %v1607
      %v2205 = vpack.c.bf16 %v1612, %v1610
      %v2206 = vpack.c.bf16 %v1613, %v1611
      %v2223 = vunpack.c.l.b16 %v2191
      %v2224 = vunpack.c.l.b16 %v2192
      %v2225 = vunpack.c.h.b16 %v2191
      %v2226 = vunpack.c.h.b16 %v2192
      %v2227 = vunpack.c.l.b16 %v2193
      %v2228 = vunpack.c.l.b16 %v2194
      %v2229 = vunpack.c.h.b16 %v2193
      %v2230 = vunpack.c.h.b16 %v2194
      %v2231 = vunpack.c.l.b16 %v2195
      %v2232 = vunpack.c.l.b16 %v2196
      %v2233 = vunpack.c.h.b16 %v2195
      %v2234 = vunpack.c.h.b16 %v2196
      %v2235 = vunpack.c.l.b16 %v2197
      %v2236 = vunpack.c.l.b16 %v2198
      %v2237 = vunpack.c.h.b16 %v2197
      %v2238 = vunpack.c.h.b16 %v2198
      %v2239 = vunpack.c.l.b16 %v2199
      %v2240 = vunpack.c.l.b16 %v2200
      %v2241 = vunpack.c.h.b16 %v2199
      %v2242 = vunpack.c.h.b16 %v2200
      %v2243 = vunpack.c.l.b16 %v2201
      %v2244 = vunpack.c.l.b16 %v2202
      %v2245 = vunpack.c.h.b16 %v2201
      %v2246 = vunpack.c.h.b16 %v2202
      %v2247 = vunpack.c.l.b16 %v2203
      %v2248 = vunpack.c.l.b16 %v2204
      %v2249 = vunpack.c.h.b16 %v2203
      %v2250 = vunpack.c.h.b16 %v2204
      %v2251 = vunpack.c.l.b16 %v2205
      %v2252 = vunpack.c.l.b16 %v2206
      %v2253 = vunpack.c.h.b16 %v2205
      %v2254 = vunpack.c.h.b16 %v2206
      %v2255 = vpack.c.b16 %v2224, %v2223
      %v2256 = vpack.c.b16 %v2226, %v2225
      %v2257 = vpack.c.b16 %v2228, %v2227
      %v2258 = vpack.c.b16 %v2230, %v2229
      %v2259 = vpack.c.b16 %v2232, %v2231
      %v2260 = vpack.c.b16 %v2234, %v2233
      %v2261 = vpack.c.b16 %v2236, %v2235
      %v2262 = vpack.c.b16 %v2238, %v2237
      %v2263 = vpack.c.b16 %v2240, %v2239
      %v2264 = vpack.c.b16 %v2242, %v2241
      %v2265 = vpack.c.b16 %v2244, %v2243
      %v2266 = vpack.c.b16 %v2246, %v2245
      %v2267 = vpack.c.b16 %v2248, %v2247
      %v2268 = vpack.c.b16 %v2250, %v2249
      %v2269 = vpack.c.b16 %v2252, %v2251
      %v2270 = vpack.c.b16 %v2254, %v2253
      %2287 = vst [vmem:[%s317] sm:$0xff] %v2255
      %2288 = vst [vmem:[%s317 + $0x8] sm:$0xff] %v2256
      %2289 = vst [vmem:[%s317 + $0x10] sm:$0xff] %v2257
      %2290 = vst [vmem:[%s317 + $0x18] sm:$0xff] %v2258
      %2291 = vst [vmem:[%s317 + $0x20] sm:$0xff] %v2259
      %2292 = vst [vmem:[%s317 + $0x28] sm:$0xff] %v2260
      %2293 = vst [vmem:[%s317 + $0x30] sm:$0xff] %v2261
      %2294 = vst [vmem:[%s317 + $0x38] sm:$0xff] %v2262
      %2295 = vst [vmem:[%s317 + $0x40] sm:$0xff] %v2263
      %2296 = vst [vmem:[%s317 + $0x48] sm:$0xff] %v2264
      %2297 = vst [vmem:[%s317 + $0x50] sm:$0xff] %v2265
      %2298 = vst [vmem:[%s317 + $0x58] sm:$0xff] %v2266
      %2299 = vst [vmem:[%s317 + $0x60] sm:$0xff] %v2267
      %2300 = vst [vmem:[%s317 + $0x68] sm:$0xff] %v2268
      %2301 = vst [vmem:[%s317 + $0x70] sm:$0xff] %v2269
      %2302 = vst [vmem:[%s317 + $0x78] sm:$0xff] %v2270
      %v2303 = vld [vmem:[%s5] sm:$0x1]
      %v2304 = vld [vmem:[%s6] sm:$0x1]
      %2305 = vadd.xlane.f32.xlu0 %v2175
      %v2306 = vpop.xlane.xlu0 %2305
      %2307 = vadd.xlane.f32.xlu0 %v2176
      %v2308 = vpop.xlane.xlu0 %2307
      %2309 = vadd.xlane.f32.xlu0 %v2177
      %v2310 = vpop.xlane.xlu0 %2309
      %2311 = vadd.xlane.f32.xlu0 %v2178
      %v2312 = vpop.xlane.xlu0 %2311
      %2313 = vadd.xlane.f32.xlu0 %v2179
      %v2314 = vpop.xlane.xlu0 %2313
      %2315 = vadd.xlane.f32.xlu0 %v2180
      %v2316 = vpop.xlane.xlu0 %2315
      %2317 = vadd.xlane.f32.xlu0 %v2181
      %v2318 = vpop.xlane.xlu0 %2317
      %2319 = vadd.xlane.f32.xlu0 %v2182
      %v2320 = vpop.xlane.xlu0 %2319
      %2321 = vadd.xlane.f32.xlu0 %v2183
      %v2322 = vpop.xlane.xlu0 %2321
      %2323 = vadd.xlane.f32.xlu0 %v2184
      %v2324 = vpop.xlane.xlu0 %2323
      %2325 = vadd.xlane.f32.xlu0 %v2185
      %v2326 = vpop.xlane.xlu0 %2325
      %2327 = vadd.xlane.f32.xlu0 %v2186
      %v2328 = vpop.xlane.xlu0 %2327
      %2329 = vadd.xlane.f32.xlu0 %v2187
      %v2330 = vpop.xlane.xlu0 %2329
      %2331 = vadd.xlane.f32.xlu0 %v2188
      %v2332 = vpop.xlane.xlu0 %2331
      %2333 = vadd.xlane.f32.xlu0 %v2189
      %v2334 = vpop.xlane.xlu0 %2333
      %2335 = vadd.xlane.f32.xlu0 %v2190
      %v2336 = vpop.xlane.xlu0 %2335
      %v2337 = vmul.f32 %v2306, %v376
      %v2338 = vmul.f32 %v2308, %v376
      %v2339 = vmul.f32 %v2310, %v376
      %v2340 = vmul.f32 %v2312, %v376
      %v2341 = vmul.f32 %v2314, %v376
      %v2342 = vmul.f32 %v2316, %v376
      %v2343 = vmul.f32 %v2318, %v376
      %v2344 = vmul.f32 %v2320, %v376
      %v2345 = vmul.f32 %v2322, %v376
      %v2346 = vmul.f32 %v2324, %v376
      %v2347 = vmul.f32 %v2326, %v376
      %v2348 = vmul.f32 %v2328, %v376
      %v2349 = vmul.f32 %v2330, %v376
      %v2350 = vmul.f32 %v2332, %v376
      %v2351 = vmul.f32 %v2334, %v376
      %v2352 = vmul.f32 %v2336, %v376
      %v2353 = vsub.f32 %v2175, %v2337
      %v2354 = vsub.f32 %v2176, %v2338
      %v2355 = vsub.f32 %v2177, %v2339
      %v2356 = vsub.f32 %v2178, %v2340
      %v2357 = vsub.f32 %v2179, %v2341
      %v2358 = vsub.f32 %v2180, %v2342
      %v2359 = vsub.f32 %v2181, %v2343
      %v2360 = vsub.f32 %v2182, %v2344
      %v2361 = vsub.f32 %v2183, %v2345
      %v2362 = vsub.f32 %v2184, %v2346
      %v2363 = vsub.f32 %v2185, %v2347
      %v2364 = vsub.f32 %v2186, %v2348
      %v2365 = vsub.f32 %v2187, %v2349
      %v2366 = vsub.f32 %v2188, %v2350
      %v2367 = vsub.f32 %v2189, %v2351
      %v2368 = vsub.f32 %v2190, %v2352
      %v2369 = vmul.f32 %v2353, %v2353
      %v2370 = vmul.f32 %v2354, %v2354
      %v2371 = vmul.f32 %v2355, %v2355
      %v2372 = vmul.f32 %v2356, %v2356
      %v2373 = vmul.f32 %v2357, %v2357
      %v2374 = vmul.f32 %v2358, %v2358
      %v2375 = vmul.f32 %v2359, %v2359
      %v2376 = vmul.f32 %v2360, %v2360
      %v2377 = vmul.f32 %v2361, %v2361
      %v2378 = vmul.f32 %v2362, %v2362
      %v2379 = vmul.f32 %v2363, %v2363
      %v2380 = vmul.f32 %v2364, %v2364
      %v2381 = vmul.f32 %v2365, %v2365
      %v2382 = vmul.f32 %v2366, %v2366
      %v2383 = vmul.f32 %v2367, %v2367
      %v2384 = vmul.f32 %v2368, %v2368
      %2385 = vadd.xlane.f32.xlu0 %v2369
      %v2386 = vpop.xlane.xlu0 %2385
      %2387 = vadd.xlane.f32.xlu0 %v2370
      %v2388 = vpop.xlane.xlu0 %2387
      %2389 = vadd.xlane.f32.xlu0 %v2371
      %v2390 = vpop.xlane.xlu0 %2389
      %2391 = vadd.xlane.f32.xlu0 %v2372
      %v2392 = vpop.xlane.xlu0 %2391
      %2393 = vadd.xlane.f32.xlu0 %v2373
      %v2394 = vpop.xlane.xlu0 %2393
      %2395 = vadd.xlane.f32.xlu0 %v2374
      %v2396 = vpop.xlane.xlu0 %2395
      %2397 = vadd.xlane.f32.xlu0 %v2375
      %v2398 = vpop.xlane.xlu0 %2397
      %2399 = vadd.xlane.f32.xlu0 %v2376
      %v2400 = vpop.xlane.xlu0 %2399
      %2401 = vadd.xlane.f32.xlu0 %v2377
      %v2402 = vpop.xlane.xlu0 %2401
      %2403 = vadd.xlane.f32.xlu0 %v2378
      %v2404 = vpop.xlane.xlu0 %2403
      %2405 = vadd.xlane.f32.xlu0 %v2379
      %v2406 = vpop.xlane.xlu0 %2405
      %2407 = vadd.xlane.f32.xlu0 %v2380
      %v2408 = vpop.xlane.xlu0 %2407
      %2409 = vadd.xlane.f32.xlu0 %v2381
      %v2410 = vpop.xlane.xlu0 %2409
      %2411 = vadd.xlane.f32.xlu0 %v2382
      %v2412 = vpop.xlane.xlu0 %2411
      %2413 = vadd.xlane.f32.xlu0 %v2383
      %v2414 = vpop.xlane.xlu0 %2413
      %2415 = vadd.xlane.f32.xlu0 %v2384
      %v2416 = vpop.xlane.xlu0 %2415
      %v2417 = vmul.f32 %v2386, %v376
      %v2418 = vmul.f32 %v2388, %v376
      %v2419 = vmul.f32 %v2390, %v376
      %v2420 = vmul.f32 %v2392, %v376
      %v2421 = vmul.f32 %v2394, %v376
      %v2422 = vmul.f32 %v2396, %v376
      %v2423 = vmul.f32 %v2398, %v376
      %v2424 = vmul.f32 %v2400, %v376
      %v2425 = vmul.f32 %v2402, %v376
      %v2426 = vmul.f32 %v2404, %v376
      %v2427 = vmul.f32 %v2406, %v376
      %v2428 = vmul.f32 %v2408, %v376
      %v2429 = vmul.f32 %v2410, %v376
      %v2430 = vmul.f32 %v2412, %v376
      %v2431 = vmul.f32 %v2414, %v376
      %v2432 = vmul.f32 %v2416, %v376
      %v2433 = vadd.f32 %v2417, 1e-05
      %v2434 = vadd.f32 %v2418, 1e-05
      %v2435 = vadd.f32 %v2419, 1e-05
      %v2436 = vadd.f32 %v2420, 1e-05
      %v2437 = vadd.f32 %v2421, 1e-05
      %v2438 = vadd.f32 %v2422, 1e-05
      %v2439 = vadd.f32 %v2423, 1e-05
      %v2440 = vadd.f32 %v2424, 1e-05
      %v2441 = vadd.f32 %v2425, 1e-05
      %v2442 = vadd.f32 %v2426, 1e-05
      %v2443 = vadd.f32 %v2427, 1e-05
      %v2444 = vadd.f32 %v2428, 1e-05
      %v2445 = vadd.f32 %v2429, 1e-05
      %v2446 = vadd.f32 %v2430, 1e-05
      %v2447 = vadd.f32 %v2431, 1e-05
      %v2448 = vadd.f32 %v2432, 1e-05
      %v2449 = vrsqrt.pop %v2433
      %v2450 = vrsqrt.pop %v2434
      %v2451 = vrsqrt.pop %v2435
      %v2452 = vrsqrt.pop %v2436
      %v2453 = vrsqrt.pop %v2437
      %v2454 = vrsqrt.pop %v2438
      %v2455 = vrsqrt.pop %v2439
      %v2456 = vrsqrt.pop %v2440
      %v2457 = vrsqrt.pop %v2441
      %v2458 = vrsqrt.pop %v2442
      %v2459 = vrsqrt.pop %v2443
      %v2460 = vrsqrt.pop %v2444
      %v2461 = vrsqrt.pop %v2445
      %v2462 = vrsqrt.pop %v2446
      %v2463 = vrsqrt.pop %v2447
      %v2464 = vrsqrt.pop %v2448
      %v2465 = vmul.f32 %v2353, %v2449
      %v2466 = vmul.f32 %v2354, %v2450
      %v2467 = vmul.f32 %v2355, %v2451
      %v2468 = vmul.f32 %v2356, %v2452
      %v2469 = vmul.f32 %v2357, %v2453
      %v2470 = vmul.f32 %v2358, %v2454
      %v2471 = vmul.f32 %v2359, %v2455
      %v2472 = vmul.f32 %v2360, %v2456
      %v2473 = vmul.f32 %v2361, %v2457
      %v2474 = vmul.f32 %v2362, %v2458
      %v2475 = vmul.f32 %v2363, %v2459
      %v2476 = vmul.f32 %v2364, %v2460
      %v2477 = vmul.f32 %v2365, %v2461
      %v2478 = vmul.f32 %v2366, %v2462
      %v2479 = vmul.f32 %v2367, %v2463
      %v2480 = vmul.f32 %v2368, %v2464
      %v2482 = vlaneseq
      %v2483 = vshrl.u32 %v2482, 7
      %v2484 = vsub.s32 0, %v2483
      %v2485 = vrot.slane %v2303, %v2484
      %v2487 = vmul.f32 %v2465, %v2485
      %v2488 = vmul.f32 %v2466, %v2485
      %v2489 = vmul.f32 %v2467, %v2485
      %v2490 = vmul.f32 %v2468, %v2485
      %v2491 = vmul.f32 %v2469, %v2485
      %v2492 = vmul.f32 %v2470, %v2485
      %v2493 = vmul.f32 %v2471, %v2485
      %v2494 = vmul.f32 %v2472, %v2485
      %v2495 = vmul.f32 %v2473, %v2485
      %v2496 = vmul.f32 %v2474, %v2485
      %v2497 = vmul.f32 %v2475, %v2485
      %v2498 = vmul.f32 %v2476, %v2485
      %v2499 = vmul.f32 %v2477, %v2485
      %v2500 = vmul.f32 %v2478, %v2485
      %v2501 = vmul.f32 %v2479, %v2485
      %v2502 = vmul.f32 %v2480, %v2485
      %v2504 = vlaneseq
      %v2505 = vshrl.u32 %v2504, 7
      %v2506 = vsub.s32 0, %v2505
      %v2507 = vrot.slane %v2304, %v2506
      %v2509 = vadd.f32 %v2487, %v2507
      %v2510 = vadd.f32 %v2488, %v2507
      %v2511 = vadd.f32 %v2489, %v2507
      %v2512 = vadd.f32 %v2490, %v2507
      %v2513 = vadd.f32 %v2491, %v2507
      %v2514 = vadd.f32 %v2492, %v2507
      %v2515 = vadd.f32 %v2493, %v2507
      %v2516 = vadd.f32 %v2494, %v2507
      %v2517 = vadd.f32 %v2495, %v2507
      %v2518 = vadd.f32 %v2496, %v2507
      %v2519 = vadd.f32 %v2497, %v2507
      %v2520 = vadd.f32 %v2498, %v2507
      %v2521 = vadd.f32 %v2499, %v2507
      %v2522 = vadd.f32 %v2500, %v2507
      %v2523 = vadd.f32 %v2501, %v2507
      %v2524 = vadd.f32 %v2502, %v2507
      %2525 = vst [vmem:[%s323] sm:$0xff] %v2509
      %2526 = vst [vmem:[%s323 + $0x8] sm:$0xff] %v2510
      %2527 = vst [vmem:[%s323 + $0x10] sm:$0xff] %v2511
      %2528 = vst [vmem:[%s323 + $0x18] sm:$0xff] %v2512
      %2529 = vst [vmem:[%s323 + $0x20] sm:$0xff] %v2513
      %2530 = vst [vmem:[%s323 + $0x28] sm:$0xff] %v2514
      %2531 = vst [vmem:[%s323 + $0x30] sm:$0xff] %v2515
      %2532 = vst [vmem:[%s323 + $0x38] sm:$0xff] %v2516
      %2533 = vst [vmem:[%s323 + $0x40] sm:$0xff] %v2517
      %2534 = vst [vmem:[%s323 + $0x48] sm:$0xff] %v2518
      %2535 = vst [vmem:[%s323 + $0x50] sm:$0xff] %v2519
      %2536 = vst [vmem:[%s323 + $0x58] sm:$0xff] %v2520
      %2537 = vst [vmem:[%s323 + $0x60] sm:$0xff] %v2521
      %2538 = vst [vmem:[%s323 + $0x68] sm:$0xff] %v2522
      %2539 = vst [vmem:[%s323 + $0x70] sm:$0xff] %v2523
      %2540 = vst [vmem:[%s323 + $0x78] sm:$0xff] %v2524
      %s2541 = smul.u32 16, %s20
      %p2542 = scmp.lt.s32.totalorder %s2541, 31
      %s2543 = scalar_select %p2542, %s2541, 31
      %s2544 = smul.addr %s2543, 2
      %s2545 = smul.addr %s2544, 4
      %s2546 = scalar_lea.vmem %s7, %s2545
      %s2547 = smul.u32 16, %s20
      %p2548 = scmp.lt.s32.totalorder %s2547, 31
      %s2549 = scalar_select %p2548, %s2547, 31
      %s2550 = smul.addr %s2549, 8
      %s2551 = scalar_lea.vmem %s8, %s2550
      // Predicated region
      $region49: #{gated_state_spaces_lm.7} parent=47 // pred_check
        %p2552 = pneg %p190
      $region50: #{gated_state_spaces_lm.7} parent=47 // pred_check_branch
        %2554 = sbr.rel (%p2552) target = $region52
      $region51: #{gated_state_spaces_lm.7} parent=47 // pred_region
        %s2555 = smul.u32 16, %s20
      $region52: #{gated_state_spaces_lm.7} parent=47 // pred_fallthru
        _
      // Predicated region
      $region53: #{gated_state_spaces_lm.7} parent=47 // pred_check
        %p2556 = pneg %p216
      $region54: #{gated_state_spaces_lm.7} parent=47 // pred_check_branch
        %2558 = sbr.rel (%p2556) target = $region56
      $region55: #{gated_state_spaces_lm.7} parent=47 // pred_region
        %s2559 = smul.u32 16, %s20
      $region56: #{gated_state_spaces_lm.7} parent=47 // pred_fallthru
        _
    $region48: #{gated_state_spaces_lm.7} parent=5 // pred_fallthru
      _
    %p2560 = scmp.le.s32.totalorder 2, %s15
    // Predicated region
    $region57: #{gated_state_spaces_lm.7} parent=5 // pred_check
      %p2561 = pneg %p2560
    $region58: #{gated_state_spaces_lm.7} parent=5 // pred_check_branch
      %2563 = sbr.rel (%p2561) target = $region60
    $region59: #{gated_state_spaces_lm.7} parent=5 // pred_region
      %s2564 = ssub.s32 %s15, 2
      // Predicated region
      $region61: #{gated_state_spaces_lm.7} parent=59 // pred_check
        %p2565 = pneg %p196
      $region62: #{gated_state_spaces_lm.7} parent=59 // pred_check_branch
        %2567 = sbr.rel (%p2565) target = $region64
      $region63: #{gated_state_spaces_lm.7} parent=59 // pred_region
        %s2568 = smul.u32 16, %s21
        %p2569 = scmp.lt.s32.totalorder %s2568, 31
        %s2570 = scalar_select %p2569, %s2568, 31
        %s2571 = smul.addr %s2570, 2
        %s2572 = smul.addr %s2571, 4
        %s2573 = scalar_lea.vmem %s7, %s2572
      $region64: #{gated_state_spaces_lm.7} parent=59 // pred_fallthru
        _
      // Predicated region
      $region65: #{gated_state_spaces_lm.7} parent=59 // pred_check
        %p2574 = pneg %p222
      $region66: #{gated_state_spaces_lm.7} parent=59 // pred_check_branch
        %2576 = sbr.rel (%p2574) target = $region68
      $region67: #{gated_state_spaces_lm.7} parent=59 // pred_region
        %s2577 = smul.u32 16, %s21
        %p2578 = scmp.lt.s32.totalorder %s2577, 31
        %s2579 = scalar_select %p2578, %s2577, 31
        %s2580 = smul.addr %s2579, 8
        %s2581 = scalar_lea.vmem %s8, %s2580
      $region68: #{gated_state_spaces_lm.7} parent=59 // pred_fallthru
        _
    $region60: #{gated_state_spaces_lm.7} parent=5 // pred_fallthru
      _
  $region6: #{gated_state_spaces_lm.7} parent=0 // loop_footer
    %s19 = sadd.s32 1, %s15
  $region7: #{gated_state_spaces_lm.7} parent=0 // loop_footer_branch
    %14 = sbr.rel target = $region3
  $region8: #{gated_state_spaces_lm.7} parent=0 // loop_exit
    _

// kernel: gated_state_spaces_lm.13
$region0: #{gated_state_spaces_lm.13}
  #allocation0 [shape = 'u32[]', space=smem, size = 0x4, offset = 0x4, fixed_abs, tag = 'smem constant byte address 0x4 - core index']
  #allocation1 [shape = 'u32[144,128]{1,0:T(1,128)}', space=vmem, size = 0x12000, scoped, tag = 'internal scratch']
  %s0 = inlined_call_operand.vmem [shape: f32[256,128], index: 0, kind: input, shape index: {}]
  %s1 = inlined_call_operand.vmem [shape: bf16[128,256], index: 1, kind: input, shape index: {}]
  %s2 = inlined_call_operand.hbm [shape: f32[256,256], index: 2, kind: output, shape index: {}]
  %s3 = sld [smem:[#allocation0]]
  $region82: #{gated_state_spaces_lm.13} parent=0
    _
  %s5 = ssub.s32 1, %s3
  %s6 = scalar_select 0, %s5, %s3
  $region1: #{gated_state_spaces_lm.13} parent=0
    #allocation2 [shape = 'u8[65536]{0}', space=vmem, size = 0x10000, scoped, tag = 'input window, operand 1']
    #allocation3 [shape = 'u8[262144]{0}', space=vmem, size = 0x40000, scoped, tag = 'output window, operand 0']
    #allocation4 [shape = 's32[2]{0}', space=sflag, size = 0x8, scoped, tag = 'scoped memory for gated_state_spaces_lm.13']
    %7 = vsyncpa [#allocation4], 0
    %s8 = scalar_lea.sflag [#allocation4], 1
    %9 = vsyncpa %s8, 0
    loop: start=0, step=1, limit=4
    $region2: #{gated_state_spaces_lm.13} parent=1 // loop_pre_header
      _
    $region3: #{gated_state_spaces_lm.13} parent=1 // loop_header
      %s11 = sphi 0, %s15
      %p12 = scmp.ge.s32.totalorder %s11, 4
      %s18 = sphi 0, %s30
      %s19 = sphi 0, %s26
      %s20 = sphi 0, %s18
      %s21 = sphi 0, %s19
      %s22 = sphi 0, %s20
      %s23 = sphi 0, %s21
      %s33 = sphi 0, %s35
      %s36 = sphi 0, %s33
      %s37 = sphi 0, %s36
      %s53 = sphi 0, %s37
      %s59 = sphi 0, %s61
      %s62 = sphi 0, %s59
      %s63 = sphi 0, %s62
      %s79 = sphi 0, %s63
      %s87 = sphi 0, %s89
      %s90 = sphi 0, %s87
      %s91 = sphi 0, %s90
      %s107 = sphi 0, %s91
    $region4: #{gated_state_spaces_lm.13} parent=1 // loop_header_branch
      %14 = sbr.rel (%p12) target = $region8
    $region5: #{gated_state_spaces_lm.13} parent=1 // loop_body
      %s16 = ssub.s32 %s11, 1
      %s17 = ssub.s32 %s11, 2
      %s24 = sadd.s32 1, %s19
      %p25 = scmp.ge.s32.totalorder %s24, 1
      %s26 = scalar_select %p25, 0, %s24
      %s27 = sadd.s32 1, %s18
      %s28 = scalar_select %p25, %s27, %s18
      %p29 = scmp.ge.s32.totalorder %s28, 2
      %s30 = scalar_select %p29, 0, %s28
      %s31 = ssub.s32 %s19, %s26
      %p32 = scmp.eq.s32.totalorder %s31, 0
      %s34 = sadd.s32 %s33, 1
      %s35 = scalar_select %p32, %s33, %s34
      %p38 = pneg %p32
      %p39 = scmp.eq.s32.totalorder %s11, 1
      %p40 = por %p38, %p39
      %p41 = scmp.ne.s32.totalorder %s33, %s36
      %p42 = scmp.eq.s32.totalorder %s11, 0
      %p43 = por %p41, %p42
      %p44 = scmp.ne.s32.totalorder %s33, %s36
      %p45 = scmp.eq.s32.totalorder %s16, 1
      %p46 = por %p44, %p45
      %p47 = scmp.ne.s32.totalorder %s36, %s37
      %p48 = scmp.eq.s32.totalorder %s16, 0
      %p49 = por %p47, %p48
      %p50 = scmp.ne.s32.totalorder %s36, %s37
      %p51 = scmp.eq.s32.totalorder %s17, 1
      %p52 = por %p50, %p51
      %p54 = scmp.ne.s32.totalorder %s37, %s53
      %p55 = scmp.eq.s32.totalorder %s17, 0
      %p56 = por %p54, %p55
      %s57 = ssub.s32 %s18, %s30
      %p58 = scmp.eq.s32.totalorder %s57, 0
      %s60 = sadd.s32 %s59, 1
      %s61 = scalar_select %p58, %s59, %s60
      %p64 = pneg %p58
      %p65 = scmp.eq.s32.totalorder %s11, 1
      %p66 = por %p64, %p65
      %p67 = scmp.ne.s32.totalorder %s59, %s62
      %p68 = scmp.eq.s32.totalorder %s11, 0
      %p69 = por %p67, %p68
      %p70 = scmp.ne.s32.totalorder %s59, %s62
      %p71 = scmp.eq.s32.totalorder %s16, 1
      %p72 = por %p70, %p71
      %p73 = scmp.ne.s32.totalorder %s62, %s63
      %p74 = scmp.eq.s32.totalorder %s16, 0
      %p75 = por %p73, %p74
      %p76 = scmp.ne.s32.totalorder %s62, %s63
      %p77 = scmp.eq.s32.totalorder %s17, 1
      %p78 = por %p76, %p77
      %p80 = scmp.ne.s32.totalorder %s63, %s79
      %p81 = scmp.eq.s32.totalorder %s17, 0
      %p82 = por %p80, %p81
      %s83 = ssub.s32 %s19, %s26
      %s84 = ssub.s32 %s18, %s30
      %s85 = sor.u32 %s83, %s84
      %p86 = scmp.eq.s32.totalorder %s85, 0
      %s88 = sadd.s32 %s87, 1
      %s89 = scalar_select %p86, %s87, %s88
      %p92 = pneg %p86
      %p93 = scmp.eq.s32.totalorder %s11, 1
      %p94 = por %p92, %p93
      %p95 = scmp.ne.s32.totalorder %s87, %s90
      %p96 = scmp.eq.s32.totalorder %s11, 0
      %p97 = por %p95, %p96
      %p98 = scmp.ne.s32.totalorder %s87, %s90
      %p99 = scmp.eq.s32.totalorder %s16, 1
      %p100 = por %p98, %p99
      %p101 = scmp.ne.s32.totalorder %s90, %s91
      %p102 = scmp.eq.s32.totalorder %s16, 0
      %p103 = por %p101, %p102
      %p104 = scmp.ne.s32.totalorder %s90, %s91
      %p105 = scmp.eq.s32.totalorder %s17, 1
      %p106 = por %p104, %p105
      %p108 = scmp.ne.s32.totalorder %s91, %s107
      %p109 = scmp.eq.s32.totalorder %s17, 0
      %p110 = por %p108, %p109
      %p111 = scmp.le.s32.totalorder 1, %s11
      %p112 = scmp.lt.s32.totalorder %s11, 3
      %p113 = pnand %p111, %p112
      %p114 = pneg %p113
      // Predicated region
      $region9: #{gated_state_spaces_lm.13} parent=5 // pred_check
        _
      $region10: #{gated_state_spaces_lm.13} parent=5 // pred_check_branch
        %116 = sbr.rel (%p113) target = $region12
      $region11: #{gated_state_spaces_lm.13} parent=5 // pred_region
        %s117 = ssub.s32 %s11, 1
        // Predicated region
        $region13: #{gated_state_spaces_lm.13} parent=11 // pred_check
          %p118 = pneg %p49
        $region14: #{gated_state_spaces_lm.13} parent=11 // pred_check_branch
          %120 = sbr.rel (%p118) target = $region16
        $region15: #{gated_state_spaces_lm.13} parent=11 // pred_region
          %s121 = smul.u32 32, %s21
          %p122 = scmp.lt.s32.totalorder %s121, 31
          %s123 = scalar_select %p122, %s121, 31
          %s124 = smul.addr %s123, 8
          %s125 = scalar_lea.vmem %s0, %s124
          %s126 = smul.u32 32, %s21
        $region16: #{gated_state_spaces_lm.13} parent=11 // pred_fallthru
          _
      $region12: #{gated_state_spaces_lm.13} parent=5 // pred_fallthru
        _
      %p127 = scmp.lt.s32.totalorder %s11, 2
      // Predicated region
      $region17: #{gated_state_spaces_lm.13} parent=5 // pred_check
        %p128 = pneg %p127
      $region18: #{gated_state_spaces_lm.13} parent=5 // pred_check_branch
        %130 = sbr.rel (%p128) target = $region20
      $region19: #{gated_state_spaces_lm.13} parent=5 // pred_region
        // Predicated region
        $region21: #{gated_state_spaces_lm.13} parent=19 // pred_check
          %p131 = pneg %p69
        $region22: #{gated_state_spaces_lm.13} parent=19 // pred_check_branch
          %133 = sbr.rel (%p131) target = $region24
        $region23: #{gated_state_spaces_lm.13} parent=19 // pred_region
          %s134 = sand.u32 %s59, 1
          %s135 = sand.u32 %s59, 1
          %s136 = smul.addr %s135, 64
          %s137 = scalar_lea.vmem [#allocation2], %s136
          %s138 = smul.addr %s18, 4
          %s139 = scalar_lea.vmem %s1, %s138
          // Predicated region
          $region25: #{gated_state_spaces_lm.13} parent=23 // pred_check
            _
          $region26: #{gated_state_spaces_lm.13} parent=23 // pred_check_branch
            %141 = sbr.rel (0) target = $region28
          $region27: #{gated_state_spaces_lm.13} parent=23 // pred_region
            // Predicated region
            $region29: #{gated_state_spaces_lm.13} parent=27 // pred_check
              _
            $region30: #{gated_state_spaces_lm.13} parent=27 // pred_check_branch
              %143 = sbr.rel target = $region32
            $region31: #{gated_state_spaces_lm.13} parent=27 // pred_region
              // Predicated region
              $region44: #{gated_state_spaces_lm.13} parent=31 // pred_check
                _
              $region45: #{gated_state_spaces_lm.13} parent=31 // pred_check_branch
                %189 = sbr.rel (0) target = $region47
              $region46: #{gated_state_spaces_lm.13} parent=31 // pred_region
                loop: start=0, step=1, limit=1
                $region48: #{gated_state_spaces_lm.13} parent=46 // loop_pre_header
                  _
                $region49: #{gated_state_spaces_lm.13} parent=46 // loop_header
                  %s191 = sphi 0, %s195
                  %p192 = scmp.ge.s32.totalorder %s191, 1
                  %s196 = sphi %s139, %s139
                  %s197 = sphi %s137, %s137
                $region50: #{gated_state_spaces_lm.13} parent=46 // loop_header_branch
                  %194 = sbr.rel (%p192) target = $region54
                $region51: #{gated_state_spaces_lm.13} parent=46 // loop_body
                  _
                $region52: #{gated_state_spaces_lm.13} parent=46 // loop_footer
                  %s195 = sadd.s32 1, %s191
                $region53: #{gated_state_spaces_lm.13} parent=46 // loop_footer_branch
                  %190 = sbr.rel target = $region49
                $region54: #{gated_state_spaces_lm.13} parent=46 // loop_exit
                  _
                %s199 = ssub.s32 16, 1
                loop: start=0, step=1, limit=1
                $region55: #{gated_state_spaces_lm.13} parent=46 // loop_pre_header
                  _
                $region56: #{gated_state_spaces_lm.13} parent=46 // loop_header
                  %s201 = sphi 0, %s205
                  %p202 = scmp.ge.s32.totalorder %s201, 1
                  %s206 = sphi %s139, %s139
                  %s207 = sphi %s137, %s137
                $region57: #{gated_state_spaces_lm.13} parent=46 // loop_header_branch
                  %204 = sbr.rel (%p202) target = $region61
                $region58: #{gated_state_spaces_lm.13} parent=46 // loop_body
                  %v208 = vld [vmem:[%s206] sm:%s199]
                  %209 = vst [vmem:[%s207] sm:%s199] %v208
                  %v210 = vld [vmem:[%s206 + $0x8] sm:%s199]
                  %211 = vst [vmem:[%s207 + $0x4] sm:%s199] %v210
                  %v212 = vld [vmem:[%s206 + $0x10] sm:%s199]
                  %213 = vst [vmem:[%s207 + $0x8] sm:%s199] %v212
                  %v214 = vld [vmem:[%s206 + $0x18] sm:%s199]
                  %215 = vst [vmem:[%s207 + $0xc] sm:%s199] %v214
                  %v216 = vld [vmem:[%s206 + $0x20] sm:%s199]
                  %217 = vst [vmem:[%s207 + $0x10] sm:%s199] %v216
                  %v218 = vld [vmem:[%s206 + $0x28] sm:%s199]
                  %219 = vst [vmem:[%s207 + $0x14] sm:%s199] %v218
                  %v220 = vld [vmem:[%s206 + $0x30] sm:%s199]
                  %221 = vst [vmem:[%s207 + $0x18] sm:%s199] %v220
                  %v222 = vld [vmem:[%s206 + $0x38] sm:%s199]
                  %223 = vst [vmem:[%s207 + $0x1c] sm:%s199] %v222
                  %v224 = vld [vmem:[%s206 + $0x40] sm:%s199]
                  %225 = vst [vmem:[%s207 + $0x20] sm:%s199] %v224
                  %v226 = vld [vmem:[%s206 + $0x48] sm:%s199]
                  %227 = vst [vmem:[%s207 + $0x24] sm:%s199] %v226
                  %v228 = vld [vmem:[%s206 + $0x50] sm:%s199]
                  %229 = vst [vmem:[%s207 + $0x28] sm:%s199] %v228
                  %v230 = vld [vmem:[%s206 + $0x58] sm:%s199]
                  %231 = vst [vmem:[%s207 + $0x2c] sm:%s199] %v230
                  %v232 = vld [vmem:[%s206 + $0x60] sm:%s199]
                  %233 = vst [vmem:[%s207 + $0x30] sm:%s199] %v232
                  %v234 = vld [vmem:[%s206 + $0x68] sm:%s199]
                  %235 = vst [vmem:[%s207 + $0x34] sm:%s199] %v234
                  %v236 = vld [vmem:[%s206 + $0x70] sm:%s199]
                  %237 = vst [vmem:[%s207 + $0x38] sm:%s199] %v236
                  %v238 = vld [vmem:[%s206 + $0x78] sm:%s199]
                  %239 = vst [vmem:[%s207 + $0x3c] sm:%s199] %v238
                $region59: #{gated_state_spaces_lm.13} parent=46 // loop_footer
                  %s205 = sadd.s32 1, %s201
                $region60: #{gated_state_spaces_lm.13} parent=46 // loop_footer_branch
                  %200 = sbr.rel target = $region56
                $region61: #{gated_state_spaces_lm.13} parent=46 // loop_exit
                  _
              $region47: #{gated_state_spaces_lm.13} parent=31 // pred_fallthru
                _
            $region32: #{gated_state_spaces_lm.13} parent=27 // pred_fallthru
              _
            // Predicated region
            $region33: #{gated_state_spaces_lm.13} parent=27 // pred_check
              _
            $region34: #{gated_state_spaces_lm.13} parent=27 // pred_check_branch
              %145 = sbr.rel (0) target = $region36
            $region35: #{gated_state_spaces_lm.13} parent=27 // pred_region
              %s147 = ssub.s32 16, 1
              loop: start=0, step=1, limit=1
              $region37: #{gated_state_spaces_lm.13} parent=35 // loop_pre_header
                _
              $region38: #{gated_state_spaces_lm.13} parent=35 // loop_header
                %s149 = sphi 0, %s153
                %p150 = scmp.ge.s32.totalorder %s149, 1
                %s154 = sphi %s139, %s139
                %s155 = sphi %s137, %s137
              $region39: #{gated_state_spaces_lm.13} parent=35 // loop_header_branch
                %152 = sbr.rel (%p150) target = $region43
              $region40: #{gated_state_spaces_lm.13} parent=35 // loop_body
                %v156 = vld [vmem:[%s154] sm:%s147]
                %157 = vst [vmem:[%s155] sm:%s147] %v156
                %v158 = vld [vmem:[%s154 + $0x8] sm:%s147]
                %159 = vst [vmem:[%s155 + $0x4] sm:%s147] %v158
                %v160 = vld [vmem:[%s154 + $0x10] sm:%s147]
                %161 = vst [vmem:[%s155 + $0x8] sm:%s147] %v160
                %v162 = vld [vmem:[%s154 + $0x18] sm:%s147]
                %163 = vst [vmem:[%s155 + $0xc] sm:%s147] %v162
                %v164 = vld [vmem:[%s154 + $0x20] sm:%s147]
                %165 = vst [vmem:[%s155 + $0x10] sm:%s147] %v164
                %v166 = vld [vmem:[%s154 + $0x28] sm:%s147]
                %167 = vst [vmem:[%s155 + $0x14] sm:%s147] %v166
                %v168 = vld [vmem:[%s154 + $0x30] sm:%s147]
                %169 = vst [vmem:[%s155 + $0x18] sm:%s147] %v168
                %v170 = vld [vmem:[%s154 + $0x38] sm:%s147]
                %171 = vst [vmem:[%s155 + $0x1c] sm:%s147] %v170
                %v172 = vld [vmem:[%s154 + $0x40] sm:%s147]
                %173 = vst [vmem:[%s155 + $0x20] sm:%s147] %v172
                %v174 = vld [vmem:[%s154 + $0x48] sm:%s147]
                %175 = vst [vmem:[%s155 + $0x24] sm:%s147] %v174
                %v176 = vld [vmem:[%s154 + $0x50] sm:%s147]
                %177 = vst [vmem:[%s155 + $0x28] sm:%s147] %v176
                %v178 = vld [vmem:[%s154 + $0x58] sm:%s147]
                %179 = vst [vmem:[%s155 + $0x2c] sm:%s147] %v178
                %v180 = vld [vmem:[%s154 + $0x60] sm:%s147]
                %181 = vst [vmem:[%s155 + $0x30] sm:%s147] %v180
                %v182 = vld [vmem:[%s154 + $0x68] sm:%s147]
                %183 = vst [vmem:[%s155 + $0x34] sm:%s147] %v182
                %v184 = vld [vmem:[%s154 + $0x70] sm:%s147]
                %185 = vst [vmem:[%s155 + $0x38] sm:%s147] %v184
                %v186 = vld [vmem:[%s154 + $0x78] sm:%s147]
                %187 = vst [vmem:[%s155 + $0x3c] sm:%s147] %v186
              $region41: #{gated_state_spaces_lm.13} parent=35 // loop_footer
                %s153 = sadd.s32 1, %s149
              $region42: #{gated_state_spaces_lm.13} parent=35 // loop_footer_branch
                %148 = sbr.rel target = $region38
              $region43: #{gated_state_spaces_lm.13} parent=35 // loop_exit
                _
            $region36: #{gated_state_spaces_lm.13} parent=27 // pred_fallthru
              _
          $region28: #{gated_state_spaces_lm.13} parent=23 // pred_fallthru
            _
          %240 = vnop
        $region24: #{gated_state_spaces_lm.13} parent=19 // pred_fallthru
          _
      $region20: #{gated_state_spaces_lm.13} parent=5 // pred_fallthru
        _
      %p241 = scmp.le.s32.totalorder 1, %s11
      %p242 = scmp.lt.s32.totalorder %s11, 3
      %p243 = pnand %p241, %p242
      %p244 = pneg %p243
      // Predicated region
      $region62: #{gated_state_spaces_lm.13} parent=5 // pred_check
        _
      $region63: #{gated_state_spaces_lm.13} parent=5 // pred_check_branch
        %246 = sbr.rel (%p243) target = $region65
      $region64: #{gated_state_spaces_lm.13} parent=5 // pred_region
        %s247 = ssub.s32 %s11, 1
        %s248 = sand.u32 %s62, 1
        %s249 = sand.u32 %s62, 1
        %s250 = smul.addr %s249, 64
        %s251 = scalar_lea.vmem [#allocation2], %s250
        // Predicated region
        $region66: #{gated_state_spaces_lm.13} parent=64 // pred_check
          %p252 = pneg %p75
        $region67: #{gated_state_spaces_lm.13} parent=64 // pred_check_branch
          %254 = sbr.rel (%p252) target = $region69
        $region68: #{gated_state_spaces_lm.13} parent=64 // pred_region
          _
        $region69: #{gated_state_spaces_lm.13} parent=64 // pred_fallthru
          _
        %s255 = smul.u32 32, %s21
        %p256 = scmp.lt.s32.totalorder %s255, 31
        %s257 = scalar_select %p256, %s255, 31
        %s258 = smul.addr %s257, 8
        %s259 = scalar_lea.vmem %s0, %s258
        %p260 = pneg %p49
        %p261 = pneg %p46
        %s262 = sand.u32 %s62, 1
        %s263 = sand.u32 %s62, 1
        %s264 = smul.addr %s263, 64
        %s265 = scalar_lea.vmem [#allocation2], %s264
        %p266 = pneg %p75
        %p267 = pneg %p72
        %p268 = pneg %p103
        %p269 = pneg %p100
        %s270 = sand.u32 %s90, 1
        %s271 = scalar_lea.sflag [#allocation4], %s270
        %s272 = sand.u32 %s90, 1
        %s273 = smul.addr %s272, 256
        %s274 = scalar_lea.vmem [#allocation3], %s273
        %s275 = smul.u32 32, %s21
        %p276 = scmp.lt.s32.totalorder %s275, 31
        %s277 = scalar_select %p276, %s275, 31
        %s278 = smul.addr %s277, 8
        %s279 = scalar_lea.vmem %s0, %s278
        %s280 = smul.u32 32, %s21
        %s281 = smul.u32 32, %s21
        %v283 = vld [vmem:[%s279] sm:$0xff]
        %v284 = vld [vmem:[%s279 + $0x8] sm:$0xff]
        %v285 = vld [vmem:[%s279 + $0x10] sm:$0xff]
        %v286 = vld [vmem:[%s279 + $0x18] sm:$0xff]
        %v287 = vld [vmem:[%s279 + $0x20] sm:$0xff]
        %v288 = vld [vmem:[%s279 + $0x28] sm:$0xff]
        %v289 = vld [vmem:[%s279 + $0x30] sm:$0xff]
        %v290 = vld [vmem:[%s279 + $0x38] sm:$0xff]
        %v291 = vld [vmem:[%s279 + $0x40] sm:$0xff]
        %v292 = vld [vmem:[%s279 + $0x48] sm:$0xff]
        %v293 = vld [vmem:[%s279 + $0x50] sm:$0xff]
        %v294 = vld [vmem:[%s279 + $0x58] sm:$0xff]
        %v295 = vld [vmem:[%s279 + $0x60] sm:$0xff]
        %v296 = vld [vmem:[%s279 + $0x68] sm:$0xff]
        %v297 = vld [vmem:[%s279 + $0x70] sm:$0xff]
        %v298 = vld [vmem:[%s279 + $0x78] sm:$0xff]
        %v299 = vld [vmem:[%s279 + $0x80] sm:$0xff]
        %v300 = vld [vmem:[%s279 + $0x88] sm:$0xff]
        %v301 = vld [vmem:[%s279 + $0x90] sm:$0xff]
        %v302 = vld [vmem:[%s279 + $0x98] sm:$0xff]
        %v303 = vld [vmem:[%s279 + $0xa0] sm:$0xff]
        %v304 = vld [vmem:[%s279 + $0xa8] sm:$0xff]
        %v305 = vld [vmem:[%s279 + $0xb0] sm:$0xff]
        %v306 = vld [vmem:[%s279 + $0xb8] sm:$0xff]
        %v307 = vld [vmem:[%s279 + $0xc0] sm:$0xff]
        %v308 = vld [vmem:[%s279 + $0xc8] sm:$0xff]
        %v309 = vld [vmem:[%s279 + $0xd0] sm:$0xff]
        %v310 = vld [vmem:[%s279 + $0xd8] sm:$0xff]
        %v311 = vld [vmem:[%s279 + $0xe0] sm:$0xff]
        %v312 = vld [vmem:[%s279 + $0xe8] sm:$0xff]
        %v313 = vld [vmem:[%s279 + $0xf0] sm:$0xff]
        %v314 = vld [vmem:[%s279 + $0xf8] sm:$0xff]
        %v315 = vpack.c.bf16 %v284, %v283
        %v316 = vpack.c.bf16 %v286, %v285
        %v317 = vpack.c.bf16 %v288, %v287
        %v318 = vpack.c.bf16 %v290, %v289
        %v319 = vpack.c.bf16 %v292, %v291
        %v320 = vpack.c.bf16 %v294, %v293
        %v321 = vpack.c.bf16 %v296, %v295
        %v322 = vpack.c.bf16 %v298, %v297
        %v323 = vpack.c.bf16 %v300, %v299
        %v324 = vpack.c.bf16 %v302, %v301
        %v325 = vpack.c.bf16 %v304, %v303
        %v326 = vpack.c.bf16 %v306, %v305
        %v327 = vpack.c.bf16 %v308, %v307
        %v328 = vpack.c.bf16 %v310, %v309
        %v329 = vpack.c.bf16 %v312, %v311
        %v330 = vpack.c.bf16 %v314, %v313
        %v331 = vld [vmem:[%s251] sm:$0xf]
        %v332 = vld [vmem:[%s251 + $0x4] sm:$0xf]
        %v333 = vld [vmem:[%s251 + $0x8] sm:$0xf]
        %v334 = vld [vmem:[%s251 + $0xc] sm:$0xf]
        %v335 = vld [vmem:[%s251 + $0x10] sm:$0xf]
        %v336 = vld [vmem:[%s251 + $0x14] sm:$0xf]
        %v337 = vld [vmem:[%s251 + $0x18] sm:$0xf]
        %v338 = vld [vmem:[%s251 + $0x1c] sm:$0xf]
        %v339 = vld [vmem:[%s251 + $0x20] sm:$0xf]
        %v340 = vld [vmem:[%s251 + $0x24] sm:$0xf]
        %v341 = vld [vmem:[%s251 + $0x28] sm:$0xf]
        %v342 = vld [vmem:[%s251 + $0x2c] sm:$0xf]
        %v343 = vld [vmem:[%s251 + $0x30] sm:$0xf]
        %v344 = vld [vmem:[%s251 + $0x34] sm:$0xf]
        %v345 = vld [vmem:[%s251 + $0x38] sm:$0xf]
        %v346 = vld [vmem:[%s251 + $0x3c] sm:$0xf]
        %v363 = vunpack.c.l.b16 %v331
        %v364 = vunpack.c.l.b16 %v332
        %v365 = vunpack.c.l.b16 %v333
        %v366 = vunpack.c.l.b16 %v334
        %v367 = vunpack.c.l.b16 %v335
        %v368 = vunpack.c.l.b16 %v336
        %v369 = vunpack.c.l.b16 %v337
        %v370 = vunpack.c.l.b16 %v338
        %v371 = vunpack.c.l.b16 %v339
        %v372 = vunpack.c.l.b16 %v340
        %v373 = vunpack.c.l.b16 %v341
        %v374 = vunpack.c.l.b16 %v342
        %v375 = vunpack.c.l.b16 %v343
        %v376 = vunpack.c.l.b16 %v344
        %v377 = vunpack.c.l.b16 %v345
        %v378 = vunpack.c.l.b16 %v346
        %v379 = vpack.c.b16 %v364, %v363
        %v380 = vpack.c.b16 %v366, %v365
        %v381 = vpack.c.b16 %v368, %v367
        %v382 = vpack.c.b16 %v370, %v369
        %v383 = vpack.c.b16 %v372, %v371
        %v384 = vpack.c.b16 %v374, %v373
        %v385 = vpack.c.b16 %v376, %v375
        %v386 = vpack.c.b16 %v378, %v377
        %395 = vmatprep.subr.bf16.mxu0 0
        %396 = vmatpush1.bf16.msra.mxu0 %v386
        %397 = vmatprep.subr.bf16.mxu0 0
        %398 = vmatpush1.bf16.msra.mxu0 %v385
        %399 = vmatprep.subr.bf16.mxu0 0
        %400 = vmatpush1.bf16.msra.mxu0 %v384
        %401 = vmatprep.subr.bf16.mxu0 0
        %402 = vmatpush1.bf16.msra.mxu0 %v383
        %403 = vmatprep.subr.bf16.mxu0 0
        %404 = vmatpush1.bf16.msra.mxu0 %v382
        %405 = vmatprep.subr.bf16.mxu0 0
        %406 = vmatpush1.bf16.msra.mxu0 %v381
        %407 = vmatprep.subr.bf16.mxu0 0
        %408 = vmatpush1.bf16.msra.mxu0 %v380
        %409 = vmatprep.subr.bf16.mxu0 0
        %410 = vmatpush1.bf16.msra.mxu0 %v379
        %411 = vmatprep.subr.bf16.mxu0 0
        %412 = vmatpush2.bf16.msra.mxu0 0
        %413 = vmatprep.subr.bf16.mxu0 0
        %414 = vmatpush2.bf16.msra.mxu0 0
        %415 = vmatprep.subr.bf16.mxu0 0
        %416 = vmatpush2.bf16.msra.mxu0 0
        %417 = vmatprep.subr.bf16.mxu0 0
        %418 = vmatpush2.bf16.msra.mxu0 0
        %419 = vmatprep.subr.bf16.mxu0 0
        %420 = vmatpush2.bf16.msra.mxu0 0
        %421 = vmatprep.subr.bf16.mxu0 0
        %422 = vmatpush2.bf16.msra.mxu0 0
        %423 = vmatprep.subr.bf16.mxu0 0
        %424 = vmatpush2.bf16.msra.mxu0 0
        %425 = vmatprep.subr.bf16.mxu0 0
        %426 = vmatpush2.bf16.msra.mxu0 0
        %427 = vmatprep.mubr.bf16.mxu0 0
        %428 = vmatmul.mubr.bf16.gmra.mxu0 %v315
        %v429 = vpop.f32.mrf.mxu0
        %v430 = vadd.f32 0.0, %v429
        %v431 = vpop.f32.mrf.mxu0
        %v432 = vpop.f32.mrf.mxu0
        %v433 = vadd.f32 0.0, %v432
        %v434 = vpop.f32.mrf.mxu0
        %435 = vmatprep.mubr.bf16.mxu0 0
        %436 = vmatmul.mubr.bf16.gmra.mxu0 %v316
        %v437 = vpop.f32.mrf.mxu0
        %v438 = vadd.f32 0.0, %v437
        %v439 = vpop.f32.mrf.mxu0
        %v440 = vpop.f32.mrf.mxu0
        %v441 = vadd.f32 0.0, %v440
        %v442 = vpop.f32.mrf.mxu0
        %443 = vmatprep.mubr.bf16.mxu0 0
        %444 = vmatmul.mubr.bf16.gmra.mxu0 %v317
        %v445 = vpop.f32.mrf.mxu0
        %v446 = vadd.f32 0.0, %v445
        %v447 = vpop.f32.mrf.mxu0
        %v448 = vpop.f32.mrf.mxu0
        %v449 = vadd.f32 0.0, %v448
        %v450 = vpop.f32.mrf.mxu0
        %451 = vmatprep.mubr.bf16.mxu0 0
        %452 = vmatmul.mubr.bf16.gmra.mxu0 %v318
        %v453 = vpop.f32.mrf.mxu0
        %v454 = vadd.f32 0.0, %v453
        %v455 = vpop.f32.mrf.mxu0
        %v456 = vpop.f32.mrf.mxu0
        %v457 = vadd.f32 0.0, %v456
        %v458 = vpop.f32.mrf.mxu0
        %459 = vmatprep.mubr.bf16.mxu0 0
        %460 = vmatmul.mubr.bf16.gmra.mxu0 %v319
        %v461 = vpop.f32.mrf.mxu0
        %v462 = vadd.f32 0.0, %v461
        %v463 = vpop.f32.mrf.mxu0
        %v464 = vpop.f32.mrf.mxu0
        %v465 = vadd.f32 0.0, %v464
        %v466 = vpop.f32.mrf.mxu0
        %467 = vmatprep.mubr.bf16.mxu0 0
        %468 = vmatmul.mubr.bf16.gmra.mxu0 %v320
        %v469 = vpop.f32.mrf.mxu0
        %v470 = vadd.f32 0.0, %v469
        %v471 = vpop.f32.mrf.mxu0
        %v472 = vpop.f32.mrf.mxu0
        %v473 = vadd.f32 0.0, %v472
        %v474 = vpop.f32.mrf.mxu0
        %475 = vmatprep.mubr.bf16.mxu0 0
        %476 = vmatmul.mubr.bf16.gmra.mxu0 %v321
        %v477 = vpop.f32.mrf.mxu0
        %v478 = vadd.f32 0.0, %v477
        %v479 = vpop.f32.mrf.mxu0
        %v480 = vpop.f32.mrf.mxu0
        %v481 = vadd.f32 0.0, %v480
        %v482 = vpop.f32.mrf.mxu0
        %483 = vmatprep.mubr.bf16.mxu0 0
        %484 = vmatmul.mubr.bf16.gmra.mxu0 %v322
        %v485 = vpop.f32.mrf.mxu0
        %v486 = vadd.f32 0.0, %v485
        %v487 = vpop.f32.mrf.mxu0
        %v488 = vpop.f32.mrf.mxu0
        %v489 = vadd.f32 0.0, %v488
        %v490 = vpop.f32.mrf.mxu0
        %491 = vmatprep.mubr.bf16.mxu0 0
        %492 = vmatmul.mubr.bf16.gmra.mxu0 %v323
        %v493 = vpop.f32.mrf.mxu0
        %v494 = vadd.f32 0.0, %v493
        %v495 = vpop.f32.mrf.mxu0
        %v496 = vpop.f32.mrf.mxu0
        %v497 = vadd.f32 0.0, %v496
        %v498 = vpop.f32.mrf.mxu0
        %499 = vmatprep.mubr.bf16.mxu0 0
        %500 = vmatmul.mubr.bf16.gmra.mxu0 %v324
        %v501 = vpop.f32.mrf.mxu0
        %v502 = vadd.f32 0.0, %v501
        %v503 = vpop.f32.mrf.mxu0
        %v504 = vpop.f32.mrf.mxu0
        %v505 = vadd.f32 0.0, %v504
        %v506 = vpop.f32.mrf.mxu0
        %507 = vmatprep.mubr.bf16.mxu0 0
        %508 = vmatmul.mubr.bf16.gmra.mxu0 %v325
        %v509 = vpop.f32.mrf.mxu0
        %v510 = vadd.f32 0.0, %v509
        %v511 = vpop.f32.mrf.mxu0
        %v512 = vpop.f32.mrf.mxu0
        %v513 = vadd.f32 0.0, %v512
        %v514 = vpop.f32.mrf.mxu0
        %515 = vmatprep.mubr.bf16.mxu0 0
        %516 = vmatmul.mubr.bf16.gmra.mxu0 %v326
        %v517 = vpop.f32.mrf.mxu0
        %v518 = vadd.f32 0.0, %v517
        %v519 = vpop.f32.mrf.mxu0
        %v520 = vpop.f32.mrf.mxu0
        %v521 = vadd.f32 0.0, %v520
        %v522 = vpop.f32.mrf.mxu0
        %523 = vmatprep.mubr.bf16.mxu0 0
        %524 = vmatmul.mubr.bf16.gmra.mxu0 %v327
        %v525 = vpop.f32.mrf.mxu0
        %v526 = vadd.f32 0.0, %v525
        %v527 = vpop.f32.mrf.mxu0
        %v528 = vpop.f32.mrf.mxu0
        %v529 = vadd.f32 0.0, %v528
        %v530 = vpop.f32.mrf.mxu0
        %531 = vmatprep.mubr.bf16.mxu0 0
        %532 = vmatmul.mubr.bf16.gmra.mxu0 %v328
        %v533 = vpop.f32.mrf.mxu0
        %v534 = vadd.f32 0.0, %v533
        %v535 = vpop.f32.mrf.mxu0
        %v536 = vpop.f32.mrf.mxu0
        %v537 = vadd.f32 0.0, %v536
        %v538 = vpop.f32.mrf.mxu0
        %539 = vmatprep.mubr.bf16.mxu0 0
        %540 = vmatmul.mubr.bf16.gmra.mxu0 %v329
        %v541 = vpop.f32.mrf.mxu0
        %v542 = vadd.f32 0.0, %v541
        %v543 = vpop.f32.mrf.mxu0
        %v544 = vpop.f32.mrf.mxu0
        %v545 = vadd.f32 0.0, %v544
        %v546 = vpop.f32.mrf.mxu0
        %547 = vmatprep.mubr.bf16.mxu0 0
        %548 = vmatmul.mubr.bf16.gmra.mxu0 %v330
        %v549 = vpop.f32.mrf.mxu0
        %v550 = vadd.f32 0.0, %v549
        %v551 = vpop.f32.mrf.mxu0
        %v552 = vpop.f32.mrf.mxu0
        %v553 = vadd.f32 0.0, %v552
        %v554 = vpop.f32.mrf.mxu0
        %555 = vdwg.mxu0
        %556 = vst [vmem:[%s274] sm:$0xff] %v430
        %557 = vst [vmem:[%s274 + $0x8] sm:$0xff] %v433
        %558 = vst [vmem:[%s274 + $0x10] sm:$0xff] %v438
        %559 = vst [vmem:[%s274 + $0x18] sm:$0xff] %v441
        %560 = vst [vmem:[%s274 + $0x20] sm:$0xff] %v446
        %561 = vst [vmem:[%s274 + $0x28] sm:$0xff] %v449
        %562 = vst [vmem:[%s274 + $0x30] sm:$0xff] %v454
        %563 = vst [vmem:[%s274 + $0x38] sm:$0xff] %v457
        %564 = vst [vmem:[%s274 + $0x40] sm:$0xff] %v462
        %565 = vst [vmem:[%s274 + $0x48] sm:$0xff] %v465
        %566 = vst [vmem:[%s274 + $0x50] sm:$0xff] %v470
        %567 = vst [vmem:[%s274 + $0x58] sm:$0xff] %v473
        %568 = vst [vmem:[%s274 + $0x60] sm:$0xff] %v478
        %569 = vst [vmem:[%s274 + $0x68] sm:$0xff] %v481
        %570 = vst [vmem:[%s274 + $0x70] sm:$0xff] %v486
        %571 = vst [vmem:[%s274 + $0x78] sm:$0xff] %v489
        %572 = vst [vmem:[%s274 + $0x80] sm:$0xff] %v494
        %573 = vst [vmem:[%s274 + $0x88] sm:$0xff] %v497
        %574 = vst [vmem:[%s274 + $0x90] sm:$0xff] %v502
        %575 = vst [vmem:[%s274 + $0x98] sm:$0xff] %v505
        %576 = vst [vmem:[%s274 + $0xa0] sm:$0xff] %v510
        %577 = vst [vmem:[%s274 + $0xa8] sm:$0xff] %v513
        %578 = vst [vmem:[%s274 + $0xb0] sm:$0xff] %v518
        %579 = vst [vmem:[%s274 + $0xb8] sm:$0xff] %v521
        %580 = vst [vmem:[%s274 + $0xc0] sm:$0xff] %v526
        %581 = vst [vmem:[%s274 + $0xc8] sm:$0xff] %v529
        %582 = vst [vmem:[%s274 + $0xd0] sm:$0xff] %v534
        %583 = vst [vmem:[%s274 + $0xd8] sm:$0xff] %v537
        %584 = vst [vmem:[%s274 + $0xe0] sm:$0xff] %v542
        %585 = vst [vmem:[%s274 + $0xe8] sm:$0xff] %v545
        %586 = vst [vmem:[%s274 + $0xf0] sm:$0xff] %v550
        %587 = vst [vmem:[%s274 + $0xf8] sm:$0xff] %v553
        %s588 = sand.u32 %s90, 1
        %s589 = scalar_lea.sflag [#allocation4], %s588
        %s590 = sand.u32 %s90, 1
        %s591 = smul.addr %s590, 256
        %s592 = scalar_lea.vmem [#allocation3], %s591
        // Predicated region
        $region70: #{gated_state_spaces_lm.13} parent=64 // pred_check
          %p593 = pneg %p100
        $region71: #{gated_state_spaces_lm.13} parent=64 // pred_check_branch
          %595 = sbr.rel (%p593) target = $region73
        $region72: #{gated_state_spaces_lm.13} parent=64 // pred_region
          %s596 = smul.u32 32, %s21
          %s598 = ssub.s32 4096, 4096
          %599 = vsyncadd %s589, %s598
          %s600 = smul.addr %s596, 2
          %s601 = sadd.s32 %s20, %s600
          %s602 = smul.addr %s601, 128
          %s603 = scalar_lea.hbm %s2, %s602
          %s604 = sshll.u32 %s592, 4
          %s605 = int_to_ptr.vmem [resolvable:$true] %s604
          %610 = dma.vmem_to_hbm [thread:$0]  %s605, 4096, %s603, %s589, 128, 256, 8
        $region73: #{gated_state_spaces_lm.13} parent=64 // pred_fallthru
          _
      $region65: #{gated_state_spaces_lm.13} parent=5 // pred_fallthru
        _
      %p611 = scmp.le.s32.totalorder 2, %s11
      // Predicated region
      $region74: #{gated_state_spaces_lm.13} parent=5 // pred_check
        %p612 = pneg %p611
      $region75: #{gated_state_spaces_lm.13} parent=5 // pred_check_branch
        %614 = sbr.rel (%p612) target = $region77
      $region76: #{gated_state_spaces_lm.13} parent=5 // pred_region
        %s615 = ssub.s32 %s11, 2
        // Predicated region
        $region78: #{gated_state_spaces_lm.13} parent=76 // pred_check
          %p616 = pneg %p106
        $region79: #{gated_state_spaces_lm.13} parent=76 // pred_check_branch
          %618 = sbr.rel (%p616) target = $region81
        $region80: #{gated_state_spaces_lm.13} parent=76 // pred_region
          %s619 = sand.u32 %s91, 1
          %s620 = scalar_lea.sflag [#allocation4], %s619
          %s621 = sand.u32 %s91, 1
          %s622 = smul.addr %s621, 256
          %s623 = scalar_lea.vmem [#allocation3], %s622
          %624 = dma.done %s620, 4096
        $region81: #{gated_state_spaces_lm.13} parent=76 // pred_fallthru
          _
      $region77: #{gated_state_spaces_lm.13} parent=5 // pred_fallthru
        _
    $region6: #{gated_state_spaces_lm.13} parent=1 // loop_footer
      %s15 = sadd.s32 1, %s11
    $region7: #{gated_state_spaces_lm.13} parent=1 // loop_footer_branch
      %10 = sbr.rel target = $region3
    $region8: #{gated_state_spaces_lm.13} parent=1 // loop_exit
      _
    %625 = vsyncpa [#allocation4], 1
    %s626 = scalar_lea.sflag [#allocation4], 1
    %627 = vsyncpa %s626, 1

</llo_original>
